<compile_context>
chip_gen: v6e
topology: v6e:2x2x1
jax: 0.10.0
libtpu: 0.0.40
codegen_flags: <defaults>
</compile_context>

<pallas_src>
import functools

import jax
import jax.numpy as jnp
from jax.experimental import pallas as pl
from jax.experimental.pallas import tpu as pltpu

LN_EPS = 1e-5
_SQRT2_INV = 0.7071067811865476


# ----------------------------------------------------------------------------
# Hardware-aware sizing helpers.
# ----------------------------------------------------------------------------
def _tpu_vmem_capacity_bytes():
    try:
        return int(pltpu.get_tpu_info().vmem_capacity_bytes)
    except Exception:
        return 64 * 1024 * 1024            # conservative (v7x-sized) fallback


def _vmem_budget_bytes():
    # ~20% headroom for compiler-internal scratch / semaphores.
    return int(0.8 * _tpu_vmem_capacity_bytes())


def _prefer_multiple_row_tiles():
    # Proxy for "grid parallel axis is sharded across 2 TensorCores" (v7x has
    # 64 MiB VMEM / 2 TCs).  On single-TC chips (v5e/v6e) the grid is a serial
    # loop, so halving the tile only adds per-step overhead.
    return _tpu_vmem_capacity_bytes() <= 80 * 1024 * 1024


def _choose_row_tile(n_rows, target, fits, prefer_multi):
    """Largest tile <= target, multiple of 16 (bf16 sublane packing), dividing
    n_rows, and fitting the VMEM budget."""
    best = None
    t = min(target, n_rows)
    t -= t % 16
    while t >= 16:
        if n_rows % t == 0 and fits(t):
            best = t
            break
        t -= 16
    if best is None:
        return n_rows                       # single full-slab tile fallback
    if prefer_multi and n_rows // best < 2 and best % 32 == 0:
        best //= 2                          # give both v7x TensorCores work
    return best


def _layernorm_f32(x, gamma, beta):
    # One-pass LN: var = E[x^2] - mu^2 (both XLU reductions are independent).
    x = x.astype(jnp.float32)
    mu = jnp.mean(x, axis=-1, keepdims=True)
    ms = jnp.mean(x * x, axis=-1, keepdims=True)
    inv = jax.lax.rsqrt(ms - mu * mu + LN_EPS)
    return (x - mu) * inv * gamma.astype(jnp.float32) + beta.astype(jnp.float32)


# ----------------------------------------------------------------------------
# Fused EurNetBlock stack:
#   per block: LN1 -> (graph_conv: identity) -> proj -> residual ->
#              LN2 -> FFN(fc1, GELU, fc2) -> residual
# ----------------------------------------------------------------------------
def stage_blocks_kernel(x_ref, g1_ref, be1_ref, wp_ref, bp_ref,
                        g2_ref, be2_ref, w1_ref, bb1_ref, w2_ref, bb2_ref,
                        o_ref, acc_ref, *, weights_resident):
    d = pl.program_id(1)
    nd = pl.num_programs(1)

    # Load the token tile into the resident f32 accumulator once per row tile.
    @pl.when(d == 0)
    def _():
        acc_ref[...] = x_ref[...].astype(jnp.float32)

    x = acc_ref[...]                                         # (TM, C) f32

    # Resident weights: whole (depth, ...) stack in VMEM, pick block d here.
    wd = d if weights_resident else 0

    # norm1
    h = _layernorm_f32(x, g1_ref[wd], be1_ref[wd])

    # TODO(synk): GatedRelationalMessagePassing / graph_construction_model were
    # not provided; graph message passing is identity on node features here.

    # proj (nn.Linear(C, C)) -- bf16 feeds the MXU, f32 accumulate.
    y = jnp.dot(h.astype(jnp.bfloat16), wp_ref[wd],
                preferred_element_type=jnp.float32) + bp_ref[wd]
    x1 = x + y                                               # shortcut + drop_path

    # norm2 + FFN (fc1 -> GELU(tanh, EUP) -> fc2).
    h2 = _layernorm_f32(x1, g2_ref[wd], be2_ref[wd])
    z = jnp.dot(h2.astype(jnp.bfloat16), w1_ref[wd],
                preferred_element_type=jnp.float32) + bb1_ref[wd]
    # NOTE: tanh-approximate GELU (EUP) instead of torch's exact erf GELU;
    # deviation is tolerance-checked against the f32 reference in __main__.
    z = jax.nn.gelu(z, approximate=True)
    z = jnp.dot(z.astype(jnp.bfloat16), w2_ref[wd],
                preferred_element_type=jnp.float32) + bb2_ref[wd]

    out = x1 + z

    @pl.when(d < nd - 1)
    def _():
        acc_ref[...] = out                   # keep residual stream in f32 VMEM

    @pl.when(d == nd - 1)
    def _():
        o_ref[...] = out.astype(o_ref.dtype)  # single bf16 HBM writeback


def _stage_vmem_bytes(tm, C, Hd, depth, weights_resident, out_itemsize):
    # x tile (f32, 2-buf) + out tile (2-buf) + f32 accumulator
    act = 2 * tm * C * 4 + 2 * tm * C * out_itemsize + tm * C * 4
    # f32 temporaries (LN outputs, proj result, FFN hidden x2)
    tmp = 4 * tm * C * 4 + 2 * tm * Hd * 4
    per_block = (C * C + 2 * C * Hd) * 2 + (4 * C + Hd) * 4   # bf16 W + f32 LN/bias
    w = (2 * depth if weights_resident else 2) * per_block    # conservative 2x buffers
    return act + tmp + w


def run_stage_blocks(tokens, p, *, tm_target=1024, out_dtype=jnp.bfloat16):
    N, C = tokens.shape
    depth, _, Hd = p["w1"].shape
    out_isize = jnp.dtype(out_dtype).itemsize

    budget = _vmem_budget_bytes()
    min_tile = min(16, N)
    weights_resident = _stage_vmem_bytes(
        min_tile, C, Hd, depth, True, out_isize) <= budget
    fits = lambda t: _stage_vmem_bytes(
        t, C, Hd, depth, weights_resident, out_isize) <= budget
    tm = _choose_row_tile(N, tm_target, fits, _prefer_multiple_row_tiles())

    def w_spec(arr):
        full = arr.shape
        if weights_resident:
            # Constant block index -> weights are DMA'd once for the whole grid.
            return pl.BlockSpec(full, lambda i, d, _n=len(full): (0,) * _n)
        return pl.BlockSpec((1,) + full[1:],
                            lambda i, d, _n=len(full): (d,) + (0,) * (_n - 1))

    kernel = functools.partial(stage_blocks_kernel,
                               weights_resident=weights_resident)

    return pl.pallas_call(
        kernel,
        out_shape=jax.ShapeDtypeStruct((N, C), out_dtype),
        grid=(N // tm, depth),
        in_specs=[
            pl.BlockSpec((tm, C), lambda i, d: (i, 0)),        # token tile
            w_spec(p["g1"]), w_spec(p["b1"]),                  # norm1 gamma/beta
            w_spec(p["wp"]), w_spec(p["bp"]),                  # proj  W / b
            w_spec(p["g2"]), w_spec(p["b2"]),                  # norm2 gamma/beta
            w_spec(p["w1"]), w_spec(p["bb1"]),                 # fc1   W / b
            w_spec(p["w2"]), w_spec(p["bb2"]),                 # fc2   W / b
        ],
        out_specs=pl.BlockSpec((tm, C), lambda i, d: (i, 0)),  # resident over d
        scratch_shapes=[pltpu.VMEM((tm, C), jnp.float32)],
        compiler_params=pltpu.CompilerParams(
            dimension_semantics=("parallel", "arbitrary"),
            vmem_limit_bytes=budget),
    )(tokens, p["g1"], p["b1"], p["wp"], p["bp"], p["g2"], p["b2"],
      p["w1"], p["bb1"], p["w2"], p["bb2"])


# ----------------------------------------------------------------------------
# PatchMerging: LayerNorm(4C) + Linear(4C -> D, no bias), fed directly from the
# token slab via a free reshape (no stride-2 HBM gather pass); one K=4C dot
# per output row.
# ----------------------------------------------------------------------------
def patch_merging_kernel(x_ref, g_ref, b_ref, w_ref, o_ref):
    # x_ref: (RT, 2, Wh, 2C); parity 0 = even image row -> [x0|x2],
    #                         parity 1 = odd  image row -> [x1|x3].
    # g/b: (1, 4C), w: (4C, D)  -- all permuted to [x0, x2, x1, x3] order.
    rt = x_ref.shape[0]
    two_c = x_ref.shape[-1]
    inv_4c = 1.0 / (2.0 * two_c)
    g = g_ref[...].astype(jnp.float32)
    b = b_ref[...].astype(jnp.float32)
    w = w_ref[...]
    for p in range(rt):                                       # static unroll
        top = x_ref[p, 0].astype(jnp.float32)                 # (Wh, 2C)
        bot = x_ref[p, 1].astype(jnp.float32)
        s1 = (jnp.sum(top, axis=-1, keepdims=True)
              + jnp.sum(bot, axis=-1, keepdims=True))
        s2 = (jnp.sum(top * top, axis=-1, keepdims=True)
              + jnp.sum(bot * bot, axis=-1, keepdims=True))
        mu = s1 * inv_4c
        inv = jax.lax.rsqrt(s2 * inv_4c - mu * mu + LN_EPS)
        cat = jnp.concatenate([top, bot], axis=-1)            # (Wh, 4C)
        h = (cat - mu) * inv * g + b
        o_ref[p] = jnp.dot(h.astype(jnp.bfloat16), w,
                           preferred_element_type=jnp.float32).astype(o_ref.dtype)


def run_patch_merging(x, p, patch_resolution, *, max_pairs_per_step=8):
    B, L, C = x.shape
    H, W = patch_resolution
    Hh, Wh = H // 2, W // 2
    D = p["w"].shape[1]
    n_pairs = B * Hh

    # Free, order-preserving reshape: one leading index per 2-row strip; the two
    # horizontally-adjacent tokens of each 2x2 cell are contiguous on the lane
    # axis (2C wide) -> no stride-2 HBM gather is needed before the kernel.
    xr = x.reshape(n_pairs, 2, Wh, 2 * C)

    # Re-order LN params / weight rows from torch's [x0|x1|x2|x3] concat order
    # to the kernel's [x0|x2|x1|x3] (even row halves first, odd row second).
    def perm_cols(v):
        return jnp.concatenate([v[:, 0:C], v[:, 2 * C:3 * C],
                                v[:, C:2 * C], v[:, 3 * C:4 * C]], axis=-1)

    g = perm_cols(p["g"])
    b = perm_cols(p["b"])
    w = jnp.concatenate([p["w"][0:C], p["w"][2 * C:3 * C],
                         p["w"][C:2 * C], p["w"][3 * C:4 * C]], axis=0)

    rt = min(max_pairs_per_step, n_pairs)
    while rt > 1 and n_pairs % rt:
        rt -= 1

    out = pl.pallas_call(
        patch_merging_kernel,
        out_shape=jax.ShapeDtypeStruct((n_pairs, Wh, D), jnp.float32),
        grid=(n_pairs // rt,),
        in_specs=[
            pl.BlockSpec((rt, 2, Wh, 2 * C), lambda i: (i, 0, 0, 0)),
            pl.BlockSpec((1, 4 * C), lambda i: (0, 0)),
            pl.BlockSpec((1, 4 * C), lambda i: (0, 0)),
            pl.BlockSpec((4 * C, D), lambda i: (0, 0)),
        ],
        out_specs=pl.BlockSpec((rt, Wh, D), lambda i: (i, 0, 0)),
        compiler_params=pltpu.CompilerParams(
            dimension_semantics=("parallel",),
            vmem_limit_bytes=_vmem_budget_bytes()),
    )(xr, g, b, w)
    return out.reshape(B, Hh * Wh, D)


# ----------------------------------------------------------------------------
# EurNetStage forward
# ----------------------------------------------------------------------------
def eurnet_stage_forward(x, params, patch_resolution):
    B, L, C = x.shape
    H, W = patch_resolution
    assert L == H * W and H % 2 == 0 and W % 2 == 0

    # With identity message passing, node features are just the flat tokens.
    tokens = x.reshape(B * L, C)

    # All `depth` blocks in one fused pallas_call (activations stay in VMEM);
    # bf16 hand-off to the downsample kernel halves stage-boundary HBM traffic.
    tokens = run_stage_blocks(tokens, params["blocks"])
    xb = tokens.reshape(B, L, C)
    virtual_x = None  # x.shape[1] == L branch

    out = run_patch_merging(xb, params["downsample"], patch_resolution)
    return virtual_x, out


# ----------------------------------------------------------------------------
# Pure-JAX (f32, exact-GELU, two-pass LN) reference for tolerance checking.
# ----------------------------------------------------------------------------
def eurnet_stage_reference(x, params, patch_resolution):
    B, L, C = x.shape
    H, W = patch_resolution
    p = params["blocks"]
    depth = p["wp"].shape[0]

    def ln(v, g, b):
        mu = jnp.mean(v, -1, keepdims=True)
        var = jnp.mean((v - mu) ** 2, -1, keepdims=True)
        return (v - mu) * jax.lax.rsqrt(var + LN_EPS) * g + b

    h = x.astype(jnp.float32)
    for d in range(depth):
        sc = h
        t = ln(h, p["g1"][d, 0], p["b1"][d, 0])
        # graph conv: identity
        t = t @ p["wp"][d].astype(jnp.float32) + p["bp"][d, 0]
        h = sc + t
        t2 = ln(h, p["g2"][d, 0], p["b2"][d, 0])
        t2 = t2 @ p["w1"][d].astype(jnp.float32) + p["bb1"][d, 0]
        t2 = 0.5 * t2 * (1.0 + jax.lax.erf(t2 * _SQRT2_INV))   # exact GELU
        t2 = t2 @ p["w2"][d].astype(jnp.float32) + p["bb2"][d, 0]
        h = h + t2

    Hh, Wh = H // 2, W // 2
    x4 = h.reshape(B, H, W, C)
    x0 = x4[:, 0::2, 0::2, :]
    x1 = x4[:, 1::2, 0::2, :]
    x2 = x4[:, 0::2, 1::2, :]
    x3 = x4[:, 1::2, 1::2, :]
    cat = jnp.concatenate([x0, x1, x2, x3], -1).reshape(B, Hh * Wh, 4 * C)
    dp = params["downsample"]
    catn = ln(cat, dp["g"][0], dp["b"][0])
    return catn @ dp["w"].astype(jnp.float32)


# ----------------------------------------------------------------------------
# Deterministic parameter construction (weights stacked along a depth axis;
# matmul weights stored in bf16, LN params / biases kept in f32).
# ----------------------------------------------------------------------------
def make_params(key, input_dim, output_dim, depth, ffn_ratio):
    C = input_dim
    Hd = int(input_dim * ffn_ratio)
    ks = jax.random.split(key, 6)

    def winit(k, shape):
        return (0.02 * jax.random.normal(k, shape, jnp.float32)).astype(jnp.bfloat16)

    def binit(k, shape):
        return 0.01 * jax.random.normal(k, shape, jnp.float32)

    blocks = dict(
        g1=jnp.ones((depth, 1, C), jnp.float32),
        b1=jnp.zeros((depth, 1, C), jnp.float32),
        wp=winit(ks[0], (depth, C, C)),
        bp=binit(ks[1], (depth, 1, C)),
        g2=jnp.ones((depth, 1, C), jnp.float32),
        b2=jnp.zeros((depth, 1, C), jnp.float32),
        w1=winit(ks[2], (depth, C, Hd)),
        bb1=binit(ks[3], (depth, 1, Hd)),
        w2=winit(ks[4], (depth, Hd, C)),
        bb2=binit(ks[5], (depth, 1, C)),
    )
    kd = jax.random.fold_in(key, 1000)
    downsample = dict(
        g=jnp.ones((1, 4 * C), jnp.float32),
        b=jnp.zeros((1, 4 * C), jnp.float32),
        w=winit(kd, (4 * C, output_dim)),
    )
    return dict(blocks=blocks, downsample=downsample)


if __name__ == "__main__":
    # Small but lane-dense config: B=2, 8x8 patch grid -> L=64 tokens, C=128
    # channels, depth=2, ffn_ratio=4 -> hidden=512, out_dim=256.
    B, Hres, Wres, C = 2, 8, 8, 128
    depth, ffn_ratio, out_dim = 2, 4.0, 256
    L = Hres * Wres

    key = jax.random.PRNGKey(0)
    kx, kp = jax.random.split(key)
    x = jax.random.normal(kx, (B, L, C), jnp.float32)
    params = make_params(kp, C, out_dim, depth, ffn_ratio)

    fwd = jax.jit(functools.partial(eurnet_stage_forward,
                                    patch_resolution=(Hres, Wres)))
    virtual_x, y = fwd(x, params)
    y = jax.block_until_ready(y)

    assert virtual_x is None
    assert y.shape == (B, (Hres // 2) * (Wres // 2), out_dim), y.shape
    assert bool(jnp.all(jnp.isfinite(y)))

    # Tolerance check vs. the pure-JAX f32 reference (absorbs bf16 matmul
    # operands, bf16 stage hand-off and tanh-vs-erf GELU).
    y_ref = eurnet_stage_reference(x, params, (Hres, Wres))
    max_err = float(jnp.max(jnp.abs(y.astype(jnp.float32) - y_ref)))
    assert max_err < 6e-2, ("max abs error vs reference", max_err)

    print("KERNEL_OK")
</pallas_src>

<mosaic_0001>
module attributes {stable_mosaic.version = 11 : i64} {
  func.func @stage_blocks_kernel(%arg0: i32, %arg1: i32, %arg2: memref<64x128xf32, #tpu.memory_space<vmem>>, %arg3: memref<2x1x128xf32, #tpu.memory_space<vmem>>, %arg4: memref<2x1x128xf32, #tpu.memory_space<vmem>>, %arg5: memref<2x128x128xbf16, #tpu.memory_space<vmem>>, %arg6: memref<2x1x128xf32, #tpu.memory_space<vmem>>, %arg7: memref<2x1x128xf32, #tpu.memory_space<vmem>>, %arg8: memref<2x1x128xf32, #tpu.memory_space<vmem>>, %arg9: memref<2x128x512xbf16, #tpu.memory_space<vmem>>, %arg10: memref<2x1x512xf32, #tpu.memory_space<vmem>>, %arg11: memref<2x512x128xbf16, #tpu.memory_space<vmem>>, %arg12: memref<2x1x128xf32, #tpu.memory_space<vmem>>, %arg13: memref<64x128xbf16, #tpu.memory_space<vmem>>, %arg14: memref<64x128xf32, #tpu.memory_space<vmem>>) attributes {dimension_semantics = [#tpu.dimension_semantics<parallel>, #tpu.dimension_semantics<arbitrary>], iteration_bounds = array<i64: 2, 2>, scalar_prefetch = 0 : i64, scratch_operands = 1 : i64, tpu.core_type = #tpu.core_type<tc>, window_params = [{transform_indices = @transform_0, window_bounds = array<i64: 64, 128>}, {pipeline_mode = #tpu.pipeline_mode<synchronous>, transform_indices = @transform_1, window_bounds = array<i64: 2, 1, 128>}, {pipeline_mode = #tpu.pipeline_mode<synchronous>, transform_indices = @transform_2, window_bounds = array<i64: 2, 1, 128>}, {pipeline_mode = #tpu.pipeline_mode<synchronous>, transform_indices = @transform_3, window_bounds = array<i64: 2, 128, 128>}, {pipeline_mode = #tpu.pipeline_mode<synchronous>, transform_indices = @transform_4, window_bounds = array<i64: 2, 1, 128>}, {pipeline_mode = #tpu.pipeline_mode<synchronous>, transform_indices = @transform_5, window_bounds = array<i64: 2, 1, 128>}, {pipeline_mode = #tpu.pipeline_mode<synchronous>, transform_indices = @transform_6, window_bounds = array<i64: 2, 1, 128>}, {pipeline_mode = #tpu.pipeline_mode<synchronous>, transform_indices = @transform_7, window_bounds = array<i64: 2, 128, 512>}, {pipeline_mode = #tpu.pipeline_mode<synchronous>, transform_indices = @transform_8, window_bounds = array<i64: 2, 1, 512>}, {pipeline_mode = #tpu.pipeline_mode<synchronous>, transform_indices = @transform_9, window_bounds = array<i64: 2, 512, 128>}, {pipeline_mode = #tpu.pipeline_mode<synchronous>, transform_indices = @transform_10, window_bounds = array<i64: 2, 1, 128>}, {transform_indices = @transform_11, window_bounds = array<i64: 64, 128>}]} {
    %c0_i32 = arith.constant 0 : i32
    %0 = arith.cmpi eq, %arg1, %c0_i32 : i32
    %1 = arith.extui %0 : i1 to i32
    %c0_i32_0 = arith.constant 0 : i32
    %2 = arith.cmpi ne, %1, %c0_i32_0 : i32
    scf.if %2 {
      %c0_41 = arith.constant 0 : index
      %c0_42 = arith.constant 0 : index
      %111 = vector.load %arg2[%c0_41, %c0_42] : memref<64x128xf32, #tpu.memory_space<vmem>>, vector<64x128xf32>
      %c0_43 = arith.constant 0 : index
      %c0_44 = arith.constant 0 : index
      %112 = vector.load %arg14[%c0_43, %c0_44] : memref<64x128xf32, #tpu.memory_space<vmem>>, vector<64x128xf32>
      tpu.vector_store %arg14[%c0_43, %c0_44], %111 {strides = array<i32>} : memref<64x128xf32, #tpu.memory_space<vmem>>, vector<64x128xf32>,
    } else {
    }
    %c0 = arith.constant 0 : index
    %c0_1 = arith.constant 0 : index
    %3 = vector.load %arg14[%c0, %c0_1] : memref<64x128xf32, #tpu.memory_space<vmem>>, vector<64x128xf32>
    %4 = arith.index_cast %arg1 : i32 to index
    %c0_2 = arith.constant 0 : index
    %c0_3 = arith.constant 0 : index
    %5 = vector.load %arg3[%4, %c0_2, %c0_3] : memref<2x1x128xf32, #tpu.memory_space<vmem>>, vector<1x1x128xf32>
    %6 = vector.shape_cast %5 : vector<1x1x128xf32> to vector<1x128xf32>
    %7 = arith.index_cast %arg1 : i32 to index
    %c0_4 = arith.constant 0 : index
    %c0_5 = arith.constant 0 : index
    %8 = vector.load %arg4[%7, %c0_4, %c0_5] : memref<2x1x128xf32, #tpu.memory_space<vmem>>, vector<1x1x128xf32>
    %9 = vector.shape_cast %8 : vector<1x1x128xf32> to vector<1x128xf32>
    %cst = arith.constant dense<0.000000e+00> : vector<64xf32>
    %10 = vector.multi_reduction <add>, %3, %cst [1] : vector<64x128xf32> to vector<64xf32>
    %11 = vector.shape_cast %10 : vector<64xf32> to vector<64x1xf32>
    %cst_6 = arith.constant 1.280000e+02 : f32
    %12 = vector.broadcast %cst_6 : f32 to vector<64x1xf32>
    %13 = arith.divf %11, %12 : vector<64x1xf32>
    %14 = arith.mulf %3, %3 : vector<64x128xf32>
    %cst_7 = arith.constant dense<0.000000e+00> : vector<64xf32>
    %15 = vector.multi_reduction <add>, %14, %cst_7 [1] : vector<64x128xf32> to vector<64xf32>
    %16 = vector.shape_cast %15 : vector<64xf32> to vector<64x1xf32>
    %cst_8 = arith.constant 1.280000e+02 : f32
    %17 = vector.broadcast %cst_8 : f32 to vector<64x1xf32>
    %18 = arith.divf %16, %17 : vector<64x1xf32>
    %19 = arith.mulf %13, %13 : vector<64x1xf32>
    %20 = arith.subf %18, %19 : vector<64x1xf32>
    %cst_9 = arith.constant 9.99999974E-6 : f32
    %21 = vector.broadcast %cst_9 : f32 to vector<64x1xf32>
    %22 = arith.addf %20, %21 : vector<64x1xf32>
    %23 = math.rsqrt %22 : vector<64x1xf32>
    %24 = vector.broadcast %13 : vector<64x1xf32> to vector<64x128xf32>
    %25 = arith.subf %3, %24 : vector<64x128xf32>
    %26 = vector.broadcast %23 : vector<64x1xf32> to vector<64x128xf32>
    %27 = arith.mulf %25, %26 : vector<64x128xf32>
    %28 = vector.broadcast %6 : vector<1x128xf32> to vector<64x128xf32>
    %29 = arith.mulf %27, %28 : vector<64x128xf32>
    %30 = vector.broadcast %9 : vector<1x128xf32> to vector<64x128xf32>
    %31 = arith.addf %29, %30 : vector<64x128xf32>
    %32 = arith.truncf %31 : vector<64x128xf32> to vector<64x128xbf16>
    %33 = arith.index_cast %arg1 : i32 to index
    %c0_10 = arith.constant 0 : index
    %c0_11 = arith.constant 0 : index
    %34 = vector.load %arg5[%33, %c0_10, %c0_11] : memref<2x128x128xbf16, #tpu.memory_space<vmem>>, vector<1x128x128xbf16>
    %35 = vector.shape_cast %34 : vector<1x128x128xbf16> to vector<128x128xbf16>
    %cst_12 = arith.constant dense<0.000000e+00> : vector<64x128xf32>
    %36 = tpu.matmul %32, %35, %cst_12 {dimension_numbers = #tpu.dot_dimension_numbers<[1], [0], [0], [1], [0, 0, 1, 1], [], []>} : vector<64x128xbf16>, vector<128x128xbf16>, vector<64x128xf32> -> vector<64x128xf32>
    %37 = arith.index_cast %arg1 : i32 to index
    %c0_13 = arith.constant 0 : index
    %c0_14 = arith.constant 0 : index
    %38 = vector.load %arg6[%37, %c0_13, %c0_14] : memref<2x1x128xf32, #tpu.memory_space<vmem>>, vector<1x1x128xf32>
    %39 = vector.shape_cast %38 : vector<1x1x128xf32> to vector<1x128xf32>
    %40 = vector.broadcast %39 : vector<1x128xf32> to vector<64x128xf32>
    %41 = arith.addf %36, %40 : vector<64x128xf32>
    %42 = arith.addf %3, %41 : vector<64x128xf32>
    %43 = arith.index_cast %arg1 : i32 to index
    %c0_15 = arith.constant 0 : index
    %c0_16 = arith.constant 0 : index
    %44 = vector.load %arg7[%43, %c0_15, %c0_16] : memref<2x1x128xf32, #tpu.memory_space<vmem>>, vector<1x1x128xf32>
    %45 = vector.shape_cast %44 : vector<1x1x128xf32> to vector<1x128xf32>
    %46 = arith.index_cast %arg1 : i32 to index
    %c0_17 = arith.constant 0 : index
    %c0_18 = arith.constant 0 : index
    %47 = vector.load %arg8[%46, %c0_17, %c0_18] : memref<2x1x128xf32, #tpu.memory_space<vmem>>, vector<1x1x128xf32>
    %48 = vector.shape_cast %47 : vector<1x1x128xf32> to vector<1x128xf32>
    %cst_19 = arith.constant dense<0.000000e+00> : vector<64xf32>
    %49 = vector.multi_reduction <add>, %42, %cst_19 [1] : vector<64x128xf32> to vector<64xf32>
    %50 = vector.shape_cast %49 : vector<64xf32> to vector<64x1xf32>
    %cst_20 = arith.constant 1.280000e+02 : f32
    %51 = vector.broadcast %cst_20 : f32 to vector<64x1xf32>
    %52 = arith.divf %50, %51 : vector<64x1xf32>
    %53 = arith.mulf %42, %42 : vector<64x128xf32>
    %cst_21 = arith.constant dense<0.000000e+00> : vector<64xf32>
    %54 = vector.multi_reduction <add>, %53, %cst_21 [1] : vector<64x128xf32> to vector<64xf32>
    %55 = vector.shape_cast %54 : vector<64xf32> to vector<64x1xf32>
    %cst_22 = arith.constant 1.280000e+02 : f32
    %56 = vector.broadcast %cst_22 : f32 to vector<64x1xf32>
    %57 = arith.divf %55, %56 : vector<64x1xf32>
    %58 = arith.mulf %52, %52 : vector<64x1xf32>
    %59 = arith.subf %57, %58 : vector<64x1xf32>
    %cst_23 = arith.constant 9.99999974E-6 : f32
    %60 = vector.broadcast %cst_23 : f32 to vector<64x1xf32>
    %61 = arith.addf %59, %60 : vector<64x1xf32>
    %62 = math.rsqrt %61 : vector<64x1xf32>
    %63 = vector.broadcast %52 : vector<64x1xf32> to vector<64x128xf32>
    %64 = arith.subf %42, %63 : vector<64x128xf32>
    %65 = vector.broadcast %62 : vector<64x1xf32> to vector<64x128xf32>
    %66 = arith.mulf %64, %65 : vector<64x128xf32>
    %67 = vector.broadcast %45 : vector<1x128xf32> to vector<64x128xf32>
    %68 = arith.mulf %66, %67 : vector<64x128xf32>
    %69 = vector.broadcast %48 : vector<1x128xf32> to vector<64x128xf32>
    %70 = arith.addf %68, %69 : vector<64x128xf32>
    %71 = arith.truncf %70 : vector<64x128xf32> to vector<64x128xbf16>
    %72 = arith.index_cast %arg1 : i32 to index
    %c0_24 = arith.constant 0 : index
    %c0_25 = arith.constant 0 : index
    %73 = vector.load %arg9[%72, %c0_24, %c0_25] : memref<2x128x512xbf16, #tpu.memory_space<vmem>>, vector<1x128x512xbf16>
    %74 = vector.shape_cast %73 : vector<1x128x512xbf16> to vector<128x512xbf16>
    %cst_26 = arith.constant dense<0.000000e+00> : vector<64x512xf32>
    %75 = tpu.matmul %71, %74, %cst_26 {dimension_numbers = #tpu.dot_dimension_numbers<[1], [0], [0], [1], [0, 0, 1, 1], [], []>} : vector<64x128xbf16>, vector<128x512xbf16>, vector<64x512xf32> -> vector<64x512xf32>
    %76 = arith.index_cast %arg1 : i32 to index
    %c0_27 = arith.constant 0 : index
    %c0_28 = arith.constant 0 : index
    %77 = vector.load %arg10[%76, %c0_27, %c0_28] : memref<2x1x512xf32, #tpu.memory_space<vmem>>, vector<1x1x512xf32>
    %78 = vector.shape_cast %77 : vector<1x1x512xf32> to vector<1x512xf32>
    %79 = vector.broadcast %78 : vector<1x512xf32> to vector<64x512xf32>
    %80 = arith.addf %75, %79 : vector<64x512xf32>
    %81 = arith.mulf %80, %80 : vector<64x512xf32>
    %82 = arith.mulf %80, %81 : vector<64x512xf32>
    %cst_29 = arith.constant 4.471500e-02 : f32
    %83 = vector.broadcast %cst_29 : f32 to vector<64x512xf32>
    %84 = arith.mulf %83, %82 : vector<64x512xf32>
    %85 = arith.addf %80, %84 : vector<64x512xf32>
    %cst_30 = arith.constant 0.797884583 : f32
    %86 = vector.broadcast %cst_30 : f32 to vector<64x512xf32>
    %87 = arith.mulf %86, %85 : vector<64x512xf32>
    %88 = math.tanh %87 : vector<64x512xf32>
    %cst_31 = arith.constant 1.000000e+00 : f32
    %89 = vector.broadcast %cst_31 : f32 to vector<64x512xf32>
    %90 = arith.addf %89, %88 : vector<64x512xf32>
    %cst_32 = arith.constant 5.000000e-01 : f32
    %91 = vector.broadcast %cst_32 : f32 to vector<64x512xf32>
    %92 = arith.mulf %91, %90 : vector<64x512xf32>
    %93 = arith.mulf %80, %92 : vector<64x512xf32>
    %94 = arith.truncf %93 : vector<64x512xf32> to vector<64x512xbf16>
    %95 = arith.index_cast %arg1 : i32 to index
    %c0_33 = arith.constant 0 : index
    %c0_34 = arith.constant 0 : index
    %96 = vector.load %arg11[%95, %c0_33, %c0_34] : memref<2x512x128xbf16, #tpu.memory_space<vmem>>, vector<1x512x128xbf16>
    %97 = vector.shape_cast %96 : vector<1x512x128xbf16> to vector<512x128xbf16>
    %cst_35 = arith.constant dense<0.000000e+00> : vector<64x128xf32>
    %98 = tpu.matmul %94, %97, %cst_35 {dimension_numbers = #tpu.dot_dimension_numbers<[1], [0], [0], [1], [0, 0, 1, 1], [], []>} : vector<64x512xbf16>, vector<512x128xbf16>, vector<64x128xf32> -> vector<64x128xf32>
    %99 = arith.index_cast %arg1 : i32 to index
    %c0_36 = arith.constant 0 : index
    %c0_37 = arith.constant 0 : index
    %100 = vector.load %arg12[%99, %c0_36, %c0_37] : memref<2x1x128xf32, #tpu.memory_space<vmem>>, vector<1x1x128xf32>
    %101 = vector.shape_cast %100 : vector<1x1x128xf32> to vector<1x128xf32>
    %102 = vector.broadcast %101 : vector<1x128xf32> to vector<64x128xf32>
    %103 = arith.addf %98, %102 : vector<64x128xf32>
    %104 = arith.addf %42, %103 : vector<64x128xf32>
    %c1_i32 = arith.constant 1 : i32
    %105 = arith.cmpi slt, %arg1, %c1_i32 : i32
    %106 = arith.extui %105 : i1 to i32
    %c0_i32_38 = arith.constant 0 : i32
    %107 = arith.cmpi ne, %106, %c0_i32_38 : i32
    scf.if %107 {
      %c0_41 = arith.constant 0 : index
      %c0_42 = arith.constant 0 : index
      %111 = vector.load %arg14[%c0_41, %c0_42] : memref<64x128xf32, #tpu.memory_space<vmem>>, vector<64x128xf32>
      tpu.vector_store %arg14[%c0_41, %c0_42], %104 {strides = array<i32>} : memref<64x128xf32, #tpu.memory_space<vmem>>, vector<64x128xf32>,
    } else {
    }
    %c1_i32_39 = arith.constant 1 : i32
    %108 = arith.cmpi eq, %arg1, %c1_i32_39 : i32
    %109 = arith.extui %108 : i1 to i32
    %c0_i32_40 = arith.constant 0 : i32
    %110 = arith.cmpi ne, %109, %c0_i32_40 : i32
    scf.if %110 {
      %111 = arith.truncf %104 : vector<64x128xf32> to vector<64x128xbf16>
      %c0_41 = arith.constant 0 : index
      %c0_42 = arith.constant 0 : index
      %112 = vector.load %arg13[%c0_41, %c0_42] : memref<64x128xbf16, #tpu.memory_space<vmem>>, vector<64x128xbf16>
      tpu.vector_store %arg13[%c0_41, %c0_42], %111 {strides = array<i32>} : memref<64x128xbf16, #tpu.memory_space<vmem>>, vector<64x128xbf16>,
    } else {
    }
    return
  }
  func.func @transform_0(%arg0: i32, %arg1: i32) -> (i32, i32) {
    %c0_i32 = arith.constant 0 : i32
    %c0_i32_0 = arith.constant 0 : i32
    return %arg0, %c0_i32 : i32, i32
  }
  func.func @transform_1(%arg0: i32, %arg1: i32) -> (i32, i32, i32) {
    %c0_i32 = arith.constant 0 : i32
    %c0_i32_0 = arith.constant 0 : i32
    %c0_i32_1 = arith.constant 0 : i32
    %c0_i32_2 = arith.constant 0 : i32
    return %c0_i32, %c0_i32_0, %c0_i32_1 : i32, i32, i32
  }
  func.func @transform_2(%arg0: i32, %arg1: i32) -> (i32, i32, i32) {
    %c0_i32 = arith.constant 0 : i32
    %c0_i32_0 = arith.constant 0 : i32
    %c0_i32_1 = arith.constant 0 : i32
    %c0_i32_2 = arith.constant 0 : i32
    return %c0_i32, %c0_i32_0, %c0_i32_1 : i32, i32, i32
  }
  func.func @transform_3(%arg0: i32, %arg1: i32) -> (i32, i32, i32) {
    %c0_i32 = arith.constant 0 : i32
    %c0_i32_0 = arith.constant 0 : i32
    %c0_i32_1 = arith.constant 0 : i32
    %c0_i32_2 = arith.constant 0 : i32
    return %c0_i32, %c0_i32_0, %c0_i32_1 : i32, i32, i32
  }
  func.func @transform_4(%arg0: i32, %arg1: i32) -> (i32, i32, i32) {
    %c0_i32 = arith.constant 0 : i32
    %c0_i32_0 = arith.constant 0 : i32
    %c0_i32_1 = arith.constant 0 : i32
    %c0_i32_2 = arith.constant 0 : i32
    return %c0_i32, %c0_i32_0, %c0_i32_1 : i32, i32, i32
  }
  func.func @transform_5(%arg0: i32, %arg1: i32) -> (i32, i32, i32) {
    %c0_i32 = arith.constant 0 : i32
    %c0_i32_0 = arith.constant 0 : i32
    %c0_i32_1 = arith.constant 0 : i32
    %c0_i32_2 = arith.constant 0 : i32
    return %c0_i32, %c0_i32_0, %c0_i32_1 : i32, i32, i32
  }
  func.func @transform_6(%arg0: i32, %arg1: i32) -> (i32, i32, i32) {
    %c0_i32 = arith.constant 0 : i32
    %c0_i32_0 = arith.constant 0 : i32
    %c0_i32_1 = arith.constant 0 : i32
    %c0_i32_2 = arith.constant 0 : i32
    return %c0_i32, %c0_i32_0, %c0_i32_1 : i32, i32, i32
  }
  func.func @transform_7(%arg0: i32, %arg1: i32) -> (i32, i32, i32) {
    %c0_i32 = arith.constant 0 : i32
    %c0_i32_0 = arith.constant 0 : i32
    %c0_i32_1 = arith.constant 0 : i32
    %c0_i32_2 = arith.constant 0 : i32
    return %c0_i32, %c0_i32_0, %c0_i32_1 : i32, i32, i32
  }
  func.func @transform_8(%arg0: i32, %arg1: i32) -> (i32, i32, i32) {
    %c0_i32 = arith.constant 0 : i32
    %c0_i32_0 = arith.constant 0 : i32
    %c0_i32_1 = arith.constant 0 : i32
    %c0_i32_2 = arith.constant 0 : i32
    return %c0_i32, %c0_i32_0, %c0_i32_1 : i32, i32, i32
  }
  func.func @transform_9(%arg0: i32, %arg1: i32) -> (i32, i32, i32) {
    %c0_i32 = arith.constant 0 : i32
    %c0_i32_0 = arith.constant 0 : i32
    %c0_i32_1 = arith.constant 0 : i32
    %c0_i32_2 = arith.constant 0 : i32
    return %c0_i32, %c0_i32_0, %c0_i32_1 : i32, i32, i32
  }
  func.func @transform_10(%arg0: i32, %arg1: i32) -> (i32, i32, i32) {
    %c0_i32 = arith.constant 0 : i32
    %c0_i32_0 = arith.constant 0 : i32
    %c0_i32_1 = arith.constant 0 : i32
    %c0_i32_2 = arith.constant 0 : i32
    return %c0_i32, %c0_i32_0, %c0_i32_1 : i32, i32, i32
  }
  func.func @transform_11(%arg0: i32, %arg1: i32) -> (i32, i32) {
    %c0_i32 = arith.constant 0 : i32
    %c0_i32_0 = arith.constant 0 : i32
    return %arg0, %c0_i32 : i32, i32
  }
}

module attributes {stable_mosaic.version = 11 : i64} {
  func.func @patch_merging_kernel(%arg0: i32, %arg1: memref<8x2x4x256xbf16, #tpu.memory_space<vmem>>, %arg2: memref<1x512xf32, #tpu.memory_space<vmem>>, %arg3: memref<1x512xf32, #tpu.memory_space<vmem>>, %arg4: memref<512x256xbf16, #tpu.memory_space<vmem>>, %arg5: memref<8x4x256xf32, #tpu.memory_space<vmem>>) attributes {dimension_semantics = [#tpu.dimension_semantics<parallel>], iteration_bounds = array<i64: 1>, scalar_prefetch = 0 : i64, scratch_operands = 0 : i64, tpu.core_type = #tpu.core_type<tc>, window_params = [{transform_indices = @transform_0, window_bounds = array<i64: 8, 2, 4, 256>}, {pipeline_mode = #tpu.pipeline_mode<synchronous>, transform_indices = @transform_1, window_bounds = array<i64: 1, 512>}, {pipeline_mode = #tpu.pipeline_mode<synchronous>, transform_indices = @transform_2, window_bounds = array<i64: 1, 512>}, {pipeline_mode = #tpu.pipeline_mode<synchronous>, transform_indices = @transform_3, window_bounds = array<i64: 512, 256>}, {transform_indices = @transform_4, window_bounds = array<i64: 8, 4, 256>}]} {
    %c0 = arith.constant 0 : index
    %c0_0 = arith.constant 0 : index
    %0 = vector.load %arg2[%c0, %c0_0] : memref<1x512xf32, #tpu.memory_space<vmem>>, vector<1x512xf32>
    %c0_1 = arith.constant 0 : index
    %c0_2 = arith.constant 0 : index
    %1 = vector.load %arg3[%c0_1, %c0_2] : memref<1x512xf32, #tpu.memory_space<vmem>>, vector<1x512xf32>
    %c0_3 = arith.constant 0 : index
    %c0_4 = arith.constant 0 : index
    %2 = vector.load %arg4[%c0_3, %c0_4] : memref<512x256xbf16, #tpu.memory_space<vmem>>, vector<512x256xbf16>
    %c0_5 = arith.constant 0 : index
    %c0_6 = arith.constant 0 : index
    %c0_7 = arith.constant 0 : index
    %c0_8 = arith.constant 0 : index
    %3 = vector.load %arg1[%c0_5, %c0_6, %c0_7, %c0_8] : memref<8x2x4x256xbf16, #tpu.memory_space<vmem>>, vector<1x1x4x256xbf16>
    %4 = vector.shape_cast %3 : vector<1x1x4x256xbf16> to vector<4x256xbf16>
    %5 = arith.extf %4 : vector<4x256xbf16> to vector<4x256xf32>
    %c0_9 = arith.constant 0 : index
    %c1 = arith.constant 1 : index
    %c0_10 = arith.constant 0 : index
    %c0_11 = arith.constant 0 : index
    %6 = vector.load %arg1[%c0_9, %c1, %c0_10, %c0_11] : memref<8x2x4x256xbf16, #tpu.memory_space<vmem>>, vector<1x1x4x256xbf16>
    %7 = vector.shape_cast %6 : vector<1x1x4x256xbf16> to vector<4x256xbf16>
    %8 = arith.extf %7 : vector<4x256xbf16> to vector<4x256xf32>
    %cst = arith.constant dense<0.000000e+00> : vector<4xf32>
    %9 = vector.multi_reduction <add>, %5, %cst [1] : vector<4x256xf32> to vector<4xf32>
    %10 = vector.shape_cast %9 : vector<4xf32> to vector<4x1xf32>
    %cst_12 = arith.constant dense<0.000000e+00> : vector<4xf32>
    %11 = vector.multi_reduction <add>, %8, %cst_12 [1] : vector<4x256xf32> to vector<4xf32>
    %12 = vector.shape_cast %11 : vector<4xf32> to vector<4x1xf32>
    %13 = arith.addf %10, %12 : vector<4x1xf32>
    %14 = arith.mulf %5, %5 : vector<4x256xf32>
    %cst_13 = arith.constant dense<0.000000e+00> : vector<4xf32>
    %15 = vector.multi_reduction <add>, %14, %cst_13 [1] : vector<4x256xf32> to vector<4xf32>
    %16 = vector.shape_cast %15 : vector<4xf32> to vector<4x1xf32>
    %17 = arith.mulf %8, %8 : vector<4x256xf32>
    %cst_14 = arith.constant dense<0.000000e+00> : vector<4xf32>
    %18 = vector.multi_reduction <add>, %17, %cst_14 [1] : vector<4x256xf32> to vector<4xf32>
    %19 = vector.shape_cast %18 : vector<4xf32> to vector<4x1xf32>
    %20 = arith.addf %16, %19 : vector<4x1xf32>
    %cst_15 = arith.constant 0.001953125 : f32
    %21 = vector.broadcast %cst_15 : f32 to vector<4x1xf32>
    %22 = arith.mulf %13, %21 : vector<4x1xf32>
    %cst_16 = arith.constant 0.001953125 : f32
    %23 = vector.broadcast %cst_16 : f32 to vector<4x1xf32>
    %24 = arith.mulf %20, %23 : vector<4x1xf32>
    %25 = arith.mulf %22, %22 : vector<4x1xf32>
    %26 = arith.subf %24, %25 : vector<4x1xf32>
    %cst_17 = arith.constant 9.99999974E-6 : f32
    %27 = vector.broadcast %cst_17 : f32 to vector<4x1xf32>
    %28 = arith.addf %26, %27 : vector<4x1xf32>
    %29 = math.rsqrt %28 : vector<4x1xf32>
    %30 = tpu.concatenate %5, %8 in 1 : vector<4x256xf32>, vector<4x256xf32> -> vector<4x512xf32>
    %31 = vector.broadcast %22 : vector<4x1xf32> to vector<4x512xf32>
    %32 = arith.subf %30, %31 : vector<4x512xf32>
    %33 = vector.broadcast %29 : vector<4x1xf32> to vector<4x512xf32>
    %34 = arith.mulf %32, %33 : vector<4x512xf32>
    %35 = vector.broadcast %0 : vector<1x512xf32> to vector<4x512xf32>
    %36 = arith.mulf %34, %35 : vector<4x512xf32>
    %37 = vector.broadcast %1 : vector<1x512xf32> to vector<4x512xf32>
    %38 = arith.addf %36, %37 : vector<4x512xf32>
    %39 = arith.truncf %38 : vector<4x512xf32> to vector<4x512xbf16>
    %cst_18 = arith.constant dense<0.000000e+00> : vector<4x256xf32>
    %40 = tpu.matmul %39, %2, %cst_18 {dimension_numbers = #tpu.dot_dimension_numbers<[1], [0], [0], [1], [0, 0, 1, 1], [], []>} : vector<4x512xbf16>, vector<512x256xbf16>, vector<4x256xf32> -> vector<4x256xf32>
    %c0_19 = arith.constant 0 : index
    %c0_20 = arith.constant 0 : index
    %c0_21 = arith.constant 0 : index
    %41 = vector.load %arg5[%c0_19, %c0_20, %c0_21] : memref<8x4x256xf32, #tpu.memory_space<vmem>>, vector<1x4x256xf32>
    %42 = vector.shape_cast %41 : vector<1x4x256xf32> to vector<4x256xf32>
    %43 = vector.shape_cast %40 : vector<4x256xf32> to vector<1x4x256xf32>
    tpu.vector_store %arg5[%c0_19, %c0_20, %c0_21], %43 {strides = array<i32>} : memref<8x4x256xf32, #tpu.memory_space<vmem>>, vector<1x4x256xf32>,
    %c1_22 = arith.constant 1 : index
    %c0_23 = arith.constant 0 : index
    %c0_24 = arith.constant 0 : index
    %c0_25 = arith.constant 0 : index
    %44 = vector.load %arg1[%c1_22, %c0_23, %c0_24, %c0_25] : memref<8x2x4x256xbf16, #tpu.memory_space<vmem>>, vector<1x1x4x256xbf16>
    %45 = vector.shape_cast %44 : vector<1x1x4x256xbf16> to vector<4x256xbf16>
    %46 = arith.extf %45 : vector<4x256xbf16> to vector<4x256xf32>
    %c1_26 = arith.constant 1 : index
    %c1_27 = arith.constant 1 : index
    %c0_28 = arith.constant 0 : index
    %c0_29 = arith.constant 0 : index
    %47 = vector.load %arg1[%c1_26, %c1_27, %c0_28, %c0_29] : memref<8x2x4x256xbf16, #tpu.memory_space<vmem>>, vector<1x1x4x256xbf16>
    %48 = vector.shape_cast %47 : vector<1x1x4x256xbf16> to vector<4x256xbf16>
    %49 = arith.extf %48 : vector<4x256xbf16> to vector<4x256xf32>
    %cst_30 = arith.constant dense<0.000000e+00> : vector<4xf32>
    %50 = vector.multi_reduction <add>, %46, %cst_30 [1] : vector<4x256xf32> to vector<4xf32>
    %51 = vector.shape_cast %50 : vector<4xf32> to vector<4x1xf32>
    %cst_31 = arith.constant dense<0.000000e+00> : vector<4xf32>
    %52 = vector.multi_reduction <add>, %49, %cst_31 [1] : vector<4x256xf32> to vector<4xf32>
    %53 = vector.shape_cast %52 : vector<4xf32> to vector<4x1xf32>
    %54 = arith.addf %51, %53 : vector<4x1xf32>
    %55 = arith.mulf %46, %46 : vector<4x256xf32>
    %cst_32 = arith.constant dense<0.000000e+00> : vector<4xf32>
    %56 = vector.multi_reduction <add>, %55, %cst_32 [1] : vector<4x256xf32> to vector<4xf32>
    %57 = vector.shape_cast %56 : vector<4xf32> to vector<4x1xf32>
    %58 = arith.mulf %49, %49 : vector<4x256xf32>
    %cst_33 = arith.constant dense<0.000000e+00> : vector<4xf32>
    %59 = vector.multi_reduction <add>, %58, %cst_33 [1] : vector<4x256xf32> to vector<4xf32>
    %60 = vector.shape_cast %59 : vector<4xf32> to vector<4x1xf32>
    %61 = arith.addf %57, %60 : vector<4x1xf32>
    %cst_34 = arith.constant 0.001953125 : f32
    %62 = vector.broadcast %cst_34 : f32 to vector<4x1xf32>
    %63 = arith.mulf %54, %62 : vector<4x1xf32>
    %cst_35 = arith.constant 0.001953125 : f32
    %64 = vector.broadcast %cst_35 : f32 to vector<4x1xf32>
    %65 = arith.mulf %61, %64 : vector<4x1xf32>
    %66 = arith.mulf %63, %63 : vector<4x1xf32>
    %67 = arith.subf %65, %66 : vector<4x1xf32>
    %cst_36 = arith.constant 9.99999974E-6 : f32
    %68 = vector.broadcast %cst_36 : f32 to vector<4x1xf32>
    %69 = arith.addf %67, %68 : vector<4x1xf32>
    %70 = math.rsqrt %69 : vector<4x1xf32>
    %71 = tpu.concatenate %46, %49 in 1 : vector<4x256xf32>, vector<4x256xf32> -> vector<4x512xf32>
    %72 = vector.broadcast %63 : vector<4x1xf32> to vector<4x512xf32>
    %73 = arith.subf %71, %72 : vector<4x512xf32>
    %74 = vector.broadcast %70 : vector<4x1xf32> to vector<4x512xf32>
    %75 = arith.mulf %73, %74 : vector<4x512xf32>
    %76 = vector.broadcast %0 : vector<1x512xf32> to vector<4x512xf32>
    %77 = arith.mulf %75, %76 : vector<4x512xf32>
    %78 = vector.broadcast %1 : vector<1x512xf32> to vector<4x512xf32>
    %79 = arith.addf %77, %78 : vector<4x512xf32>
    %80 = arith.truncf %79 : vector<4x512xf32> to vector<4x512xbf16>
    %cst_37 = arith.constant dense<0.000000e+00> : vector<4x256xf32>
    %81 = tpu.matmul %80, %2, %cst_37 {dimension_numbers = #tpu.dot_dimension_numbers<[1], [0], [0], [1], [0, 0, 1, 1], [], []>} : vector<4x512xbf16>, vector<512x256xbf16>, vector<4x256xf32> -> vector<4x256xf32>
    %c1_38 = arith.constant 1 : index
    %c0_39 = arith.constant 0 : index
    %c0_40 = arith.constant 0 : index
    %82 = vector.load %arg5[%c1_38, %c0_39, %c0_40] : memref<8x4x256xf32, #tpu.memory_space<vmem>>, vector<1x4x256xf32>
    %83 = vector.shape_cast %82 : vector<1x4x256xf32> to vector<4x256xf32>
    %84 = vector.shape_cast %81 : vector<4x256xf32> to vector<1x4x256xf32>
    tpu.vector_store %arg5[%c1_38, %c0_39, %c0_40], %84 {strides = array<i32>} : memref<8x4x256xf32, #tpu.memory_space<vmem>>, vector<1x4x256xf32>,
    %c2 = arith.constant 2 : index
    %c0_41 = arith.constant 0 : index
    %c0_42 = arith.constant 0 : index
    %c0_43 = arith.constant 0 : index
    %85 = vector.load %arg1[%c2, %c0_41, %c0_42, %c0_43] : memref<8x2x4x256xbf16, #tpu.memory_space<vmem>>, vector<1x1x4x256xbf16>
    %86 = vector.shape_cast %85 : vector<1x1x4x256xbf16> to vector<4x256xbf16>
    %87 = arith.extf %86 : vector<4x256xbf16> to vector<4x256xf32>
    %c2_44 = arith.constant 2 : index
    %c1_45 = arith.constant 1 : index
    %c0_46 = arith.constant 0 : index
    %c0_47 = arith.constant 0 : index
    %88 = vector.load %arg1[%c2_44, %c1_45, %c0_46, %c0_47] : memref<8x2x4x256xbf16, #tpu.memory_space<vmem>>, vector<1x1x4x256xbf16>
    %89 = vector.shape_cast %88 : vector<1x1x4x256xbf16> to vector<4x256xbf16>
    %90 = arith.extf %89 : vector<4x256xbf16> to vector<4x256xf32>
    %cst_48 = arith.constant dense<0.000000e+00> : vector<4xf32>
    %91 = vector.multi_reduction <add>, %87, %cst_48 [1] : vector<4x256xf32> to vector<4xf32>
    %92 = vector.shape_cast %91 : vector<4xf32> to vector<4x1xf32>
    %cst_49 = arith.constant dense<0.000000e+00> : vector<4xf32>
    %93 = vector.multi_reduction <add>, %90, %cst_49 [1] : vector<4x256xf32> to vector<4xf32>
    %94 = vector.shape_cast %93 : vector<4xf32> to vector<4x1xf32>
    %95 = arith.addf %92, %94 : vector<4x1xf32>
    %96 = arith.mulf %87, %87 : vector<4x256xf32>
    %cst_50 = arith.constant dense<0.000000e+00> : vector<4xf32>
    %97 = vector.multi_reduction <add>, %96, %cst_50 [1] : vector<4x256xf32> to vector<4xf32>
    %98 = vector.shape_cast %97 : vector<4xf32> to vector<4x1xf32>
    %99 = arith.mulf %90, %90 : vector<4x256xf32>
    %cst_51 = arith.constant dense<0.000000e+00> : vector<4xf32>
    %100 = vector.multi_reduction <add>, %99, %cst_51 [1] : vector<4x256xf32> to vector<4xf32>
    %101 = vector.shape_cast %100 : vector<4xf32> to vector<4x1xf32>
    %102 = arith.addf %98, %101 : vector<4x1xf32>
    %cst_52 = arith.constant 0.001953125 : f32
    %103 = vector.broadcast %cst_52 : f32 to vector<4x1xf32>
    %104 = arith.mulf %95, %103 : vector<4x1xf32>
    %cst_53 = arith.constant 0.001953125 : f32
    %105 = vector.broadcast %cst_53 : f32 to vector<4x1xf32>
    %106 = arith.mulf %102, %105 : vector<4x1xf32>
    %107 = arith.mulf %104, %104 : vector<4x1xf32>
    %108 = arith.subf %106, %107 : vector<4x1xf32>
    %cst_54 = arith.constant 9.99999974E-6 : f32
    %109 = vector.broadcast %cst_54 : f32 to vector<4x1xf32>
    %110 = arith.addf %108, %109 : vector<4x1xf32>
    %111 = math.rsqrt %110 : vector<4x1xf32>
    %112 = tpu.concatenate %87, %90 in 1 : vector<4x256xf32>, vector<4x256xf32> -> vector<4x512xf32>
    %113 = vector.broadcast %104 : vector<4x1xf32> to vector<4x512xf32>
    %114 = arith.subf %112, %113 : vector<4x512xf32>
    %115 = vector.broadcast %111 : vector<4x1xf32> to vector<4x512xf32>
    %116 = arith.mulf %114, %115 : vector<4x512xf32>
    %117 = vector.broadcast %0 : vector<1x512xf32> to vector<4x512xf32>
    %118 = arith.mulf %116, %117 : vector<4x512xf32>
    %119 = vector.broadcast %1 : vector<1x512xf32> to vector<4x512xf32>
    %120 = arith.addf %118, %119 : vector<4x512xf32>
    %121 = arith.truncf %120 : vector<4x512xf32> to vector<4x512xbf16>
    %cst_55 = arith.constant dense<0.000000e+00> : vector<4x256xf32>
    %122 = tpu.matmul %121, %2, %cst_55 {dimension_numbers = #tpu.dot_dimension_numbers<[1], [0], [0], [1], [0, 0, 1, 1], [], []>} : vector<4x512xbf16>, vector<512x256xbf16>, vector<4x256xf32> -> vector<4x256xf32>
    %c2_56 = arith.constant 2 : index
    %c0_57 = arith.constant 0 : index
    %c0_58 = arith.constant 0 : index
    %123 = vector.load %arg5[%c2_56, %c0_57, %c0_58] : memref<8x4x256xf32, #tpu.memory_space<vmem>>, vector<1x4x256xf32>
    %124 = vector.shape_cast %123 : vector<1x4x256xf32> to vector<4x256xf32>
    %125 = vector.shape_cast %122 : vector<4x256xf32> to vector<1x4x256xf32>
    tpu.vector_store %arg5[%c2_56, %c0_57, %c0_58], %125 {strides = array<i32>} : memref<8x4x256xf32, #tpu.memory_space<vmem>>, vector<1x4x256xf32>,
    %c3 = arith.constant 3 : index
    %c0_59 = arith.constant 0 : index
    %c0_60 = arith.constant 0 : index
    %c0_61 = arith.constant 0 : index
    %126 = vector.load %arg1[%c3, %c0_59, %c0_60, %c0_61] : memref<8x2x4x256xbf16, #tpu.memory_space<vmem>>, vector<1x1x4x256xbf16>
    %127 = vector.shape_cast %126 : vector<1x1x4x256xbf16> to vector<4x256xbf16>
    %128 = arith.extf %127 : vector<4x256xbf16> to vector<4x256xf32>
    %c3_62 = arith.constant 3 : index
    %c1_63 = arith.constant 1 : index
    %c0_64 = arith.constant 0 : index
    %c0_65 = arith.constant 0 : index
    %129 = vector.load %arg1[%c3_62, %c1_63, %c0_64, %c0_65] : memref<8x2x4x256xbf16, #tpu.memory_space<vmem>>, vector<1x1x4x256xbf16>
    %130 = vector.shape_cast %129 : vector<1x1x4x256xbf16> to vector<4x256xbf16>
    %131 = arith.extf %130 : vector<4x256xbf16> to vector<4x256xf32>
    %cst_66 = arith.constant dense<0.000000e+00> : vector<4xf32>
    %132 = vector.multi_reduction <add>, %128, %cst_66 [1] : vector<4x256xf32> to vector<4xf32>
    %133 = vector.shape_cast %132 : vector<4xf32> to vector<4x1xf32>
    %cst_67 = arith.constant dense<0.000000e+00> : vector<4xf32>
    %134 = vector.multi_reduction <add>, %131, %cst_67 [1] : vector<4x256xf32> to vector<4xf32>
    %135 = vector.shape_cast %134 : vector<4xf32> to vector<4x1xf32>
    %136 = arith.addf %133, %135 : vector<4x1xf32>
    %137 = arith.mulf %128, %128 : vector<4x256xf32>
    %cst_68 = arith.constant dense<0.000000e+00> : vector<4xf32>
    %138 = vector.multi_reduction <add>, %137, %cst_68 [1] : vector<4x256xf32> to vector<4xf32>
    %139 = vector.shape_cast %138 : vector<4xf32> to vector<4x1xf32>
    %140 = arith.mulf %131, %131 : vector<4x256xf32>
    %cst_69 = arith.constant dense<0.000000e+00> : vector<4xf32>
    %141 = vector.multi_reduction <add>, %140, %cst_69 [1] : vector<4x256xf32> to vector<4xf32>
    %142 = vector.shape_cast %141 : vector<4xf32> to vector<4x1xf32>
    %143 = arith.addf %139, %142 : vector<4x1xf32>
    %cst_70 = arith.constant 0.001953125 : f32
    %144 = vector.broadcast %cst_70 : f32 to vector<4x1xf32>
    %145 = arith.mulf %136, %144 : vector<4x1xf32>
    %cst_71 = arith.constant 0.001953125 : f32
    %146 = vector.broadcast %cst_71 : f32 to vector<4x1xf32>
    %147 = arith.mulf %143, %146 : vector<4x1xf32>
    %148 = arith.mulf %145, %145 : vector<4x1xf32>
    %149 = arith.subf %147, %148 : vector<4x1xf32>
    %cst_72 = arith.constant 9.99999974E-6 : f32
    %150 = vector.broadcast %cst_72 : f32 to vector<4x1xf32>
    %151 = arith.addf %149, %150 : vector<4x1xf32>
    %152 = math.rsqrt %151 : vector<4x1xf32>
    %153 = tpu.concatenate %128, %131 in 1 : vector<4x256xf32>, vector<4x256xf32> -> vector<4x512xf32>
    %154 = vector.broadcast %145 : vector<4x1xf32> to vector<4x512xf32>
    %155 = arith.subf %153, %154 : vector<4x512xf32>
    %156 = vector.broadcast %152 : vector<4x1xf32> to vector<4x512xf32>
    %157 = arith.mulf %155, %156 : vector<4x512xf32>
    %158 = vector.broadcast %0 : vector<1x512xf32> to vector<4x512xf32>
    %159 = arith.mulf %157, %158 : vector<4x512xf32>
    %160 = vector.broadcast %1 : vector<1x512xf32> to vector<4x512xf32>
    %161 = arith.addf %159, %160 : vector<4x512xf32>
    %162 = arith.truncf %161 : vector<4x512xf32> to vector<4x512xbf16>
    %cst_73 = arith.constant dense<0.000000e+00> : vector<4x256xf32>
    %163 = tpu.matmul %162, %2, %cst_73 {dimension_numbers = #tpu.dot_dimension_numbers<[1], [0], [0], [1], [0, 0, 1, 1], [], []>} : vector<4x512xbf16>, vector<512x256xbf16>, vector<4x256xf32> -> vector<4x256xf32>
    %c3_74 = arith.constant 3 : index
    %c0_75 = arith.constant 0 : index
    %c0_76 = arith.constant 0 : index
    %164 = vector.load %arg5[%c3_74, %c0_75, %c0_76] : memref<8x4x256xf32, #tpu.memory_space<vmem>>, vector<1x4x256xf32>
    %165 = vector.shape_cast %164 : vector<1x4x256xf32> to vector<4x256xf32>
    %166 = vector.shape_cast %163 : vector<4x256xf32> to vector<1x4x256xf32>
    tpu.vector_store %arg5[%c3_74, %c0_75, %c0_76], %166 {strides = array<i32>} : memref<8x4x256xf32, #tpu.memory_space<vmem>>, vector<1x4x256xf32>,
    %c4 = arith.constant 4 : index
    %c0_77 = arith.constant 0 : index
    %c0_78 = arith.constant 0 : index
    %c0_79 = arith.constant 0 : index
    %167 = vector.load %arg1[%c4, %c0_77, %c0_78, %c0_79] : memref<8x2x4x256xbf16, #tpu.memory_space<vmem>>, vector<1x1x4x256xbf16>
    %168 = vector.shape_cast %167 : vector<1x1x4x256xbf16> to vector<4x256xbf16>
    %169 = arith.extf %168 : vector<4x256xbf16> to vector<4x256xf32>
    %c4_80 = arith.constant 4 : index
    %c1_81 = arith.constant 1 : index
    %c0_82 = arith.constant 0 : index
    %c0_83 = arith.constant 0 : index
    %170 = vector.load %arg1[%c4_80, %c1_81, %c0_82, %c0_83] : memref<8x2x4x256xbf16, #tpu.memory_space<vmem>>, vector<1x1x4x256xbf16>
    %171 = vector.shape_cast %170 : vector<1x1x4x256xbf16> to vector<4x256xbf16>
    %172 = arith.extf %171 : vector<4x256xbf16> to vector<4x256xf32>
    %cst_84 = arith.constant dense<0.000000e+00> : vector<4xf32>
    %173 = vector.multi_reduction <add>, %169, %cst_84 [1] : vector<4x256xf32> to vector<4xf32>
    %174 = vector.shape_cast %173 : vector<4xf32> to vector<4x1xf32>
    %cst_85 = arith.constant dense<0.000000e+00> : vector<4xf32>
    %175 = vector.multi_reduction <add>, %172, %cst_85 [1] : vector<4x256xf32> to vector<4xf32>
    %176 = vector.shape_cast %175 : vector<4xf32> to vector<4x1xf32>
    %177 = arith.addf %174, %176 : vector<4x1xf32>
    %178 = arith.mulf %169, %169 : vector<4x256xf32>
    %cst_86 = arith.constant dense<0.000000e+00> : vector<4xf32>
    %179 = vector.multi_reduction <add>, %178, %cst_86 [1] : vector<4x256xf32> to vector<4xf32>
    %180 = vector.shape_cast %179 : vector<4xf32> to vector<4x1xf32>
    %181 = arith.mulf %172, %172 : vector<4x256xf32>
    %cst_87 = arith.constant dense<0.000000e+00> : vector<4xf32>
    %182 = vector.multi_reduction <add>, %181, %cst_87 [1] : vector<4x256xf32> to vector<4xf32>
    %183 = vector.shape_cast %182 : vector<4xf32> to vector<4x1xf32>
    %184 = arith.addf %180, %183 : vector<4x1xf32>
    %cst_88 = arith.constant 0.001953125 : f32
    %185 = vector.broadcast %cst_88 : f32 to vector<4x1xf32>
    %186 = arith.mulf %177, %185 : vector<4x1xf32>
    %cst_89 = arith.constant 0.001953125 : f32
    %187 = vector.broadcast %cst_89 : f32 to vector<4x1xf32>
    %188 = arith.mulf %184, %187 : vector<4x1xf32>
    %189 = arith.mulf %186, %186 : vector<4x1xf32>
    %190 = arith.subf %188, %189 : vector<4x1xf32>
    %cst_90 = arith.constant 9.99999974E-6 : f32
    %191 = vector.broadcast %cst_90 : f32 to vector<4x1xf32>
    %192 = arith.addf %190, %191 : vector<4x1xf32>
    %193 = math.rsqrt %192 : vector<4x1xf32>
    %194 = tpu.concatenate %169, %172 in 1 : vector<4x256xf32>, vector<4x256xf32> -> vector<4x512xf32>
    %195 = vector.broadcast %186 : vector<4x1xf32> to vector<4x512xf32>
    %196 = arith.subf %194, %195 : vector<4x512xf32>
    %197 = vector.broadcast %193 : vector<4x1xf32> to vector<4x512xf32>
    %198 = arith.mulf %196, %197 : vector<4x512xf32>
    %199 = vector.broadcast %0 : vector<1x512xf32> to vector<4x512xf32>
    %200 = arith.mulf %198, %199 : vector<4x512xf32>
    %201 = vector.broadcast %1 : vector<1x512xf32> to vector<4x512xf32>
    %202 = arith.addf %200, %201 : vector<4x512xf32>
    %203 = arith.truncf %202 : vector<4x512xf32> to vector<4x512xbf16>
    %cst_91 = arith.constant dense<0.000000e+00> : vector<4x256xf32>
    %204 = tpu.matmul %203, %2, %cst_91 {dimension_numbers = #tpu.dot_dimension_numbers<[1], [0], [0], [1], [0, 0, 1, 1], [], []>} : vector<4x512xbf16>, vector<512x256xbf16>, vector<4x256xf32> -> vector<4x256xf32>
    %c4_92 = arith.constant 4 : index
    %c0_93 = arith.constant 0 : index
    %c0_94 = arith.constant 0 : index
    %205 = vector.load %arg5[%c4_92, %c0_93, %c0_94] : memref<8x4x256xf32, #tpu.memory_space<vmem>>, vector<1x4x256xf32>
    %206 = vector.shape_cast %205 : vector<1x4x256xf32> to vector<4x256xf32>
    %207 = vector.shape_cast %204 : vector<4x256xf32> to vector<1x4x256xf32>
    tpu.vector_store %arg5[%c4_92, %c0_93, %c0_94], %207 {strides = array<i32>} : memref<8x4x256xf32, #tpu.memory_space<vmem>>, vector<1x4x256xf32>,
    %c5 = arith.constant 5 : index
    %c0_95 = arith.constant 0 : index
    %c0_96 = arith.constant 0 : index
    %c0_97 = arith.constant 0 : index
    %208 = vector.load %arg1[%c5, %c0_95, %c0_96, %c0_97] : memref<8x2x4x256xbf16, #tpu.memory_space<vmem>>, vector<1x1x4x256xbf16>
    %209 = vector.shape_cast %208 : vector<1x1x4x256xbf16> to vector<4x256xbf16>
    %210 = arith.extf %209 : vector<4x256xbf16> to vector<4x256xf32>
    %c5_98 = arith.constant 5 : index
    %c1_99 = arith.constant 1 : index
    %c0_100 = arith.constant 0 : index
    %c0_101 = arith.constant 0 : index
    %211 = vector.load %arg1[%c5_98, %c1_99, %c0_100, %c0_101] : memref<8x2x4x256xbf16, #tpu.memory_space<vmem>>, vector<1x1x4x256xbf16>
    %212 = vector.shape_cast %211 : vector<1x1x4x256xbf16> to vector<4x256xbf16>
    %213 = arith.extf %212 : vector<4x256xbf16> to vector<4x256xf32>
    %cst_102 = arith.constant dense<0.000000e+00> : vector<4xf32>
    %214 = vector.multi_reduction <add>, %210, %cst_102 [1] : vector<4x256xf32> to vector<4xf32>
    %215 = vector.shape_cast %214 : vector<4xf32> to vector<4x1xf32>
    %cst_103 = arith.constant dense<0.000000e+00> : vector<4xf32>
    %216 = vector.multi_reduction <add>, %213, %cst_103 [1] : vector<4x256xf32> to vector<4xf32>
    %217 = vector.shape_cast %216 : vector<4xf32> to vector<4x1xf32>
    %218 = arith.addf %215, %217 : vector<4x1xf32>
    %219 = arith.mulf %210, %210 : vector<4x256xf32>
    %cst_104 = arith.constant dense<0.000000e+00> : vector<4xf32>
    %220 = vector.multi_reduction <add>, %219, %cst_104 [1] : vector<4x256xf32> to vector<4xf32>
    %221 = vector.shape_cast %220 : vector<4xf32> to vector<4x1xf32>
    %222 = arith.mulf %213, %213 : vector<4x256xf32>
    %cst_105 = arith.constant dense<0.000000e+00> : vector<4xf32>
    %223 = vector.multi_reduction <add>, %222, %cst_105 [1] : vector<4x256xf32> to vector<4xf32>
    %224 = vector.shape_cast %223 : vector<4xf32> to vector<4x1xf32>
    %225 = arith.addf %221, %224 : vector<4x1xf32>
    %cst_106 = arith.constant 0.001953125 : f32
    %226 = vector.broadcast %cst_106 : f32 to vector<4x1xf32>
    %227 = arith.mulf %218, %226 : vector<4x1xf32>
    %cst_107 = arith.constant 0.001953125 : f32
    %228 = vector.broadcast %cst_107 : f32 to vector<4x1xf32>
    %229 = arith.mulf %225, %228 : vector<4x1xf32>
    %230 = arith.mulf %227, %227 : vector<4x1xf32>
    %231 = arith.subf %229, %230 : vector<4x1xf32>
    %cst_108 = arith.constant 9.99999974E-6 : f32
    %232 = vector.broadcast %cst_108 : f32 to vector<4x1xf32>
    %233 = arith.addf %231, %232 : vector<4x1xf32>
    %234 = math.rsqrt %233 : vector<4x1xf32>
    %235 = tpu.concatenate %210, %213 in 1 : vector<4x256xf32>, vector<4x256xf32> -> vector<4x512xf32>
    %236 = vector.broadcast %227 : vector<4x1xf32> to vector<4x512xf32>
    %237 = arith.subf %235, %236 : vector<4x512xf32>
    %238 = vector.broadcast %234 : vector<4x1xf32> to vector<4x512xf32>
    %239 = arith.mulf %237, %238 : vector<4x512xf32>
    %240 = vector.broadcast %0 : vector<1x512xf32> to vector<4x512xf32>
    %241 = arith.mulf %239, %240 : vector<4x512xf32>
    %242 = vector.broadcast %1 : vector<1x512xf32> to vector<4x512xf32>
    %243 = arith.addf %241, %242 : vector<4x512xf32>
    %244 = arith.truncf %243 : vector<4x512xf32> to vector<4x512xbf16>
    %cst_109 = arith.constant dense<0.000000e+00> : vector<4x256xf32>
    %245 = tpu.matmul %244, %2, %cst_109 {dimension_numbers = #tpu.dot_dimension_numbers<[1], [0], [0], [1], [0, 0, 1, 1], [], []>} : vector<4x512xbf16>, vector<512x256xbf16>, vector<4x256xf32> -> vector<4x256xf32>
    %c5_110 = arith.constant 5 : index
    %c0_111 = arith.constant 0 : index
    %c0_112 = arith.constant 0 : index
    %246 = vector.load %arg5[%c5_110, %c0_111, %c0_112] : memref<8x4x256xf32, #tpu.memory_space<vmem>>, vector<1x4x256xf32>
    %247 = vector.shape_cast %246 : vector<1x4x256xf32> to vector<4x256xf32>
    %248 = vector.shape_cast %245 : vector<4x256xf32> to vector<1x4x256xf32>
    tpu.vector_store %arg5[%c5_110, %c0_111, %c0_112], %248 {strides = array<i32>} : memref<8x4x256xf32, #tpu.memory_space<vmem>>, vector<1x4x256xf32>,
    %c6 = arith.constant 6 : index
    %c0_113 = arith.constant 0 : index
    %c0_114 = arith.constant 0 : index
    %c0_115 = arith.constant 0 : index
    %249 = vector.load %arg1[%c6, %c0_113, %c0_114, %c0_115] : memref<8x2x4x256xbf16, #tpu.memory_space<vmem>>, vector<1x1x4x256xbf16>
    %250 = vector.shape_cast %249 : vector<1x1x4x256xbf16> to vector<4x256xbf16>
    %251 = arith.extf %250 : vector<4x256xbf16> to vector<4x256xf32>
    %c6_116 = arith.constant 6 : index
    %c1_117 = arith.constant 1 : index
    %c0_118 = arith.constant 0 : index
    %c0_119 = arith.constant 0 : index
    %252 = vector.load %arg1[%c6_116, %c1_117, %c0_118, %c0_119] : memref<8x2x4x256xbf16, #tpu.memory_space<vmem>>, vector<1x1x4x256xbf16>
    %253 = vector.shape_cast %252 : vector<1x1x4x256xbf16> to vector<4x256xbf16>
    %254 = arith.extf %253 : vector<4x256xbf16> to vector<4x256xf32>
    %cst_120 = arith.constant dense<0.000000e+00> : vector<4xf32>
    %255 = vector.multi_reduction <add>, %251, %cst_120 [1] : vector<4x256xf32> to vector<4xf32>
    %256 = vector.shape_cast %255 : vector<4xf32> to vector<4x1xf32>
    %cst_121 = arith.constant dense<0.000000e+00> : vector<4xf32>
    %257 = vector.multi_reduction <add>, %254, %cst_121 [1] : vector<4x256xf32> to vector<4xf32>
    %258 = vector.shape_cast %257 : vector<4xf32> to vector<4x1xf32>
    %259 = arith.addf %256, %258 : vector<4x1xf32>
    %260 = arith.mulf %251, %251 : vector<4x256xf32>
    %cst_122 = arith.constant dense<0.000000e+00> : vector<4xf32>
    %261 = vector.multi_reduction <add>, %260, %cst_122 [1] : vector<4x256xf32> to vector<4xf32>
    %262 = vector.shape_cast %261 : vector<4xf32> to vector<4x1xf32>
    %263 = arith.mulf %254, %254 : vector<4x256xf32>
    %cst_123 = arith.constant dense<0.000000e+00> : vector<4xf32>
    %264 = vector.multi_reduction <add>, %263, %cst_123 [1] : vector<4x256xf32> to vector<4xf32>
    %265 = vector.shape_cast %264 : vector<4xf32> to vector<4x1xf32>
    %266 = arith.addf %262, %265 : vector<4x1xf32>
    %cst_124 = arith.constant 0.001953125 : f32
    %267 = vector.broadcast %cst_124 : f32 to vector<4x1xf32>
    %268 = arith.mulf %259, %267 : vector<4x1xf32>
    %cst_125 = arith.constant 0.001953125 : f32
    %269 = vector.broadcast %cst_125 : f32 to vector<4x1xf32>
    %270 = arith.mulf %266, %269 : vector<4x1xf32>
    %271 = arith.mulf %268, %268 : vector<4x1xf32>
    %272 = arith.subf %270, %271 : vector<4x1xf32>
    %cst_126 = arith.constant 9.99999974E-6 : f32
    %273 = vector.broadcast %cst_126 : f32 to vector<4x1xf32>
    %274 = arith.addf %272, %273 : vector<4x1xf32>
    %275 = math.rsqrt %274 : vector<4x1xf32>
    %276 = tpu.concatenate %251, %254 in 1 : vector<4x256xf32>, vector<4x256xf32> -> vector<4x512xf32>
    %277 = vector.broadcast %268 : vector<4x1xf32> to vector<4x512xf32>
    %278 = arith.subf %276, %277 : vector<4x512xf32>
    %279 = vector.broadcast %275 : vector<4x1xf32> to vector<4x512xf32>
    %280 = arith.mulf %278, %279 : vector<4x512xf32>
    %281 = vector.broadcast %0 : vector<1x512xf32> to vector<4x512xf32>
    %282 = arith.mulf %280, %281 : vector<4x512xf32>
    %283 = vector.broadcast %1 : vector<1x512xf32> to vector<4x512xf32>
    %284 = arith.addf %282, %283 : vector<4x512xf32>
    %285 = arith.truncf %284 : vector<4x512xf32> to vector<4x512xbf16>
    %cst_127 = arith.constant dense<0.000000e+00> : vector<4x256xf32>
    %286 = tpu.matmul %285, %2, %cst_127 {dimension_numbers = #tpu.dot_dimension_numbers<[1], [0], [0], [1], [0, 0, 1, 1], [], []>} : vector<4x512xbf16>, vector<512x256xbf16>, vector<4x256xf32> -> vector<4x256xf32>
    %c6_128 = arith.constant 6 : index
    %c0_129 = arith.constant 0 : index
    %c0_130 = arith.constant 0 : index
    %287 = vector.load %arg5[%c6_128, %c0_129, %c0_130] : memref<8x4x256xf32, #tpu.memory_space<vmem>>, vector<1x4x256xf32>
    %288 = vector.shape_cast %287 : vector<1x4x256xf32> to vector<4x256xf32>
    %289 = vector.shape_cast %286 : vector<4x256xf32> to vector<1x4x256xf32>
    tpu.vector_store %arg5[%c6_128, %c0_129, %c0_130], %289 {strides = array<i32>} : memref<8x4x256xf32, #tpu.memory_space<vmem>>, vector<1x4x256xf32>,
    %c7 = arith.constant 7 : index
    %c0_131 = arith.constant 0 : index
    %c0_132 = arith.constant 0 : index
    %c0_133 = arith.constant 0 : index
    %290 = vector.load %arg1[%c7, %c0_131, %c0_132, %c0_133] : memref<8x2x4x256xbf16, #tpu.memory_space<vmem>>, vector<1x1x4x256xbf16>
    %291 = vector.shape_cast %290 : vector<1x1x4x256xbf16> to vector<4x256xbf16>
    %292 = arith.extf %291 : vector<4x256xbf16> to vector<4x256xf32>
    %c7_134 = arith.constant 7 : index
    %c1_135 = arith.constant 1 : index
    %c0_136 = arith.constant 0 : index
    %c0_137 = arith.constant 0 : index
    %293 = vector.load %arg1[%c7_134, %c1_135, %c0_136, %c0_137] : memref<8x2x4x256xbf16, #tpu.memory_space<vmem>>, vector<1x1x4x256xbf16>
    %294 = vector.shape_cast %293 : vector<1x1x4x256xbf16> to vector<4x256xbf16>
    %295 = arith.extf %294 : vector<4x256xbf16> to vector<4x256xf32>
    %cst_138 = arith.constant dense<0.000000e+00> : vector<4xf32>
    %296 = vector.multi_reduction <add>, %292, %cst_138 [1] : vector<4x256xf32> to vector<4xf32>
    %297 = vector.shape_cast %296 : vector<4xf32> to vector<4x1xf32>
    %cst_139 = arith.constant dense<0.000000e+00> : vector<4xf32>
    %298 = vector.multi_reduction <add>, %295, %cst_139 [1] : vector<4x256xf32> to vector<4xf32>
    %299 = vector.shape_cast %298 : vector<4xf32> to vector<4x1xf32>
    %300 = arith.addf %297, %299 : vector<4x1xf32>
    %301 = arith.mulf %292, %292 : vector<4x256xf32>
    %cst_140 = arith.constant dense<0.000000e+00> : vector<4xf32>
    %302 = vector.multi_reduction <add>, %301, %cst_140 [1] : vector<4x256xf32> to vector<4xf32>
    %303 = vector.shape_cast %302 : vector<4xf32> to vector<4x1xf32>
    %304 = arith.mulf %295, %295 : vector<4x256xf32>
    %cst_141 = arith.constant dense<0.000000e+00> : vector<4xf32>
    %305 = vector.multi_reduction <add>, %304, %cst_141 [1] : vector<4x256xf32> to vector<4xf32>
    %306 = vector.shape_cast %305 : vector<4xf32> to vector<4x1xf32>
    %307 = arith.addf %303, %306 : vector<4x1xf32>
    %cst_142 = arith.constant 0.001953125 : f32
    %308 = vector.broadcast %cst_142 : f32 to vector<4x1xf32>
    %309 = arith.mulf %300, %308 : vector<4x1xf32>
    %cst_143 = arith.constant 0.001953125 : f32
    %310 = vector.broadcast %cst_143 : f32 to vector<4x1xf32>
    %311 = arith.mulf %307, %310 : vector<4x1xf32>
    %312 = arith.mulf %309, %309 : vector<4x1xf32>
    %313 = arith.subf %311, %312 : vector<4x1xf32>
    %cst_144 = arith.constant 9.99999974E-6 : f32
    %314 = vector.broadcast %cst_144 : f32 to vector<4x1xf32>
    %315 = arith.addf %313, %314 : vector<4x1xf32>
    %316 = math.rsqrt %315 : vector<4x1xf32>
    %317 = tpu.concatenate %292, %295 in 1 : vector<4x256xf32>, vector<4x256xf32> -> vector<4x512xf32>
    %318 = vector.broadcast %309 : vector<4x1xf32> to vector<4x512xf32>
    %319 = arith.subf %317, %318 : vector<4x512xf32>
    %320 = vector.broadcast %316 : vector<4x1xf32> to vector<4x512xf32>
    %321 = arith.mulf %319, %320 : vector<4x512xf32>
    %322 = vector.broadcast %0 : vector<1x512xf32> to vector<4x512xf32>
    %323 = arith.mulf %321, %322 : vector<4x512xf32>
    %324 = vector.broadcast %1 : vector<1x512xf32> to vector<4x512xf32>
    %325 = arith.addf %323, %324 : vector<4x512xf32>
    %326 = arith.truncf %325 : vector<4x512xf32> to vector<4x512xbf16>
    %cst_145 = arith.constant dense<0.000000e+00> : vector<4x256xf32>
    %327 = tpu.matmul %326, %2, %cst_145 {dimension_numbers = #tpu.dot_dimension_numbers<[1], [0], [0], [1], [0, 0, 1, 1], [], []>} : vector<4x512xbf16>, vector<512x256xbf16>, vector<4x256xf32> -> vector<4x256xf32>
    %c7_146 = arith.constant 7 : index
    %c0_147 = arith.constant 0 : index
    %c0_148 = arith.constant 0 : index
    %328 = vector.load %arg5[%c7_146, %c0_147, %c0_148] : memref<8x4x256xf32, #tpu.memory_space<vmem>>, vector<1x4x256xf32>
    %329 = vector.shape_cast %328 : vector<1x4x256xf32> to vector<4x256xf32>
    %330 = vector.shape_cast %327 : vector<4x256xf32> to vector<1x4x256xf32>
    tpu.vector_store %arg5[%c7_146, %c0_147, %c0_148], %330 {strides = array<i32>} : memref<8x4x256xf32, #tpu.memory_space<vmem>>, vector<1x4x256xf32>,
    return
  }
  func.func @transform_0(%arg0: i32) -> (i32, i32, i32, i32) {
    %c0_i32 = arith.constant 0 : i32
    %c0_i32_0 = arith.constant 0 : i32
    %c0_i32_1 = arith.constant 0 : i32
    %c0_i32_2 = arith.constant 0 : i32
    return %arg0, %c0_i32, %c0_i32_0, %c0_i32_1 : i32, i32, i32, i32
  }
  func.func @transform_1(%arg0: i32) -> (i32, i32) {
    %c0_i32 = arith.constant 0 : i32
    %c0_i32_0 = arith.constant 0 : i32
    %c0_i32_1 = arith.constant 0 : i32
    return %c0_i32, %c0_i32_0 : i32, i32
  }
  func.func @transform_2(%arg0: i32) -> (i32, i32) {
    %c0_i32 = arith.constant 0 : i32
    %c0_i32_0 = arith.constant 0 : i32
    %c0_i32_1 = arith.constant 0 : i32
    return %c0_i32, %c0_i32_0 : i32, i32
  }
  func.func @transform_3(%arg0: i32) -> (i32, i32) {
    %c0_i32 = arith.constant 0 : i32
    %c0_i32_0 = arith.constant 0 : i32
    %c0_i32_1 = arith.constant 0 : i32
    return %c0_i32, %c0_i32_0 : i32, i32
  }
  func.func @transform_4(%arg0: i32) -> (i32, i32, i32) {
    %c0_i32 = arith.constant 0 : i32
    %c0_i32_0 = arith.constant 0 : i32
    %c0_i32_1 = arith.constant 0 : i32
    return %arg0, %c0_i32, %c0_i32_0 : i32, i32, i32
  }
}

</mosaic_0001>

<llo_original>
// kernel: eurnet_stage_forward.3
$region0: #{eurnet_stage_forward.3}
  #allocation0 [shape = 'u32[]', space=smem, size = 0x4, offset = 0x4, fixed_abs, tag = 'smem constant byte address 0x4 - core index']
  #allocation1 [shape = 'u32[144,128]{1,0:T(1,128)}', space=vmem, size = 0x12000, scoped, tag = 'internal scratch']
  %s0 = inlined_call_operand.vmem [shape: bf16[8,2,4,256], index: 0, kind: input, shape index: {}]
  %s1 = inlined_call_operand.vmem [shape: f32[1,512], index: 1, kind: input, shape index: {}]
  %s2 = inlined_call_operand.vmem [shape: f32[1,512], index: 2, kind: input, shape index: {}]
  %s3 = inlined_call_operand.vmem [shape: bf16[512,256], index: 3, kind: input, shape index: {}]
  %s4 = inlined_call_operand.vmem [shape: f32[8,4,256], index: 4, kind: output, shape index: {}]
  %s5 = sld [smem:[#allocation0]]
  $region26: #{eurnet_stage_forward.3} parent=0
    _
  %s7 = ssub.s32 1, %s5
  %s8 = scalar_select 0, %s7, %s5
  // Predicated region
  $region2: #{eurnet_stage_forward.3} parent=0 // pred_check
    _
  $region3: #{eurnet_stage_forward.3} parent=0 // pred_check_branch
    %10 = sbr.rel (0) target = $region5
  $region4: #{eurnet_stage_forward.3} parent=0 // pred_region
    _
  $region5: #{eurnet_stage_forward.3} parent=0 // pred_fallthru
    _
  // Predicated region
  $region6: #{eurnet_stage_forward.3} parent=0 // pred_check
    _
  $region7: #{eurnet_stage_forward.3} parent=0 // pred_check_branch
    %12 = sbr.rel (0) target = $region9
  $region8: #{eurnet_stage_forward.3} parent=0 // pred_region
    _
  $region9: #{eurnet_stage_forward.3} parent=0 // pred_fallthru
    _
  // Predicated region
  $region10: #{eurnet_stage_forward.3} parent=0 // pred_check
    _
  $region11: #{eurnet_stage_forward.3} parent=0 // pred_check_branch
    %14 = sbr.rel (0) target = $region13
  $region12: #{eurnet_stage_forward.3} parent=0 // pred_region
    _
  $region13: #{eurnet_stage_forward.3} parent=0 // pred_fallthru
    _
  // Predicated region
  $region14: #{eurnet_stage_forward.3} parent=0 // pred_check
    _
  $region15: #{eurnet_stage_forward.3} parent=0 // pred_check_branch
    %16 = sbr.rel (0) target = $region17
  $region16: #{eurnet_stage_forward.3} parent=0 // pred_region
    _
  $region17: #{eurnet_stage_forward.3} parent=0 // pred_fallthru
    _
  %v17 = vld [vmem:[%s1] sm:$0xf]
  %v18 = vld [vmem:[%s2] sm:$0xf]
  %v19 = vld [vmem:[%s3] sm:$0xff]
  %v20 = vld [vmem:[%s3 + $0x8] sm:$0xff]
  %v21 = vld [vmem:[%s3 + $0x10] sm:$0xff]
  %v22 = vld [vmem:[%s3 + $0x18] sm:$0xff]
  %v23 = vld [vmem:[%s3 + $0x20] sm:$0xff]
  %v24 = vld [vmem:[%s3 + $0x28] sm:$0xff]
  %v25 = vld [vmem:[%s3 + $0x30] sm:$0xff]
  %v26 = vld [vmem:[%s3 + $0x38] sm:$0xff]
  %v27 = vld [vmem:[%s3 + $0x40] sm:$0xff]
  %v28 = vld [vmem:[%s3 + $0x48] sm:$0xff]
  %v29 = vld [vmem:[%s3 + $0x50] sm:$0xff]
  %v30 = vld [vmem:[%s3 + $0x58] sm:$0xff]
  %v31 = vld [vmem:[%s3 + $0x60] sm:$0xff]
  %v32 = vld [vmem:[%s3 + $0x68] sm:$0xff]
  %v33 = vld [vmem:[%s3 + $0x70] sm:$0xff]
  %v34 = vld [vmem:[%s3 + $0x78] sm:$0xff]
  %v35 = vld [vmem:[%s3 + $0x80] sm:$0xff]
  %v36 = vld [vmem:[%s3 + $0x88] sm:$0xff]
  %v37 = vld [vmem:[%s3 + $0x90] sm:$0xff]
  %v38 = vld [vmem:[%s3 + $0x98] sm:$0xff]
  %v39 = vld [vmem:[%s3 + $0xa0] sm:$0xff]
  %v40 = vld [vmem:[%s3 + $0xa8] sm:$0xff]
  %v41 = vld [vmem:[%s3 + $0xb0] sm:$0xff]
  %v42 = vld [vmem:[%s3 + $0xb8] sm:$0xff]
  %v43 = vld [vmem:[%s3 + $0xc0] sm:$0xff]
  %v44 = vld [vmem:[%s3 + $0xc8] sm:$0xff]
  %v45 = vld [vmem:[%s3 + $0xd0] sm:$0xff]
  %v46 = vld [vmem:[%s3 + $0xd8] sm:$0xff]
  %v47 = vld [vmem:[%s3 + $0xe0] sm:$0xff]
  %v48 = vld [vmem:[%s3 + $0xe8] sm:$0xff]
  %v49 = vld [vmem:[%s3 + $0xf0] sm:$0xff]
  %v50 = vld [vmem:[%s3 + $0xf8] sm:$0xff]
  %v51 = vld [vmem:[%s3 + $0x100] sm:$0xff]
  %v52 = vld [vmem:[%s3 + $0x108] sm:$0xff]
  %v53 = vld [vmem:[%s3 + $0x110] sm:$0xff]
  %v54 = vld [vmem:[%s3 + $0x118] sm:$0xff]
  %v55 = vld [vmem:[%s3 + $0x120] sm:$0xff]
  %v56 = vld [vmem:[%s3 + $0x128] sm:$0xff]
  %v57 = vld [vmem:[%s3 + $0x130] sm:$0xff]
  %v58 = vld [vmem:[%s3 + $0x138] sm:$0xff]
  %v59 = vld [vmem:[%s3 + $0x140] sm:$0xff]
  %v60 = vld [vmem:[%s3 + $0x148] sm:$0xff]
  %v61 = vld [vmem:[%s3 + $0x150] sm:$0xff]
  %v62 = vld [vmem:[%s3 + $0x158] sm:$0xff]
  %v63 = vld [vmem:[%s3 + $0x160] sm:$0xff]
  %v64 = vld [vmem:[%s3 + $0x168] sm:$0xff]
  %v65 = vld [vmem:[%s3 + $0x170] sm:$0xff]
  %v66 = vld [vmem:[%s3 + $0x178] sm:$0xff]
  %v67 = vld [vmem:[%s3 + $0x180] sm:$0xff]
  %v68 = vld [vmem:[%s3 + $0x188] sm:$0xff]
  %v69 = vld [vmem:[%s3 + $0x190] sm:$0xff]
  %v70 = vld [vmem:[%s3 + $0x198] sm:$0xff]
  %v71 = vld [vmem:[%s3 + $0x1a0] sm:$0xff]
  %v72 = vld [vmem:[%s3 + $0x1a8] sm:$0xff]
  %v73 = vld [vmem:[%s3 + $0x1b0] sm:$0xff]
  %v74 = vld [vmem:[%s3 + $0x1b8] sm:$0xff]
  %v75 = vld [vmem:[%s3 + $0x1c0] sm:$0xff]
  %v76 = vld [vmem:[%s3 + $0x1c8] sm:$0xff]
  %v77 = vld [vmem:[%s3 + $0x1d0] sm:$0xff]
  %v78 = vld [vmem:[%s3 + $0x1d8] sm:$0xff]
  %v79 = vld [vmem:[%s3 + $0x1e0] sm:$0xff]
  %v80 = vld [vmem:[%s3 + $0x1e8] sm:$0xff]
  %v81 = vld [vmem:[%s3 + $0x1f0] sm:$0xff]
  %v82 = vld [vmem:[%s3 + $0x1f8] sm:$0xff]
  %v83 = vld [vmem:[%s0] sm:$0xf]
  %v84 = vunpack.c.l.bf16 %v83
  %s85 = scalar_lea.vmem %s0, 4
  %v86 = vld [vmem:[%s85] sm:$0xf]
  %v87 = vunpack.c.l.bf16 %v86
  %v89 = vcombine.high %v84, %v84
  %vm91 = vcmask 1043456
  %v92 = vsel %vm91, %v84, 0.0
  %v93 = vsel %vm91, %v89, 0.0
  %v94 = vadd.f32 %v92, %v93
  %95 = vadd.xlane.f32.xlu0 %v94
  %v96 = vpop.xlane.xlu0 %95
  %v98 = vcombine.high %v87, %v87
  %v100 = vsel %vm91, %v87, 0.0
  %v101 = vsel %vm91, %v98, 0.0
  %v102 = vadd.f32 %v100, %v101
  %103 = vadd.xlane.f32.xlu0 %v102
  %v104 = vpop.xlane.xlu0 %103
  %v105 = vadd.f32 %v96, %v104
  %v106 = vmul.f32 %v84, %v84
  %v108 = vcombine.high %v106, %v106
  %v110 = vsel %vm91, %v106, 0.0
  %v111 = vsel %vm91, %v108, 0.0
  %v112 = vadd.f32 %v110, %v111
  %113 = vadd.xlane.f32.xlu0 %v112
  %v114 = vpop.xlane.xlu0 %113
  %v115 = vmul.f32 %v87, %v87
  %v117 = vcombine.high %v115, %v115
  %v119 = vsel %vm91, %v115, 0.0
  %v120 = vsel %vm91, %v117, 0.0
  %v121 = vadd.f32 %v119, %v120
  %122 = vadd.xlane.f32.xlu0 %v121
  %v123 = vpop.xlane.xlu0 %122
  %v124 = vadd.f32 %v114, %v123
  %v125 = vmul.f32 %v105, 0.001953125
  %v126 = vmul.f32 %v124, 0.001953125
  %v127 = vmul.f32 %v125, %v125
  %v128 = vsub.f32 %v126, %v127
  %v129 = vadd.f32 %v128, 1e-05
  %v130 = vrsqrt.pop %v129
  %v131 = vsub.f32 %v84, %v125
  %v132 = vsub.f32 %v89, %v125
  %v133 = vsub.f32 %v87, %v125
  %v134 = vsub.f32 %v98, %v125
  %v135 = vmul.f32 %v131, %v130
  %v136 = vmul.f32 %v132, %v130
  %v137 = vmul.f32 %v133, %v130
  %v138 = vmul.f32 %v134, %v130
  %v140 = vlaneseq
  %v141 = vshrl.u32 %v140, 7
  %v142 = vsub.s32 0, %v141
  %v143 = vrot.slane %v17, %v142
  %v144 = vlaneseq
  %v145 = vshrl.u32 %v144, 7
  %v146 = vsub.s32 1, %v145
  %v147 = vrot.slane %v17, %v146
  %v148 = vlaneseq
  %v149 = vshrl.u32 %v148, 7
  %v150 = vsub.s32 2, %v149
  %v151 = vrot.slane %v17, %v150
  %v152 = vlaneseq
  %v153 = vshrl.u32 %v152, 7
  %v154 = vsub.s32 3, %v153
  %v155 = vrot.slane %v17, %v154
  %v160 = vmul.f32 %v135, %v143
  %v161 = vmul.f32 %v136, %v147
  %v162 = vmul.f32 %v137, %v151
  %v163 = vmul.f32 %v138, %v155
  %v165 = vlaneseq
  %v166 = vshrl.u32 %v165, 7
  %v167 = vsub.s32 0, %v166
  %v168 = vrot.slane %v18, %v167
  %v169 = vlaneseq
  %v170 = vshrl.u32 %v169, 7
  %v171 = vsub.s32 1, %v170
  %v172 = vrot.slane %v18, %v171
  %v173 = vlaneseq
  %v174 = vshrl.u32 %v173, 7
  %v175 = vsub.s32 2, %v174
  %v176 = vrot.slane %v18, %v175
  %v177 = vlaneseq
  %v178 = vshrl.u32 %v177, 7
  %v179 = vsub.s32 3, %v178
  %v180 = vrot.slane %v18, %v179
  %v185 = vadd.f32 %v160, %v168
  %v186 = vadd.f32 %v161, %v172
  %v187 = vadd.f32 %v162, %v176
  %v188 = vadd.f32 %v163, %v180
  %v189 = vpack.c.bf16 %v185, %v185
  %v190 = vpack.c.bf16 %v186, %v186
  %v191 = vpack.c.bf16 %v187, %v187
  %v192 = vpack.c.bf16 %v188, %v188
  %v257 = vunpack.c.l.b16 %v19
  %v258 = vunpack.c.h.b16 %v19
  %v259 = vunpack.c.l.b16 %v20
  %v260 = vunpack.c.h.b16 %v20
  %v261 = vunpack.c.l.b16 %v21
  %v262 = vunpack.c.h.b16 %v21
  %v263 = vunpack.c.l.b16 %v22
  %v264 = vunpack.c.h.b16 %v22
  %v265 = vunpack.c.l.b16 %v23
  %v266 = vunpack.c.h.b16 %v23
  %v267 = vunpack.c.l.b16 %v24
  %v268 = vunpack.c.h.b16 %v24
  %v269 = vunpack.c.l.b16 %v25
  %v270 = vunpack.c.h.b16 %v25
  %v271 = vunpack.c.l.b16 %v26
  %v272 = vunpack.c.h.b16 %v26
  %v273 = vunpack.c.l.b16 %v27
  %v274 = vunpack.c.h.b16 %v27
  %v275 = vunpack.c.l.b16 %v28
  %v276 = vunpack.c.h.b16 %v28
  %v277 = vunpack.c.l.b16 %v29
  %v278 = vunpack.c.h.b16 %v29
  %v279 = vunpack.c.l.b16 %v30
  %v280 = vunpack.c.h.b16 %v30
  %v281 = vunpack.c.l.b16 %v31
  %v282 = vunpack.c.h.b16 %v31
  %v283 = vunpack.c.l.b16 %v32
  %v284 = vunpack.c.h.b16 %v32
  %v285 = vunpack.c.l.b16 %v33
  %v286 = vunpack.c.h.b16 %v33
  %v287 = vunpack.c.l.b16 %v34
  %v288 = vunpack.c.h.b16 %v34
  %v289 = vunpack.c.l.b16 %v35
  %v290 = vunpack.c.h.b16 %v35
  %v291 = vunpack.c.l.b16 %v36
  %v292 = vunpack.c.h.b16 %v36
  %v293 = vunpack.c.l.b16 %v37
  %v294 = vunpack.c.h.b16 %v37
  %v295 = vunpack.c.l.b16 %v38
  %v296 = vunpack.c.h.b16 %v38
  %v297 = vunpack.c.l.b16 %v39
  %v298 = vunpack.c.h.b16 %v39
  %v299 = vunpack.c.l.b16 %v40
  %v300 = vunpack.c.h.b16 %v40
  %v301 = vunpack.c.l.b16 %v41
  %v302 = vunpack.c.h.b16 %v41
  %v303 = vunpack.c.l.b16 %v42
  %v304 = vunpack.c.h.b16 %v42
  %v305 = vunpack.c.l.b16 %v43
  %v306 = vunpack.c.h.b16 %v43
  %v307 = vunpack.c.l.b16 %v44
  %v308 = vunpack.c.h.b16 %v44
  %v309 = vunpack.c.l.b16 %v45
  %v310 = vunpack.c.h.b16 %v45
  %v311 = vunpack.c.l.b16 %v46
  %v312 = vunpack.c.h.b16 %v46
  %v313 = vunpack.c.l.b16 %v47
  %v314 = vunpack.c.h.b16 %v47
  %v315 = vunpack.c.l.b16 %v48
  %v316 = vunpack.c.h.b16 %v48
  %v317 = vunpack.c.l.b16 %v49
  %v318 = vunpack.c.h.b16 %v49
  %v319 = vunpack.c.l.b16 %v50
  %v320 = vunpack.c.h.b16 %v50
  %v321 = vunpack.c.l.b16 %v51
  %v322 = vunpack.c.h.b16 %v51
  %v323 = vunpack.c.l.b16 %v52
  %v324 = vunpack.c.h.b16 %v52
  %v325 = vunpack.c.l.b16 %v53
  %v326 = vunpack.c.h.b16 %v53
  %v327 = vunpack.c.l.b16 %v54
  %v328 = vunpack.c.h.b16 %v54
  %v329 = vunpack.c.l.b16 %v55
  %v330 = vunpack.c.h.b16 %v55
  %v331 = vunpack.c.l.b16 %v56
  %v332 = vunpack.c.h.b16 %v56
  %v333 = vunpack.c.l.b16 %v57
  %v334 = vunpack.c.h.b16 %v57
  %v335 = vunpack.c.l.b16 %v58
  %v336 = vunpack.c.h.b16 %v58
  %v337 = vunpack.c.l.b16 %v59
  %v338 = vunpack.c.h.b16 %v59
  %v339 = vunpack.c.l.b16 %v60
  %v340 = vunpack.c.h.b16 %v60
  %v341 = vunpack.c.l.b16 %v61
  %v342 = vunpack.c.h.b16 %v61
  %v343 = vunpack.c.l.b16 %v62
  %v344 = vunpack.c.h.b16 %v62
  %v345 = vunpack.c.l.b16 %v63
  %v346 = vunpack.c.h.b16 %v63
  %v347 = vunpack.c.l.b16 %v64
  %v348 = vunpack.c.h.b16 %v64
  %v349 = vunpack.c.l.b16 %v65
  %v350 = vunpack.c.h.b16 %v65
  %v351 = vunpack.c.l.b16 %v66
  %v352 = vunpack.c.h.b16 %v66
  %v353 = vunpack.c.l.b16 %v67
  %v354 = vunpack.c.h.b16 %v67
  %v355 = vunpack.c.l.b16 %v68
  %v356 = vunpack.c.h.b16 %v68
  %v357 = vunpack.c.l.b16 %v69
  %v358 = vunpack.c.h.b16 %v69
  %v359 = vunpack.c.l.b16 %v70
  %v360 = vunpack.c.h.b16 %v70
  %v361 = vunpack.c.l.b16 %v71
  %v362 = vunpack.c.h.b16 %v71
  %v363 = vunpack.c.l.b16 %v72
  %v364 = vunpack.c.h.b16 %v72
  %v365 = vunpack.c.l.b16 %v73
  %v366 = vunpack.c.h.b16 %v73
  %v367 = vunpack.c.l.b16 %v74
  %v368 = vunpack.c.h.b16 %v74
  %v369 = vunpack.c.l.b16 %v75
  %v370 = vunpack.c.h.b16 %v75
  %v371 = vunpack.c.l.b16 %v76
  %v372 = vunpack.c.h.b16 %v76
  %v373 = vunpack.c.l.b16 %v77
  %v374 = vunpack.c.h.b16 %v77
  %v375 = vunpack.c.l.b16 %v78
  %v376 = vunpack.c.h.b16 %v78
  %v377 = vunpack.c.l.b16 %v79
  %v378 = vunpack.c.h.b16 %v79
  %v379 = vunpack.c.l.b16 %v80
  %v380 = vunpack.c.h.b16 %v80
  %v381 = vunpack.c.l.b16 %v81
  %v382 = vunpack.c.h.b16 %v81
  %v383 = vunpack.c.l.b16 %v82
  %v384 = vunpack.c.h.b16 %v82
  %v385 = vpack.c.b16 %v259, %v257
  %v386 = vpack.c.b16 %v260, %v258
  %v387 = vpack.c.b16 %v263, %v261
  %v388 = vpack.c.b16 %v264, %v262
  %v389 = vpack.c.b16 %v267, %v265
  %v390 = vpack.c.b16 %v268, %v266
  %v391 = vpack.c.b16 %v271, %v269
  %v392 = vpack.c.b16 %v272, %v270
  %v393 = vpack.c.b16 %v275, %v273
  %v394 = vpack.c.b16 %v276, %v274
  %v395 = vpack.c.b16 %v279, %v277
  %v396 = vpack.c.b16 %v280, %v278
  %v397 = vpack.c.b16 %v283, %v281
  %v398 = vpack.c.b16 %v284, %v282
  %v399 = vpack.c.b16 %v287, %v285
  %v400 = vpack.c.b16 %v288, %v286
  %v401 = vpack.c.b16 %v291, %v289
  %v402 = vpack.c.b16 %v292, %v290
  %v403 = vpack.c.b16 %v295, %v293
  %v404 = vpack.c.b16 %v296, %v294
  %v405 = vpack.c.b16 %v299, %v297
  %v406 = vpack.c.b16 %v300, %v298
  %v407 = vpack.c.b16 %v303, %v301
  %v408 = vpack.c.b16 %v304, %v302
  %v409 = vpack.c.b16 %v307, %v305
  %v410 = vpack.c.b16 %v308, %v306
  %v411 = vpack.c.b16 %v311, %v309
  %v412 = vpack.c.b16 %v312, %v310
  %v413 = vpack.c.b16 %v315, %v313
  %v414 = vpack.c.b16 %v316, %v314
  %v415 = vpack.c.b16 %v319, %v317
  %v416 = vpack.c.b16 %v320, %v318
  %v417 = vpack.c.b16 %v323, %v321
  %v418 = vpack.c.b16 %v324, %v322
  %v419 = vpack.c.b16 %v327, %v325
  %v420 = vpack.c.b16 %v328, %v326
  %v421 = vpack.c.b16 %v331, %v329
  %v422 = vpack.c.b16 %v332, %v330
  %v423 = vpack.c.b16 %v335, %v333
  %v424 = vpack.c.b16 %v336, %v334
  %v425 = vpack.c.b16 %v339, %v337
  %v426 = vpack.c.b16 %v340, %v338
  %v427 = vpack.c.b16 %v343, %v341
  %v428 = vpack.c.b16 %v344, %v342
  %v429 = vpack.c.b16 %v347, %v345
  %v430 = vpack.c.b16 %v348, %v346
  %v431 = vpack.c.b16 %v351, %v349
  %v432 = vpack.c.b16 %v352, %v350
  %v433 = vpack.c.b16 %v355, %v353
  %v434 = vpack.c.b16 %v356, %v354
  %v435 = vpack.c.b16 %v359, %v357
  %v436 = vpack.c.b16 %v360, %v358
  %v437 = vpack.c.b16 %v363, %v361
  %v438 = vpack.c.b16 %v364, %v362
  %v439 = vpack.c.b16 %v367, %v365
  %v440 = vpack.c.b16 %v368, %v366
  %v441 = vpack.c.b16 %v371, %v369
  %v442 = vpack.c.b16 %v372, %v370
  %v443 = vpack.c.b16 %v375, %v373
  %v444 = vpack.c.b16 %v376, %v374
  %v445 = vpack.c.b16 %v379, %v377
  %v446 = vpack.c.b16 %v380, %v378
  %v447 = vpack.c.b16 %v383, %v381
  %v448 = vpack.c.b16 %v384, %v382
  %513 = vmatprep.subr.bf16.mxu0 %v400
  %514 = vmatpush1.bf16.msra.mxu0 %v399
  %515 = vmatprep.subr.bf16.mxu0 %v398
  %516 = vmatpush1.bf16.msra.mxu0 %v397
  %517 = vmatprep.subr.bf16.mxu0 %v396
  %518 = vmatpush1.bf16.msra.mxu0 %v395
  %519 = vmatprep.subr.bf16.mxu0 %v394
  %520 = vmatpush1.bf16.msra.mxu0 %v393
  %521 = vmatprep.subr.bf16.mxu0 %v392
  %522 = vmatpush1.bf16.msra.mxu0 %v391
  %523 = vmatprep.subr.bf16.mxu0 %v390
  %524 = vmatpush1.bf16.msra.mxu0 %v389
  %525 = vmatprep.subr.bf16.mxu0 %v388
  %526 = vmatpush1.bf16.msra.mxu0 %v387
  %527 = vmatprep.subr.bf16.mxu0 %v386
  %528 = vmatpush1.bf16.msra.mxu0 %v385
  %529 = vmatprep.subr.bf16.mxu0 %v416
  %530 = vmatpush2.bf16.msra.mxu0 %v415
  %531 = vmatprep.subr.bf16.mxu0 %v414
  %532 = vmatpush2.bf16.msra.mxu0 %v413
  %533 = vmatprep.subr.bf16.mxu0 %v412
  %534 = vmatpush2.bf16.msra.mxu0 %v411
  %535 = vmatprep.subr.bf16.mxu0 %v410
  %536 = vmatpush2.bf16.msra.mxu0 %v409
  %537 = vmatprep.subr.bf16.mxu0 %v408
  %538 = vmatpush2.bf16.msra.mxu0 %v407
  %539 = vmatprep.subr.bf16.mxu0 %v406
  %540 = vmatpush2.bf16.msra.mxu0 %v405
  %541 = vmatprep.subr.bf16.mxu0 %v404
  %542 = vmatpush2.bf16.msra.mxu0 %v403
  %543 = vmatprep.subr.bf16.mxu0 %v402
  %544 = vmatpush2.bf16.msra.mxu0 %v401
  %545 = vmatprep.mubr.bf16.mxu0 %v190
  %546 = vmatmul.mubr.bf16.gmra.mxu0 %v189
  %v547 = vpop.f32.mrf.mxu0
  %v548 = vadd.f32 0.0, %v547
  %v549 = vpop.f32.mrf.mxu0
  %v550 = vadd.f32 0.0, %v549
  %v551 = vpop.f32.mrf.mxu0
  %v552 = vpop.f32.mrf.mxu0
  %553 = vdwg.mxu0
  %554 = vmatprep.subr.bf16.mxu0 %v432
  %555 = vmatpush1.bf16.msra.mxu0 %v431
  %556 = vmatprep.subr.bf16.mxu0 %v430
  %557 = vmatpush1.bf16.msra.mxu0 %v429
  %558 = vmatprep.subr.bf16.mxu0 %v428
  %559 = vmatpush1.bf16.msra.mxu0 %v427
  %560 = vmatprep.subr.bf16.mxu0 %v426
  %561 = vmatpush1.bf16.msra.mxu0 %v425
  %562 = vmatprep.subr.bf16.mxu0 %v424
  %563 = vmatpush1.bf16.msra.mxu0 %v423
  %564 = vmatprep.subr.bf16.mxu0 %v422
  %565 = vmatpush1.bf16.msra.mxu0 %v421
  %566 = vmatprep.subr.bf16.mxu0 %v420
  %567 = vmatpush1.bf16.msra.mxu0 %v419
  %568 = vmatprep.subr.bf16.mxu0 %v418
  %569 = vmatpush1.bf16.msra.mxu0 %v417
  %570 = vmatprep.subr.bf16.mxu0 %v448
  %571 = vmatpush2.bf16.msra.mxu0 %v447
  %572 = vmatprep.subr.bf16.mxu0 %v446
  %573 = vmatpush2.bf16.msra.mxu0 %v445
  %574 = vmatprep.subr.bf16.mxu0 %v444
  %575 = vmatpush2.bf16.msra.mxu0 %v443
  %576 = vmatprep.subr.bf16.mxu0 %v442
  %577 = vmatpush2.bf16.msra.mxu0 %v441
  %578 = vmatprep.subr.bf16.mxu0 %v440
  %579 = vmatpush2.bf16.msra.mxu0 %v439
  %580 = vmatprep.subr.bf16.mxu0 %v438
  %581 = vmatpush2.bf16.msra.mxu0 %v437
  %582 = vmatprep.subr.bf16.mxu0 %v436
  %583 = vmatpush2.bf16.msra.mxu0 %v435
  %584 = vmatprep.subr.bf16.mxu0 %v434
  %585 = vmatpush2.bf16.msra.mxu0 %v433
  %586 = vmatprep.mubr.bf16.mxu0 %v192
  %587 = vmatmul.mubr.bf16.gmra.mxu0 %v191
  %v588 = vpop.f32.mrf.mxu0
  %v589 = vadd.f32 %v548, %v588
  %v590 = vpop.f32.mrf.mxu0
  %v591 = vadd.f32 %v550, %v590
  %v592 = vpop.f32.mrf.mxu0
  %v593 = vpop.f32.mrf.mxu0
  %594 = vdwg.mxu0
  %v597 = vcombine.low %v589, %v591
  %599 = vst [vmem:[%s4] sm:$0xff] %v597
  %s600 = scalar_lea.vmem %s0, 8
  %v601 = vld [vmem:[%s600] sm:$0xf]
  %v602 = vunpack.c.l.bf16 %v601
  %s603 = scalar_lea.vmem %s0, 12
  %v604 = vld [vmem:[%s603] sm:$0xf]
  %v605 = vunpack.c.l.bf16 %v604
  %v607 = vcombine.high %v602, %v602
  %v609 = vsel %vm91, %v602, 0.0
  %v610 = vsel %vm91, %v607, 0.0
  %v611 = vadd.f32 %v609, %v610
  %612 = vadd.xlane.f32.xlu0 %v611
  %v613 = vpop.xlane.xlu0 %612
  %v615 = vcombine.high %v605, %v605
  %v617 = vsel %vm91, %v605, 0.0
  %v618 = vsel %vm91, %v615, 0.0
  %v619 = vadd.f32 %v617, %v618
  %620 = vadd.xlane.f32.xlu0 %v619
  %v621 = vpop.xlane.xlu0 %620
  %v622 = vadd.f32 %v613, %v621
  %v623 = vmul.f32 %v602, %v602
  %v625 = vcombine.high %v623, %v623
  %v627 = vsel %vm91, %v623, 0.0
  %v628 = vsel %vm91, %v625, 0.0
  %v629 = vadd.f32 %v627, %v628
  %630 = vadd.xlane.f32.xlu0 %v629
  %v631 = vpop.xlane.xlu0 %630
  %v632 = vmul.f32 %v605, %v605
  %v634 = vcombine.high %v632, %v632
  %v636 = vsel %vm91, %v632, 0.0
  %v637 = vsel %vm91, %v634, 0.0
  %v638 = vadd.f32 %v636, %v637
  %639 = vadd.xlane.f32.xlu0 %v638
  %v640 = vpop.xlane.xlu0 %639
  %v641 = vadd.f32 %v631, %v640
  %v642 = vmul.f32 %v622, 0.001953125
  %v643 = vmul.f32 %v641, 0.001953125
  %v644 = vmul.f32 %v642, %v642
  %v645 = vsub.f32 %v643, %v644
  %v646 = vadd.f32 %v645, 1e-05
  %v647 = vrsqrt.pop %v646
  %v648 = vsub.f32 %v602, %v642
  %v649 = vsub.f32 %v607, %v642
  %v650 = vsub.f32 %v605, %v642
  %v651 = vsub.f32 %v615, %v642
  %v652 = vmul.f32 %v648, %v647
  %v653 = vmul.f32 %v649, %v647
  %v654 = vmul.f32 %v650, %v647
  %v655 = vmul.f32 %v651, %v647
  %v656 = vmul.f32 %v652, %v143
  %v657 = vmul.f32 %v653, %v147
  %v658 = vmul.f32 %v654, %v151
  %v659 = vmul.f32 %v655, %v155
  %v660 = vadd.f32 %v656, %v168
  %v661 = vadd.f32 %v657, %v172
  %v662 = vadd.f32 %v658, %v176
  %v663 = vadd.f32 %v659, %v180
  %v664 = vpack.c.bf16 %v660, %v660
  %v665 = vpack.c.bf16 %v661, %v661
  %v666 = vpack.c.bf16 %v662, %v662
  %v667 = vpack.c.bf16 %v663, %v663
  %668 = vmatprep.subr.bf16.mxu0 %v400
  %669 = vmatpush1.bf16.msra.mxu0 %v399
  %670 = vmatprep.subr.bf16.mxu0 %v398
  %671 = vmatpush1.bf16.msra.mxu0 %v397
  %672 = vmatprep.subr.bf16.mxu0 %v396
  %673 = vmatpush1.bf16.msra.mxu0 %v395
  %674 = vmatprep.subr.bf16.mxu0 %v394
  %675 = vmatpush1.bf16.msra.mxu0 %v393
  %676 = vmatprep.subr.bf16.mxu0 %v392
  %677 = vmatpush1.bf16.msra.mxu0 %v391
  %678 = vmatprep.subr.bf16.mxu0 %v390
  %679 = vmatpush1.bf16.msra.mxu0 %v389
  %680 = vmatprep.subr.bf16.mxu0 %v388
  %681 = vmatpush1.bf16.msra.mxu0 %v387
  %682 = vmatprep.subr.bf16.mxu0 %v386
  %683 = vmatpush1.bf16.msra.mxu0 %v385
  %684 = vmatprep.subr.bf16.mxu0 %v416
  %685 = vmatpush2.bf16.msra.mxu0 %v415
  %686 = vmatprep.subr.bf16.mxu0 %v414
  %687 = vmatpush2.bf16.msra.mxu0 %v413
  %688 = vmatprep.subr.bf16.mxu0 %v412
  %689 = vmatpush2.bf16.msra.mxu0 %v411
  %690 = vmatprep.subr.bf16.mxu0 %v410
  %691 = vmatpush2.bf16.msra.mxu0 %v409
  %692 = vmatprep.subr.bf16.mxu0 %v408
  %693 = vmatpush2.bf16.msra.mxu0 %v407
  %694 = vmatprep.subr.bf16.mxu0 %v406
  %695 = vmatpush2.bf16.msra.mxu0 %v405
  %696 = vmatprep.subr.bf16.mxu0 %v404
  %697 = vmatpush2.bf16.msra.mxu0 %v403
  %698 = vmatprep.subr.bf16.mxu0 %v402
  %699 = vmatpush2.bf16.msra.mxu0 %v401
  %700 = vmatprep.mubr.bf16.mxu0 %v665
  %701 = vmatmul.mubr.bf16.gmra.mxu0 %v664
  %v702 = vpop.f32.mrf.mxu0
  %v703 = vadd.f32 0.0, %v702
  %v704 = vpop.f32.mrf.mxu0
  %v705 = vadd.f32 0.0, %v704
  %v706 = vpop.f32.mrf.mxu0
  %v707 = vpop.f32.mrf.mxu0
  %708 = vdwg.mxu0
  %709 = vmatprep.subr.bf16.mxu0 %v432
  %710 = vmatpush1.bf16.msra.mxu0 %v431
  %711 = vmatprep.subr.bf16.mxu0 %v430
  %712 = vmatpush1.bf16.msra.mxu0 %v429
  %713 = vmatprep.subr.bf16.mxu0 %v428
  %714 = vmatpush1.bf16.msra.mxu0 %v427
  %715 = vmatprep.subr.bf16.mxu0 %v426
  %716 = vmatpush1.bf16.msra.mxu0 %v425
  %717 = vmatprep.subr.bf16.mxu0 %v424
  %718 = vmatpush1.bf16.msra.mxu0 %v423
  %719 = vmatprep.subr.bf16.mxu0 %v422
  %720 = vmatpush1.bf16.msra.mxu0 %v421
  %721 = vmatprep.subr.bf16.mxu0 %v420
  %722 = vmatpush1.bf16.msra.mxu0 %v419
  %723 = vmatprep.subr.bf16.mxu0 %v418
  %724 = vmatpush1.bf16.msra.mxu0 %v417
  %725 = vmatprep.subr.bf16.mxu0 %v448
  %726 = vmatpush2.bf16.msra.mxu0 %v447
  %727 = vmatprep.subr.bf16.mxu0 %v446
  %728 = vmatpush2.bf16.msra.mxu0 %v445
  %729 = vmatprep.subr.bf16.mxu0 %v444
  %730 = vmatpush2.bf16.msra.mxu0 %v443
  %731 = vmatprep.subr.bf16.mxu0 %v442
  %732 = vmatpush2.bf16.msra.mxu0 %v441
  %733 = vmatprep.subr.bf16.mxu0 %v440
  %734 = vmatpush2.bf16.msra.mxu0 %v439
  %735 = vmatprep.subr.bf16.mxu0 %v438
  %736 = vmatpush2.bf16.msra.mxu0 %v437
  %737 = vmatprep.subr.bf16.mxu0 %v436
  %738 = vmatpush2.bf16.msra.mxu0 %v435
  %739 = vmatprep.subr.bf16.mxu0 %v434
  %740 = vmatpush2.bf16.msra.mxu0 %v433
  %741 = vmatprep.mubr.bf16.mxu0 %v667
  %742 = vmatmul.mubr.bf16.gmra.mxu0 %v666
  %v743 = vpop.f32.mrf.mxu0
  %v744 = vadd.f32 %v703, %v743
  %v745 = vpop.f32.mrf.mxu0
  %v746 = vadd.f32 %v705, %v745
  %v747 = vpop.f32.mrf.mxu0
  %v748 = vpop.f32.mrf.mxu0
  %749 = vdwg.mxu0
  %v752 = vcombine.low %v744, %v746
  %s754 = scalar_lea.vmem %s4, 8
  %755 = vst [vmem:[%s754] sm:$0xff] %v752
  %s756 = scalar_lea.vmem %s0, 16
  %v757 = vld [vmem:[%s756] sm:$0xf]
  %v758 = vunpack.c.l.bf16 %v757
  %s759 = scalar_lea.vmem %s0, 20
  %v760 = vld [vmem:[%s759] sm:$0xf]
  %v761 = vunpack.c.l.bf16 %v760
  %v763 = vcombine.high %v758, %v758
  %v765 = vsel %vm91, %v758, 0.0
  %v766 = vsel %vm91, %v763, 0.0
  %v767 = vadd.f32 %v765, %v766
  %768 = vadd.xlane.f32.xlu0 %v767
  %v769 = vpop.xlane.xlu0 %768
  %v771 = vcombine.high %v761, %v761
  %v773 = vsel %vm91, %v761, 0.0
  %v774 = vsel %vm91, %v771, 0.0
  %v775 = vadd.f32 %v773, %v774
  %776 = vadd.xlane.f32.xlu0 %v775
  %v777 = vpop.xlane.xlu0 %776
  %v778 = vadd.f32 %v769, %v777
  %v779 = vmul.f32 %v758, %v758
  %v781 = vcombine.high %v779, %v779
  %v783 = vsel %vm91, %v779, 0.0
  %v784 = vsel %vm91, %v781, 0.0
  %v785 = vadd.f32 %v783, %v784
  %786 = vadd.xlane.f32.xlu0 %v785
  %v787 = vpop.xlane.xlu0 %786
  %v788 = vmul.f32 %v761, %v761
  %v790 = vcombine.high %v788, %v788
  %v792 = vsel %vm91, %v788, 0.0
  %v793 = vsel %vm91, %v790, 0.0
  %v794 = vadd.f32 %v792, %v793
  %795 = vadd.xlane.f32.xlu0 %v794
  %v796 = vpop.xlane.xlu0 %795
  %v797 = vadd.f32 %v787, %v796
  %v798 = vmul.f32 %v778, 0.001953125
  %v799 = vmul.f32 %v797, 0.001953125
  %v800 = vmul.f32 %v798, %v798
  %v801 = vsub.f32 %v799, %v800
  %v802 = vadd.f32 %v801, 1e-05
  %v803 = vrsqrt.pop %v802
  %v804 = vsub.f32 %v758, %v798
  %v805 = vsub.f32 %v763, %v798
  %v806 = vsub.f32 %v761, %v798
  %v807 = vsub.f32 %v771, %v798
  %v808 = vmul.f32 %v804, %v803
  %v809 = vmul.f32 %v805, %v803
  %v810 = vmul.f32 %v806, %v803
  %v811 = vmul.f32 %v807, %v803
  %v812 = vmul.f32 %v808, %v143
  %v813 = vmul.f32 %v809, %v147
  %v814 = vmul.f32 %v810, %v151
  %v815 = vmul.f32 %v811, %v155
  %v816 = vadd.f32 %v812, %v168
  %v817 = vadd.f32 %v813, %v172
  %v818 = vadd.f32 %v814, %v176
  %v819 = vadd.f32 %v815, %v180
  %v820 = vpack.c.bf16 %v816, %v816
  %v821 = vpack.c.bf16 %v817, %v817
  %v822 = vpack.c.bf16 %v818, %v818
  %v823 = vpack.c.bf16 %v819, %v819
  %824 = vmatprep.subr.bf16.mxu0 %v400
  %825 = vmatpush1.bf16.msra.mxu0 %v399
  %826 = vmatprep.subr.bf16.mxu0 %v398
  %827 = vmatpush1.bf16.msra.mxu0 %v397
  %828 = vmatprep.subr.bf16.mxu0 %v396
  %829 = vmatpush1.bf16.msra.mxu0 %v395
  %830 = vmatprep.subr.bf16.mxu0 %v394
  %831 = vmatpush1.bf16.msra.mxu0 %v393
  %832 = vmatprep.subr.bf16.mxu0 %v392
  %833 = vmatpush1.bf16.msra.mxu0 %v391
  %834 = vmatprep.subr.bf16.mxu0 %v390
  %835 = vmatpush1.bf16.msra.mxu0 %v389
  %836 = vmatprep.subr.bf16.mxu0 %v388
  %837 = vmatpush1.bf16.msra.mxu0 %v387
  %838 = vmatprep.subr.bf16.mxu0 %v386
  %839 = vmatpush1.bf16.msra.mxu0 %v385
  %840 = vmatprep.subr.bf16.mxu0 %v416
  %841 = vmatpush2.bf16.msra.mxu0 %v415
  %842 = vmatprep.subr.bf16.mxu0 %v414
  %843 = vmatpush2.bf16.msra.mxu0 %v413
  %844 = vmatprep.subr.bf16.mxu0 %v412
  %845 = vmatpush2.bf16.msra.mxu0 %v411
  %846 = vmatprep.subr.bf16.mxu0 %v410
  %847 = vmatpush2.bf16.msra.mxu0 %v409
  %848 = vmatprep.subr.bf16.mxu0 %v408
  %849 = vmatpush2.bf16.msra.mxu0 %v407
  %850 = vmatprep.subr.bf16.mxu0 %v406
  %851 = vmatpush2.bf16.msra.mxu0 %v405
  %852 = vmatprep.subr.bf16.mxu0 %v404
  %853 = vmatpush2.bf16.msra.mxu0 %v403
  %854 = vmatprep.subr.bf16.mxu0 %v402
  %855 = vmatpush2.bf16.msra.mxu0 %v401
  %856 = vmatprep.mubr.bf16.mxu0 %v821
  %857 = vmatmul.mubr.bf16.gmra.mxu0 %v820
  %v858 = vpop.f32.mrf.mxu0
  %v859 = vadd.f32 0.0, %v858
  %v860 = vpop.f32.mrf.mxu0
  %v861 = vadd.f32 0.0, %v860
  %v862 = vpop.f32.mrf.mxu0
  %v863 = vpop.f32.mrf.mxu0
  %864 = vdwg.mxu0
  %865 = vmatprep.subr.bf16.mxu0 %v432
  %866 = vmatpush1.bf16.msra.mxu0 %v431
  %867 = vmatprep.subr.bf16.mxu0 %v430
  %868 = vmatpush1.bf16.msra.mxu0 %v429
  %869 = vmatprep.subr.bf16.mxu0 %v428
  %870 = vmatpush1.bf16.msra.mxu0 %v427
  %871 = vmatprep.subr.bf16.mxu0 %v426
  %872 = vmatpush1.bf16.msra.mxu0 %v425
  %873 = vmatprep.subr.bf16.mxu0 %v424
  %874 = vmatpush1.bf16.msra.mxu0 %v423
  %875 = vmatprep.subr.bf16.mxu0 %v422
  %876 = vmatpush1.bf16.msra.mxu0 %v421
  %877 = vmatprep.subr.bf16.mxu0 %v420
  %878 = vmatpush1.bf16.msra.mxu0 %v419
  %879 = vmatprep.subr.bf16.mxu0 %v418
  %880 = vmatpush1.bf16.msra.mxu0 %v417
  %881 = vmatprep.subr.bf16.mxu0 %v448
  %882 = vmatpush2.bf16.msra.mxu0 %v447
  %883 = vmatprep.subr.bf16.mxu0 %v446
  %884 = vmatpush2.bf16.msra.mxu0 %v445
  %885 = vmatprep.subr.bf16.mxu0 %v444
  %886 = vmatpush2.bf16.msra.mxu0 %v443
  %887 = vmatprep.subr.bf16.mxu0 %v442
  %888 = vmatpush2.bf16.msra.mxu0 %v441
  %889 = vmatprep.subr.bf16.mxu0 %v440
  %890 = vmatpush2.bf16.msra.mxu0 %v439
  %891 = vmatprep.subr.bf16.mxu0 %v438
  %892 = vmatpush2.bf16.msra.mxu0 %v437
  %893 = vmatprep.subr.bf16.mxu0 %v436
  %894 = vmatpush2.bf16.msra.mxu0 %v435
  %895 = vmatprep.subr.bf16.mxu0 %v434
  %896 = vmatpush2.bf16.msra.mxu0 %v433
  %897 = vmatprep.mubr.bf16.mxu0 %v823
  %898 = vmatmul.mubr.bf16.gmra.mxu0 %v822
  %v899 = vpop.f32.mrf.mxu0
  %v900 = vadd.f32 %v859, %v899
  %v901 = vpop.f32.mrf.mxu0
  %v902 = vadd.f32 %v861, %v901
  %v903 = vpop.f32.mrf.mxu0
  %v904 = vpop.f32.mrf.mxu0
  %905 = vdwg.mxu0
  %v908 = vcombine.low %v900, %v902
  %s910 = scalar_lea.vmem %s4, 16
  %911 = vst [vmem:[%s910] sm:$0xff] %v908
  %s912 = scalar_lea.vmem %s0, 24
  %v913 = vld [vmem:[%s912] sm:$0xf]
  %v914 = vunpack.c.l.bf16 %v913
  %s915 = scalar_lea.vmem %s0, 28
  %v916 = vld [vmem:[%s915] sm:$0xf]
  %v917 = vunpack.c.l.bf16 %v916
  %v919 = vcombine.high %v914, %v914
  %v921 = vsel %vm91, %v914, 0.0
  %v922 = vsel %vm91, %v919, 0.0
  %v923 = vadd.f32 %v921, %v922
  %924 = vadd.xlane.f32.xlu0 %v923
  %v925 = vpop.xlane.xlu0 %924
  %v927 = vcombine.high %v917, %v917
  %v929 = vsel %vm91, %v917, 0.0
  %v930 = vsel %vm91, %v927, 0.0
  %v931 = vadd.f32 %v929, %v930
  %932 = vadd.xlane.f32.xlu0 %v931
  %v933 = vpop.xlane.xlu0 %932
  %v934 = vadd.f32 %v925, %v933
  %v935 = vmul.f32 %v914, %v914
  %v937 = vcombine.high %v935, %v935
  %v939 = vsel %vm91, %v935, 0.0
  %v940 = vsel %vm91, %v937, 0.0
  %v941 = vadd.f32 %v939, %v940
  %942 = vadd.xlane.f32.xlu0 %v941
  %v943 = vpop.xlane.xlu0 %942
  %v944 = vmul.f32 %v917, %v917
  %v946 = vcombine.high %v944, %v944
  %v948 = vsel %vm91, %v944, 0.0
  %v949 = vsel %vm91, %v946, 0.0
  %v950 = vadd.f32 %v948, %v949
  %951 = vadd.xlane.f32.xlu0 %v950
  %v952 = vpop.xlane.xlu0 %951
  %v953 = vadd.f32 %v943, %v952
  %v954 = vmul.f32 %v934, 0.001953125
  %v955 = vmul.f32 %v953, 0.001953125
  %v956 = vmul.f32 %v954, %v954
  %v957 = vsub.f32 %v955, %v956
  %v958 = vadd.f32 %v957, 1e-05
  %v959 = vrsqrt.pop %v958
  %v960 = vsub.f32 %v914, %v954
  %v961 = vsub.f32 %v919, %v954
  %v962 = vsub.f32 %v917, %v954
  %v963 = vsub.f32 %v927, %v954
  %v964 = vmul.f32 %v960, %v959
  %v965 = vmul.f32 %v961, %v959
  %v966 = vmul.f32 %v962, %v959
  %v967 = vmul.f32 %v963, %v959
  %v968 = vmul.f32 %v964, %v143
  %v969 = vmul.f32 %v965, %v147
  %v970 = vmul.f32 %v966, %v151
  %v971 = vmul.f32 %v967, %v155
  %v972 = vadd.f32 %v968, %v168
  %v973 = vadd.f32 %v969, %v172
  %v974 = vadd.f32 %v970, %v176
  %v975 = vadd.f32 %v971, %v180
  %v976 = vpack.c.bf16 %v972, %v972
  %v977 = vpack.c.bf16 %v973, %v973
  %v978 = vpack.c.bf16 %v974, %v974
  %v979 = vpack.c.bf16 %v975, %v975
  %980 = vmatprep.subr.bf16.mxu0 %v400
  %981 = vmatpush1.bf16.msra.mxu0 %v399
  %982 = vmatprep.subr.bf16.mxu0 %v398
  %983 = vmatpush1.bf16.msra.mxu0 %v397
  %984 = vmatprep.subr.bf16.mxu0 %v396
  %985 = vmatpush1.bf16.msra.mxu0 %v395
  %986 = vmatprep.subr.bf16.mxu0 %v394
  %987 = vmatpush1.bf16.msra.mxu0 %v393
  %988 = vmatprep.subr.bf16.mxu0 %v392
  %989 = vmatpush1.bf16.msra.mxu0 %v391
  %990 = vmatprep.subr.bf16.mxu0 %v390
  %991 = vmatpush1.bf16.msra.mxu0 %v389
  %992 = vmatprep.subr.bf16.mxu0 %v388
  %993 = vmatpush1.bf16.msra.mxu0 %v387
  %994 = vmatprep.subr.bf16.mxu0 %v386
  %995 = vmatpush1.bf16.msra.mxu0 %v385
  %996 = vmatprep.subr.bf16.mxu0 %v416
  %997 = vmatpush2.bf16.msra.mxu0 %v415
  %998 = vmatprep.subr.bf16.mxu0 %v414
  %999 = vmatpush2.bf16.msra.mxu0 %v413
  %1000 = vmatprep.subr.bf16.mxu0 %v412
  %1001 = vmatpush2.bf16.msra.mxu0 %v411
  %1002 = vmatprep.subr.bf16.mxu0 %v410
  %1003 = vmatpush2.bf16.msra.mxu0 %v409
  %1004 = vmatprep.subr.bf16.mxu0 %v408
  %1005 = vmatpush2.bf16.msra.mxu0 %v407
  %1006 = vmatprep.subr.bf16.mxu0 %v406
  %1007 = vmatpush2.bf16.msra.mxu0 %v405
  %1008 = vmatprep.subr.bf16.mxu0 %v404
  %1009 = vmatpush2.bf16.msra.mxu0 %v403
  %1010 = vmatprep.subr.bf16.mxu0 %v402
  %1011 = vmatpush2.bf16.msra.mxu0 %v401
  %1012 = vmatprep.mubr.bf16.mxu0 %v977
  %1013 = vmatmul.mubr.bf16.gmra.mxu0 %v976
  %v1014 = vpop.f32.mrf.mxu0
  %v1015 = vadd.f32 0.0, %v1014
  %v1016 = vpop.f32.mrf.mxu0
  %v1017 = vadd.f32 0.0, %v1016
  %v1018 = vpop.f32.mrf.mxu0
  %v1019 = vpop.f32.mrf.mxu0
  %1020 = vdwg.mxu0
  %1021 = vmatprep.subr.bf16.mxu0 %v432
  %1022 = vmatpush1.bf16.msra.mxu0 %v431
  %1023 = vmatprep.subr.bf16.mxu0 %v430
  %1024 = vmatpush1.bf16.msra.mxu0 %v429
  %1025 = vmatprep.subr.bf16.mxu0 %v428
  %1026 = vmatpush1.bf16.msra.mxu0 %v427
  %1027 = vmatprep.subr.bf16.mxu0 %v426
  %1028 = vmatpush1.bf16.msra.mxu0 %v425
  %1029 = vmatprep.subr.bf16.mxu0 %v424
  %1030 = vmatpush1.bf16.msra.mxu0 %v423
  %1031 = vmatprep.subr.bf16.mxu0 %v422
  %1032 = vmatpush1.bf16.msra.mxu0 %v421
  %1033 = vmatprep.subr.bf16.mxu0 %v420
  %1034 = vmatpush1.bf16.msra.mxu0 %v419
  %1035 = vmatprep.subr.bf16.mxu0 %v418
  %1036 = vmatpush1.bf16.msra.mxu0 %v417
  %1037 = vmatprep.subr.bf16.mxu0 %v448
  %1038 = vmatpush2.bf16.msra.mxu0 %v447
  %1039 = vmatprep.subr.bf16.mxu0 %v446
  %1040 = vmatpush2.bf16.msra.mxu0 %v445
  %1041 = vmatprep.subr.bf16.mxu0 %v444
  %1042 = vmatpush2.bf16.msra.mxu0 %v443
  %1043 = vmatprep.subr.bf16.mxu0 %v442
  %1044 = vmatpush2.bf16.msra.mxu0 %v441
  %1045 = vmatprep.subr.bf16.mxu0 %v440
  %1046 = vmatpush2.bf16.msra.mxu0 %v439
  %1047 = vmatprep.subr.bf16.mxu0 %v438
  %1048 = vmatpush2.bf16.msra.mxu0 %v437
  %1049 = vmatprep.subr.bf16.mxu0 %v436
  %1050 = vmatpush2.bf16.msra.mxu0 %v435
  %1051 = vmatprep.subr.bf16.mxu0 %v434
  %1052 = vmatpush2.bf16.msra.mxu0 %v433
  %1053 = vmatprep.mubr.bf16.mxu0 %v979
  %1054 = vmatmul.mubr.bf16.gmra.mxu0 %v978
  %v1055 = vpop.f32.mrf.mxu0
  %v1056 = vadd.f32 %v1015, %v1055
  %v1057 = vpop.f32.mrf.mxu0
  %v1058 = vadd.f32 %v1017, %v1057
  %v1059 = vpop.f32.mrf.mxu0
  %v1060 = vpop.f32.mrf.mxu0
  %1061 = vdwg.mxu0
  %v1064 = vcombine.low %v1056, %v1058
  %s1066 = scalar_lea.vmem %s4, 24
  %1067 = vst [vmem:[%s1066] sm:$0xff] %v1064
  %s1068 = scalar_lea.vmem %s0, 32
  %v1069 = vld [vmem:[%s1068] sm:$0xf]
  %v1070 = vunpack.c.l.bf16 %v1069
  %s1071 = scalar_lea.vmem %s0, 36
  %v1072 = vld [vmem:[%s1071] sm:$0xf]
  %v1073 = vunpack.c.l.bf16 %v1072
  %v1075 = vcombine.high %v1070, %v1070
  %v1077 = vsel %vm91, %v1070, 0.0
  %v1078 = vsel %vm91, %v1075, 0.0
  %v1079 = vadd.f32 %v1077, %v1078
  %1080 = vadd.xlane.f32.xlu0 %v1079
  %v1081 = vpop.xlane.xlu0 %1080
  %v1083 = vcombine.high %v1073, %v1073
  %v1085 = vsel %vm91, %v1073, 0.0
  %v1086 = vsel %vm91, %v1083, 0.0
  %v1087 = vadd.f32 %v1085, %v1086
  %1088 = vadd.xlane.f32.xlu0 %v1087
  %v1089 = vpop.xlane.xlu0 %1088
  %v1090 = vadd.f32 %v1081, %v1089
  %v1091 = vmul.f32 %v1070, %v1070
  %v1093 = vcombine.high %v1091, %v1091
  %v1095 = vsel %vm91, %v1091, 0.0
  %v1096 = vsel %vm91, %v1093, 0.0
  %v1097 = vadd.f32 %v1095, %v1096
  %1098 = vadd.xlane.f32.xlu0 %v1097
  %v1099 = vpop.xlane.xlu0 %1098
  %v1100 = vmul.f32 %v1073, %v1073
  %v1102 = vcombine.high %v1100, %v1100
  %v1104 = vsel %vm91, %v1100, 0.0
  %v1105 = vsel %vm91, %v1102, 0.0
  %v1106 = vadd.f32 %v1104, %v1105
  %1107 = vadd.xlane.f32.xlu0 %v1106
  %v1108 = vpop.xlane.xlu0 %1107
  %v1109 = vadd.f32 %v1099, %v1108
  %v1110 = vmul.f32 %v1090, 0.001953125
  %v1111 = vmul.f32 %v1109, 0.001953125
  %v1112 = vmul.f32 %v1110, %v1110
  %v1113 = vsub.f32 %v1111, %v1112
  %v1114 = vadd.f32 %v1113, 1e-05
  %v1115 = vrsqrt.pop %v1114
  %v1116 = vsub.f32 %v1070, %v1110
  %v1117 = vsub.f32 %v1075, %v1110
  %v1118 = vsub.f32 %v1073, %v1110
  %v1119 = vsub.f32 %v1083, %v1110
  %v1120 = vmul.f32 %v1116, %v1115
  %v1121 = vmul.f32 %v1117, %v1115
  %v1122 = vmul.f32 %v1118, %v1115
  %v1123 = vmul.f32 %v1119, %v1115
  %v1124 = vmul.f32 %v1120, %v143
  %v1125 = vmul.f32 %v1121, %v147
  %v1126 = vmul.f32 %v1122, %v151
  %v1127 = vmul.f32 %v1123, %v155
  %v1128 = vadd.f32 %v1124, %v168
  %v1129 = vadd.f32 %v1125, %v172
  %v1130 = vadd.f32 %v1126, %v176
  %v1131 = vadd.f32 %v1127, %v180
  %v1132 = vpack.c.bf16 %v1128, %v1128
  %v1133 = vpack.c.bf16 %v1129, %v1129
  %v1134 = vpack.c.bf16 %v1130, %v1130
  %v1135 = vpack.c.bf16 %v1131, %v1131
  %1136 = vmatprep.subr.bf16.mxu0 %v400
  %1137 = vmatpush1.bf16.msra.mxu0 %v399
  %1138 = vmatprep.subr.bf16.mxu0 %v398
  %1139 = vmatpush1.bf16.msra.mxu0 %v397
  %1140 = vmatprep.subr.bf16.mxu0 %v396
  %1141 = vmatpush1.bf16.msra.mxu0 %v395
  %1142 = vmatprep.subr.bf16.mxu0 %v394
  %1143 = vmatpush1.bf16.msra.mxu0 %v393
  %1144 = vmatprep.subr.bf16.mxu0 %v392
  %1145 = vmatpush1.bf16.msra.mxu0 %v391
  %1146 = vmatprep.subr.bf16.mxu0 %v390
  %1147 = vmatpush1.bf16.msra.mxu0 %v389
  %1148 = vmatprep.subr.bf16.mxu0 %v388
  %1149 = vmatpush1.bf16.msra.mxu0 %v387
  %1150 = vmatprep.subr.bf16.mxu0 %v386
  %1151 = vmatpush1.bf16.msra.mxu0 %v385
  %1152 = vmatprep.subr.bf16.mxu0 %v416
  %1153 = vmatpush2.bf16.msra.mxu0 %v415
  %1154 = vmatprep.subr.bf16.mxu0 %v414
  %1155 = vmatpush2.bf16.msra.mxu0 %v413
  %1156 = vmatprep.subr.bf16.mxu0 %v412
  %1157 = vmatpush2.bf16.msra.mxu0 %v411
  %1158 = vmatprep.subr.bf16.mxu0 %v410
  %1159 = vmatpush2.bf16.msra.mxu0 %v409
  %1160 = vmatprep.subr.bf16.mxu0 %v408
  %1161 = vmatpush2.bf16.msra.mxu0 %v407
  %1162 = vmatprep.subr.bf16.mxu0 %v406
  %1163 = vmatpush2.bf16.msra.mxu0 %v405
  %1164 = vmatprep.subr.bf16.mxu0 %v404
  %1165 = vmatpush2.bf16.msra.mxu0 %v403
  %1166 = vmatprep.subr.bf16.mxu0 %v402
  %1167 = vmatpush2.bf16.msra.mxu0 %v401
  %1168 = vmatprep.mubr.bf16.mxu0 %v1133
  %1169 = vmatmul.mubr.bf16.gmra.mxu0 %v1132
  %v1170 = vpop.f32.mrf.mxu0
  %v1171 = vadd.f32 0.0, %v1170
  %v1172 = vpop.f32.mrf.mxu0
  %v1173 = vadd.f32 0.0, %v1172
  %v1174 = vpop.f32.mrf.mxu0
  %v1175 = vpop.f32.mrf.mxu0
  %1176 = vdwg.mxu0
  %1177 = vmatprep.subr.bf16.mxu0 %v432
  %1178 = vmatpush1.bf16.msra.mxu0 %v431
  %1179 = vmatprep.subr.bf16.mxu0 %v430
  %1180 = vmatpush1.bf16.msra.mxu0 %v429
  %1181 = vmatprep.subr.bf16.mxu0 %v428
  %1182 = vmatpush1.bf16.msra.mxu0 %v427
  %1183 = vmatprep.subr.bf16.mxu0 %v426
  %1184 = vmatpush1.bf16.msra.mxu0 %v425
  %1185 = vmatprep.subr.bf16.mxu0 %v424
  %1186 = vmatpush1.bf16.msra.mxu0 %v423
  %1187 = vmatprep.subr.bf16.mxu0 %v422
  %1188 = vmatpush1.bf16.msra.mxu0 %v421
  %1189 = vmatprep.subr.bf16.mxu0 %v420
  %1190 = vmatpush1.bf16.msra.mxu0 %v419
  %1191 = vmatprep.subr.bf16.mxu0 %v418
  %1192 = vmatpush1.bf16.msra.mxu0 %v417
  %1193 = vmatprep.subr.bf16.mxu0 %v448
  %1194 = vmatpush2.bf16.msra.mxu0 %v447
  %1195 = vmatprep.subr.bf16.mxu0 %v446
  %1196 = vmatpush2.bf16.msra.mxu0 %v445
  %1197 = vmatprep.subr.bf16.mxu0 %v444
  %1198 = vmatpush2.bf16.msra.mxu0 %v443
  %1199 = vmatprep.subr.bf16.mxu0 %v442
  %1200 = vmatpush2.bf16.msra.mxu0 %v441
  %1201 = vmatprep.subr.bf16.mxu0 %v440
  %1202 = vmatpush2.bf16.msra.mxu0 %v439
  %1203 = vmatprep.subr.bf16.mxu0 %v438
  %1204 = vmatpush2.bf16.msra.mxu0 %v437
  %1205 = vmatprep.subr.bf16.mxu0 %v436
  %1206 = vmatpush2.bf16.msra.mxu0 %v435
  %1207 = vmatprep.subr.bf16.mxu0 %v434
  %1208 = vmatpush2.bf16.msra.mxu0 %v433
  %1209 = vmatprep.mubr.bf16.mxu0 %v1135
  %1210 = vmatmul.mubr.bf16.gmra.mxu0 %v1134
  %v1211 = vpop.f32.mrf.mxu0
  %v1212 = vadd.f32 %v1171, %v1211
  %v1213 = vpop.f32.mrf.mxu0
  %v1214 = vadd.f32 %v1173, %v1213
  %v1215 = vpop.f32.mrf.mxu0
  %v1216 = vpop.f32.mrf.mxu0
  %1217 = vdwg.mxu0
  %v1220 = vcombine.low %v1212, %v1214
  %s1222 = scalar_lea.vmem %s4, 32
  %1223 = vst [vmem:[%s1222] sm:$0xff] %v1220
  %s1224 = scalar_lea.vmem %s0, 40
  %v1225 = vld [vmem:[%s1224] sm:$0xf]
  %v1226 = vunpack.c.l.bf16 %v1225
  %s1227 = scalar_lea.vmem %s0, 44
  %v1228 = vld [vmem:[%s1227] sm:$0xf]
  %v1229 = vunpack.c.l.bf16 %v1228
  %v1231 = vcombine.high %v1226, %v1226
  %v1233 = vsel %vm91, %v1226, 0.0
  %v1234 = vsel %vm91, %v1231, 0.0
  %v1235 = vadd.f32 %v1233, %v1234
  %1236 = vadd.xlane.f32.xlu0 %v1235
  %v1237 = vpop.xlane.xlu0 %1236
  %v1239 = vcombine.high %v1229, %v1229
  %v1241 = vsel %vm91, %v1229, 0.0
  %v1242 = vsel %vm91, %v1239, 0.0
  %v1243 = vadd.f32 %v1241, %v1242
  %1244 = vadd.xlane.f32.xlu0 %v1243
  %v1245 = vpop.xlane.xlu0 %1244
  %v1246 = vadd.f32 %v1237, %v1245
  %v1247 = vmul.f32 %v1226, %v1226
  %v1249 = vcombine.high %v1247, %v1247
  %v1251 = vsel %vm91, %v1247, 0.0
  %v1252 = vsel %vm91, %v1249, 0.0
  %v1253 = vadd.f32 %v1251, %v1252
  %1254 = vadd.xlane.f32.xlu0 %v1253
  %v1255 = vpop.xlane.xlu0 %1254
  %v1256 = vmul.f32 %v1229, %v1229
  %v1258 = vcombine.high %v1256, %v1256
  %v1260 = vsel %vm91, %v1256, 0.0
  %v1261 = vsel %vm91, %v1258, 0.0
  %v1262 = vadd.f32 %v1260, %v1261
  %1263 = vadd.xlane.f32.xlu0 %v1262
  %v1264 = vpop.xlane.xlu0 %1263
  %v1265 = vadd.f32 %v1255, %v1264
  %v1266 = vmul.f32 %v1246, 0.001953125
  %v1267 = vmul.f32 %v1265, 0.001953125
  %v1268 = vmul.f32 %v1266, %v1266
  %v1269 = vsub.f32 %v1267, %v1268
  %v1270 = vadd.f32 %v1269, 1e-05
  %v1271 = vrsqrt.pop %v1270
  %v1272 = vsub.f32 %v1226, %v1266
  %v1273 = vsub.f32 %v1231, %v1266
  %v1274 = vsub.f32 %v1229, %v1266
  %v1275 = vsub.f32 %v1239, %v1266
  %v1276 = vmul.f32 %v1272, %v1271
  %v1277 = vmul.f32 %v1273, %v1271
  %v1278 = vmul.f32 %v1274, %v1271
  %v1279 = vmul.f32 %v1275, %v1271
  %v1280 = vmul.f32 %v1276, %v143
  %v1281 = vmul.f32 %v1277, %v147
  %v1282 = vmul.f32 %v1278, %v151
  %v1283 = vmul.f32 %v1279, %v155
  %v1284 = vadd.f32 %v1280, %v168
  %v1285 = vadd.f32 %v1281, %v172
  %v1286 = vadd.f32 %v1282, %v176
  %v1287 = vadd.f32 %v1283, %v180
  %v1288 = vpack.c.bf16 %v1284, %v1284
  %v1289 = vpack.c.bf16 %v1285, %v1285
  %v1290 = vpack.c.bf16 %v1286, %v1286
  %v1291 = vpack.c.bf16 %v1287, %v1287
  %1292 = vmatprep.subr.bf16.mxu0 %v400
  %1293 = vmatpush1.bf16.msra.mxu0 %v399
  %1294 = vmatprep.subr.bf16.mxu0 %v398
  %1295 = vmatpush1.bf16.msra.mxu0 %v397
  %1296 = vmatprep.subr.bf16.mxu0 %v396
  %1297 = vmatpush1.bf16.msra.mxu0 %v395
  %1298 = vmatprep.subr.bf16.mxu0 %v394
  %1299 = vmatpush1.bf16.msra.mxu0 %v393
  %1300 = vmatprep.subr.bf16.mxu0 %v392
  %1301 = vmatpush1.bf16.msra.mxu0 %v391
  %1302 = vmatprep.subr.bf16.mxu0 %v390
  %1303 = vmatpush1.bf16.msra.mxu0 %v389
  %1304 = vmatprep.subr.bf16.mxu0 %v388
  %1305 = vmatpush1.bf16.msra.mxu0 %v387
  %1306 = vmatprep.subr.bf16.mxu0 %v386
  %1307 = vmatpush1.bf16.msra.mxu0 %v385
  %1308 = vmatprep.subr.bf16.mxu0 %v416
  %1309 = vmatpush2.bf16.msra.mxu0 %v415
  %1310 = vmatprep.subr.bf16.mxu0 %v414
  %1311 = vmatpush2.bf16.msra.mxu0 %v413
  %1312 = vmatprep.subr.bf16.mxu0 %v412
  %1313 = vmatpush2.bf16.msra.mxu0 %v411
  %1314 = vmatprep.subr.bf16.mxu0 %v410
  %1315 = vmatpush2.bf16.msra.mxu0 %v409
  %1316 = vmatprep.subr.bf16.mxu0 %v408
  %1317 = vmatpush2.bf16.msra.mxu0 %v407
  %1318 = vmatprep.subr.bf16.mxu0 %v406
  %1319 = vmatpush2.bf16.msra.mxu0 %v405
  %1320 = vmatprep.subr.bf16.mxu0 %v404
  %1321 = vmatpush2.bf16.msra.mxu0 %v403
  %1322 = vmatprep.subr.bf16.mxu0 %v402
  %1323 = vmatpush2.bf16.msra.mxu0 %v401
  %1324 = vmatprep.mubr.bf16.mxu0 %v1289
  %1325 = vmatmul.mubr.bf16.gmra.mxu0 %v1288
  %v1326 = vpop.f32.mrf.mxu0
  %v1327 = vadd.f32 0.0, %v1326
  %v1328 = vpop.f32.mrf.mxu0
  %v1329 = vadd.f32 0.0, %v1328
  %v1330 = vpop.f32.mrf.mxu0
  %v1331 = vpop.f32.mrf.mxu0
  %1332 = vdwg.mxu0
  %1333 = vmatprep.subr.bf16.mxu0 %v432
  %1334 = vmatpush1.bf16.msra.mxu0 %v431
  %1335 = vmatprep.subr.bf16.mxu0 %v430
  %1336 = vmatpush1.bf16.msra.mxu0 %v429
  %1337 = vmatprep.subr.bf16.mxu0 %v428
  %1338 = vmatpush1.bf16.msra.mxu0 %v427
  %1339 = vmatprep.subr.bf16.mxu0 %v426
  %1340 = vmatpush1.bf16.msra.mxu0 %v425
  %1341 = vmatprep.subr.bf16.mxu0 %v424
  %1342 = vmatpush1.bf16.msra.mxu0 %v423
  %1343 = vmatprep.subr.bf16.mxu0 %v422
  %1344 = vmatpush1.bf16.msra.mxu0 %v421
  %1345 = vmatprep.subr.bf16.mxu0 %v420
  %1346 = vmatpush1.bf16.msra.mxu0 %v419
  %1347 = vmatprep.subr.bf16.mxu0 %v418
  %1348 = vmatpush1.bf16.msra.mxu0 %v417
  %1349 = vmatprep.subr.bf16.mxu0 %v448
  %1350 = vmatpush2.bf16.msra.mxu0 %v447
  %1351 = vmatprep.subr.bf16.mxu0 %v446
  %1352 = vmatpush2.bf16.msra.mxu0 %v445
  %1353 = vmatprep.subr.bf16.mxu0 %v444
  %1354 = vmatpush2.bf16.msra.mxu0 %v443
  %1355 = vmatprep.subr.bf16.mxu0 %v442
  %1356 = vmatpush2.bf16.msra.mxu0 %v441
  %1357 = vmatprep.subr.bf16.mxu0 %v440
  %1358 = vmatpush2.bf16.msra.mxu0 %v439
  %1359 = vmatprep.subr.bf16.mxu0 %v438
  %1360 = vmatpush2.bf16.msra.mxu0 %v437
  %1361 = vmatprep.subr.bf16.mxu0 %v436
  %1362 = vmatpush2.bf16.msra.mxu0 %v435
  %1363 = vmatprep.subr.bf16.mxu0 %v434
  %1364 = vmatpush2.bf16.msra.mxu0 %v433
  %1365 = vmatprep.mubr.bf16.mxu0 %v1291
  %1366 = vmatmul.mubr.bf16.gmra.mxu0 %v1290
  %v1367 = vpop.f32.mrf.mxu0
  %v1368 = vadd.f32 %v1327, %v1367
  %v1369 = vpop.f32.mrf.mxu0
  %v1370 = vadd.f32 %v1329, %v1369
  %v1371 = vpop.f32.mrf.mxu0
  %v1372 = vpop.f32.mrf.mxu0
  %1373 = vdwg.mxu0
  %v1376 = vcombine.low %v1368, %v1370
  %s1378 = scalar_lea.vmem %s4, 40
  %1379 = vst [vmem:[%s1378] sm:$0xff] %v1376
  %s1380 = scalar_lea.vmem %s0, 48
  %v1381 = vld [vmem:[%s1380] sm:$0xf]
  %v1382 = vunpack.c.l.bf16 %v1381
  %s1383 = scalar_lea.vmem %s0, 52
  %v1384 = vld [vmem:[%s1383] sm:$0xf]
  %v1385 = vunpack.c.l.bf16 %v1384
  %v1387 = vcombine.high %v1382, %v1382
  %v1389 = vsel %vm91, %v1382, 0.0
  %v1390 = vsel %vm91, %v1387, 0.0
  %v1391 = vadd.f32 %v1389, %v1390
  %1392 = vadd.xlane.f32.xlu0 %v1391
  %v1393 = vpop.xlane.xlu0 %1392
  %v1395 = vcombine.high %v1385, %v1385
  %v1397 = vsel %vm91, %v1385, 0.0
  %v1398 = vsel %vm91, %v1395, 0.0
  %v1399 = vadd.f32 %v1397, %v1398
  %1400 = vadd.xlane.f32.xlu0 %v1399
  %v1401 = vpop.xlane.xlu0 %1400
  %v1402 = vadd.f32 %v1393, %v1401
  %v1403 = vmul.f32 %v1382, %v1382
  %v1405 = vcombine.high %v1403, %v1403
  %v1407 = vsel %vm91, %v1403, 0.0
  %v1408 = vsel %vm91, %v1405, 0.0
  %v1409 = vadd.f32 %v1407, %v1408
  %1410 = vadd.xlane.f32.xlu0 %v1409
  %v1411 = vpop.xlane.xlu0 %1410
  %v1412 = vmul.f32 %v1385, %v1385
  %v1414 = vcombine.high %v1412, %v1412
  %v1416 = vsel %vm91, %v1412, 0.0
  %v1417 = vsel %vm91, %v1414, 0.0
  %v1418 = vadd.f32 %v1416, %v1417
  %1419 = vadd.xlane.f32.xlu0 %v1418
  %v1420 = vpop.xlane.xlu0 %1419
  %v1421 = vadd.f32 %v1411, %v1420
  %v1422 = vmul.f32 %v1402, 0.001953125
  %v1423 = vmul.f32 %v1421, 0.001953125
  %v1424 = vmul.f32 %v1422, %v1422
  %v1425 = vsub.f32 %v1423, %v1424
  %v1426 = vadd.f32 %v1425, 1e-05
  %v1427 = vrsqrt.pop %v1426
  %v1428 = vsub.f32 %v1382, %v1422
  %v1429 = vsub.f32 %v1387, %v1422
  %v1430 = vsub.f32 %v1385, %v1422
  %v1431 = vsub.f32 %v1395, %v1422
  %v1432 = vmul.f32 %v1428, %v1427
  %v1433 = vmul.f32 %v1429, %v1427
  %v1434 = vmul.f32 %v1430, %v1427
  %v1435 = vmul.f32 %v1431, %v1427
  %v1436 = vmul.f32 %v1432, %v143
  %v1437 = vmul.f32 %v1433, %v147
  %v1438 = vmul.f32 %v1434, %v151
  %v1439 = vmul.f32 %v1435, %v155
  %v1440 = vadd.f32 %v1436, %v168
  %v1441 = vadd.f32 %v1437, %v172
  %v1442 = vadd.f32 %v1438, %v176
  %v1443 = vadd.f32 %v1439, %v180
  %v1444 = vpack.c.bf16 %v1440, %v1440
  %v1445 = vpack.c.bf16 %v1441, %v1441
  %v1446 = vpack.c.bf16 %v1442, %v1442
  %v1447 = vpack.c.bf16 %v1443, %v1443
  %1448 = vmatprep.subr.bf16.mxu0 %v400
  %1449 = vmatpush1.bf16.msra.mxu0 %v399
  %1450 = vmatprep.subr.bf16.mxu0 %v398
  %1451 = vmatpush1.bf16.msra.mxu0 %v397
  %1452 = vmatprep.subr.bf16.mxu0 %v396
  %1453 = vmatpush1.bf16.msra.mxu0 %v395
  %1454 = vmatprep.subr.bf16.mxu0 %v394
  %1455 = vmatpush1.bf16.msra.mxu0 %v393
  %1456 = vmatprep.subr.bf16.mxu0 %v392
  %1457 = vmatpush1.bf16.msra.mxu0 %v391
  %1458 = vmatprep.subr.bf16.mxu0 %v390
  %1459 = vmatpush1.bf16.msra.mxu0 %v389
  %1460 = vmatprep.subr.bf16.mxu0 %v388
  %1461 = vmatpush1.bf16.msra.mxu0 %v387
  %1462 = vmatprep.subr.bf16.mxu0 %v386
  %1463 = vmatpush1.bf16.msra.mxu0 %v385
  %1464 = vmatprep.subr.bf16.mxu0 %v416
  %1465 = vmatpush2.bf16.msra.mxu0 %v415
  %1466 = vmatprep.subr.bf16.mxu0 %v414
  %1467 = vmatpush2.bf16.msra.mxu0 %v413
  %1468 = vmatprep.subr.bf16.mxu0 %v412
  %1469 = vmatpush2.bf16.msra.mxu0 %v411
  %1470 = vmatprep.subr.bf16.mxu0 %v410
  %1471 = vmatpush2.bf16.msra.mxu0 %v409
  %1472 = vmatprep.subr.bf16.mxu0 %v408
  %1473 = vmatpush2.bf16.msra.mxu0 %v407
  %1474 = vmatprep.subr.bf16.mxu0 %v406
  %1475 = vmatpush2.bf16.msra.mxu0 %v405
  %1476 = vmatprep.subr.bf16.mxu0 %v404
  %1477 = vmatpush2.bf16.msra.mxu0 %v403
  %1478 = vmatprep.subr.bf16.mxu0 %v402
  %1479 = vmatpush2.bf16.msra.mxu0 %v401
  %1480 = vmatprep.mubr.bf16.mxu0 %v1445
  %1481 = vmatmul.mubr.bf16.gmra.mxu0 %v1444
  %v1482 = vpop.f32.mrf.mxu0
  %v1483 = vadd.f32 0.0, %v1482
  %v1484 = vpop.f32.mrf.mxu0
  %v1485 = vadd.f32 0.0, %v1484
  %v1486 = vpop.f32.mrf.mxu0
  %v1487 = vpop.f32.mrf.mxu0
  %1488 = vdwg.mxu0
  %1489 = vmatprep.subr.bf16.mxu0 %v432
  %1490 = vmatpush1.bf16.msra.mxu0 %v431
  %1491 = vmatprep.subr.bf16.mxu0 %v430
  %1492 = vmatpush1.bf16.msra.mxu0 %v429
  %1493 = vmatprep.subr.bf16.mxu0 %v428
  %1494 = vmatpush1.bf16.msra.mxu0 %v427
  %1495 = vmatprep.subr.bf16.mxu0 %v426
  %1496 = vmatpush1.bf16.msra.mxu0 %v425
  %1497 = vmatprep.subr.bf16.mxu0 %v424
  %1498 = vmatpush1.bf16.msra.mxu0 %v423
  %1499 = vmatprep.subr.bf16.mxu0 %v422
  %1500 = vmatpush1.bf16.msra.mxu0 %v421
  %1501 = vmatprep.subr.bf16.mxu0 %v420
  %1502 = vmatpush1.bf16.msra.mxu0 %v419
  %1503 = vmatprep.subr.bf16.mxu0 %v418
  %1504 = vmatpush1.bf16.msra.mxu0 %v417
  %1505 = vmatprep.subr.bf16.mxu0 %v448
  %1506 = vmatpush2.bf16.msra.mxu0 %v447
  %1507 = vmatprep.subr.bf16.mxu0 %v446
  %1508 = vmatpush2.bf16.msra.mxu0 %v445
  %1509 = vmatprep.subr.bf16.mxu0 %v444
  %1510 = vmatpush2.bf16.msra.mxu0 %v443
  %1511 = vmatprep.subr.bf16.mxu0 %v442
  %1512 = vmatpush2.bf16.msra.mxu0 %v441
  %1513 = vmatprep.subr.bf16.mxu0 %v440
  %1514 = vmatpush2.bf16.msra.mxu0 %v439
  %1515 = vmatprep.subr.bf16.mxu0 %v438
  %1516 = vmatpush2.bf16.msra.mxu0 %v437
  %1517 = vmatprep.subr.bf16.mxu0 %v436
  %1518 = vmatpush2.bf16.msra.mxu0 %v435
  %1519 = vmatprep.subr.bf16.mxu0 %v434
  %1520 = vmatpush2.bf16.msra.mxu0 %v433
  %1521 = vmatprep.mubr.bf16.mxu0 %v1447
  %1522 = vmatmul.mubr.bf16.gmra.mxu0 %v1446
  %v1523 = vpop.f32.mrf.mxu0
  %v1524 = vadd.f32 %v1483, %v1523
  %v1525 = vpop.f32.mrf.mxu0
  %v1526 = vadd.f32 %v1485, %v1525
  %v1527 = vpop.f32.mrf.mxu0
  %v1528 = vpop.f32.mrf.mxu0
  %1529 = vdwg.mxu0
  %v1532 = vcombine.low %v1524, %v1526
  %s1534 = scalar_lea.vmem %s4, 48
  %1535 = vst [vmem:[%s1534] sm:$0xff] %v1532
  %s1536 = scalar_lea.vmem %s0, 56
  %v1537 = vld [vmem:[%s1536] sm:$0xf]
  %v1538 = vunpack.c.l.bf16 %v1537
  %s1539 = scalar_lea.vmem %s0, 60
  %v1540 = vld [vmem:[%s1539] sm:$0xf]
  %v1541 = vunpack.c.l.bf16 %v1540
  %v1543 = vcombine.high %v1538, %v1538
  %v1545 = vsel %vm91, %v1538, 0.0
  %v1546 = vsel %vm91, %v1543, 0.0
  %v1547 = vadd.f32 %v1545, %v1546
  %1548 = vadd.xlane.f32.xlu0 %v1547
  %v1549 = vpop.xlane.xlu0 %1548
  %v1551 = vcombine.high %v1541, %v1541
  %v1553 = vsel %vm91, %v1541, 0.0
  %v1554 = vsel %vm91, %v1551, 0.0
  %v1555 = vadd.f32 %v1553, %v1554
  %1556 = vadd.xlane.f32.xlu0 %v1555
  %v1557 = vpop.xlane.xlu0 %1556
  %v1558 = vadd.f32 %v1549, %v1557
  %v1559 = vmul.f32 %v1538, %v1538
  %v1561 = vcombine.high %v1559, %v1559
  %v1563 = vsel %vm91, %v1559, 0.0
  %v1564 = vsel %vm91, %v1561, 0.0
  %v1565 = vadd.f32 %v1563, %v1564
  %1566 = vadd.xlane.f32.xlu0 %v1565
  %v1567 = vpop.xlane.xlu0 %1566
  %v1568 = vmul.f32 %v1541, %v1541
  %v1570 = vcombine.high %v1568, %v1568
  %v1572 = vsel %vm91, %v1568, 0.0
  %v1573 = vsel %vm91, %v1570, 0.0
  %v1574 = vadd.f32 %v1572, %v1573
  %1575 = vadd.xlane.f32.xlu0 %v1574
  %v1576 = vpop.xlane.xlu0 %1575
  %v1577 = vadd.f32 %v1567, %v1576
  %v1578 = vmul.f32 %v1558, 0.001953125
  %v1579 = vmul.f32 %v1577, 0.001953125
  %v1580 = vmul.f32 %v1578, %v1578
  %v1581 = vsub.f32 %v1579, %v1580
  %v1582 = vadd.f32 %v1581, 1e-05
  %v1583 = vrsqrt.pop %v1582
  %v1584 = vsub.f32 %v1538, %v1578
  %v1585 = vsub.f32 %v1543, %v1578
  %v1586 = vsub.f32 %v1541, %v1578
  %v1587 = vsub.f32 %v1551, %v1578
  %v1588 = vmul.f32 %v1584, %v1583
  %v1589 = vmul.f32 %v1585, %v1583
  %v1590 = vmul.f32 %v1586, %v1583
  %v1591 = vmul.f32 %v1587, %v1583
  %v1592 = vmul.f32 %v1588, %v143
  %v1593 = vmul.f32 %v1589, %v147
  %v1594 = vmul.f32 %v1590, %v151
  %v1595 = vmul.f32 %v1591, %v155
  %v1596 = vadd.f32 %v1592, %v168
  %v1597 = vadd.f32 %v1593, %v172
  %v1598 = vadd.f32 %v1594, %v176
  %v1599 = vadd.f32 %v1595, %v180
  %v1600 = vpack.c.bf16 %v1596, %v1596
  %v1601 = vpack.c.bf16 %v1597, %v1597
  %v1602 = vpack.c.bf16 %v1598, %v1598
  %v1603 = vpack.c.bf16 %v1599, %v1599
  %1604 = vmatprep.subr.bf16.mxu0 %v400
  %1605 = vmatpush1.bf16.msra.mxu0 %v399
  %1606 = vmatprep.subr.bf16.mxu0 %v398
  %1607 = vmatpush1.bf16.msra.mxu0 %v397
  %1608 = vmatprep.subr.bf16.mxu0 %v396
  %1609 = vmatpush1.bf16.msra.mxu0 %v395
  %1610 = vmatprep.subr.bf16.mxu0 %v394
  %1611 = vmatpush1.bf16.msra.mxu0 %v393
  %1612 = vmatprep.subr.bf16.mxu0 %v392
  %1613 = vmatpush1.bf16.msra.mxu0 %v391
  %1614 = vmatprep.subr.bf16.mxu0 %v390
  %1615 = vmatpush1.bf16.msra.mxu0 %v389
  %1616 = vmatprep.subr.bf16.mxu0 %v388
  %1617 = vmatpush1.bf16.msra.mxu0 %v387
  %1618 = vmatprep.subr.bf16.mxu0 %v386
  %1619 = vmatpush1.bf16.msra.mxu0 %v385
  %1620 = vmatprep.subr.bf16.mxu0 %v416
  %1621 = vmatpush2.bf16.msra.mxu0 %v415
  %1622 = vmatprep.subr.bf16.mxu0 %v414
  %1623 = vmatpush2.bf16.msra.mxu0 %v413
  %1624 = vmatprep.subr.bf16.mxu0 %v412
  %1625 = vmatpush2.bf16.msra.mxu0 %v411
  %1626 = vmatprep.subr.bf16.mxu0 %v410
  %1627 = vmatpush2.bf16.msra.mxu0 %v409
  %1628 = vmatprep.subr.bf16.mxu0 %v408
  %1629 = vmatpush2.bf16.msra.mxu0 %v407
  %1630 = vmatprep.subr.bf16.mxu0 %v406
  %1631 = vmatpush2.bf16.msra.mxu0 %v405
  %1632 = vmatprep.subr.bf16.mxu0 %v404
  %1633 = vmatpush2.bf16.msra.mxu0 %v403
  %1634 = vmatprep.subr.bf16.mxu0 %v402
  %1635 = vmatpush2.bf16.msra.mxu0 %v401
  %1636 = vmatprep.mubr.bf16.mxu0 %v1601
  %1637 = vmatmul.mubr.bf16.gmra.mxu0 %v1600
  %v1638 = vpop.f32.mrf.mxu0
  %v1639 = vadd.f32 0.0, %v1638
  %v1640 = vpop.f32.mrf.mxu0
  %v1641 = vadd.f32 0.0, %v1640
  %v1642 = vpop.f32.mrf.mxu0
  %v1643 = vpop.f32.mrf.mxu0
  %1644 = vdwg.mxu0
  %1645 = vmatprep.subr.bf16.mxu0 %v432
  %1646 = vmatpush1.bf16.msra.mxu0 %v431
  %1647 = vmatprep.subr.bf16.mxu0 %v430
  %1648 = vmatpush1.bf16.msra.mxu0 %v429
  %1649 = vmatprep.subr.bf16.mxu0 %v428
  %1650 = vmatpush1.bf16.msra.mxu0 %v427
  %1651 = vmatprep.subr.bf16.mxu0 %v426
  %1652 = vmatpush1.bf16.msra.mxu0 %v425
  %1653 = vmatprep.subr.bf16.mxu0 %v424
  %1654 = vmatpush1.bf16.msra.mxu0 %v423
  %1655 = vmatprep.subr.bf16.mxu0 %v422
  %1656 = vmatpush1.bf16.msra.mxu0 %v421
  %1657 = vmatprep.subr.bf16.mxu0 %v420
  %1658 = vmatpush1.bf16.msra.mxu0 %v419
  %1659 = vmatprep.subr.bf16.mxu0 %v418
  %1660 = vmatpush1.bf16.msra.mxu0 %v417
  %1661 = vmatprep.subr.bf16.mxu0 %v448
  %1662 = vmatpush2.bf16.msra.mxu0 %v447
  %1663 = vmatprep.subr.bf16.mxu0 %v446
  %1664 = vmatpush2.bf16.msra.mxu0 %v445
  %1665 = vmatprep.subr.bf16.mxu0 %v444
  %1666 = vmatpush2.bf16.msra.mxu0 %v443
  %1667 = vmatprep.subr.bf16.mxu0 %v442
  %1668 = vmatpush2.bf16.msra.mxu0 %v441
  %1669 = vmatprep.subr.bf16.mxu0 %v440
  %1670 = vmatpush2.bf16.msra.mxu0 %v439
  %1671 = vmatprep.subr.bf16.mxu0 %v438
  %1672 = vmatpush2.bf16.msra.mxu0 %v437
  %1673 = vmatprep.subr.bf16.mxu0 %v436
  %1674 = vmatpush2.bf16.msra.mxu0 %v435
  %1675 = vmatprep.subr.bf16.mxu0 %v434
  %1676 = vmatpush2.bf16.msra.mxu0 %v433
  %1677 = vmatprep.mubr.bf16.mxu0 %v1603
  %1678 = vmatmul.mubr.bf16.gmra.mxu0 %v1602
  %v1679 = vpop.f32.mrf.mxu0
  %v1680 = vadd.f32 %v1639, %v1679
  %v1681 = vpop.f32.mrf.mxu0
  %v1682 = vadd.f32 %v1641, %v1681
  %v1683 = vpop.f32.mrf.mxu0
  %v1684 = vpop.f32.mrf.mxu0
  %1685 = vdwg.mxu0
  %v1688 = vcombine.low %v1680, %v1682
  %s1690 = scalar_lea.vmem %s4, 56
  %1691 = vst [vmem:[%s1690] sm:$0xff] %v1688
  // Predicated region
  $region18: #{eurnet_stage_forward.3} parent=0 // pred_check
    _
  $region19: #{eurnet_stage_forward.3} parent=0 // pred_check_branch
    %1693 = sbr.rel (0) target = $region21
  $region20: #{eurnet_stage_forward.3} parent=0 // pred_region
    _
  $region21: #{eurnet_stage_forward.3} parent=0 // pred_fallthru
    _
  // Predicated region
  $region22: #{eurnet_stage_forward.3} parent=0 // pred_check
    _
  $region23: #{eurnet_stage_forward.3} parent=0 // pred_check_branch
    %1695 = sbr.rel (0) target = $region25
  $region24: #{eurnet_stage_forward.3} parent=0 // pred_region
    _
  $region25: #{eurnet_stage_forward.3} parent=0 // pred_fallthru
    _

// kernel: eurnet_stage_forward.2
$region0: #{eurnet_stage_forward.2}
  #allocation0 [shape = 'u32[]', space=smem, size = 0x4, offset = 0x4, fixed_abs, tag = 'smem constant byte address 0x4 - core index']
  #allocation1 [shape = 'u32[144,128]{1,0:T(1,128)}', space=vmem, size = 0x12000, scoped, tag = 'internal scratch']
  #allocation2 [shape = 'f32[64,128]{1,0:T(8,128)}', space=vmem, size = 0x8000, scoped, tag = 'scratch operand']
  %s0 = inlined_call_operand.vmem [shape: f32[128,128], index: 0, kind: input, shape index: {}]
  %s1 = inlined_call_operand.vmem [shape: f32[2,1,128], index: 1, kind: input, shape index: {}]
  %s2 = inlined_call_operand.vmem [shape: f32[2,1,128], index: 2, kind: input, shape index: {}]
  %s3 = inlined_call_operand.vmem [shape: bf16[2,128,128], index: 3, kind: input, shape index: {}]
  %s4 = inlined_call_operand.vmem [shape: f32[2,1,128], index: 4, kind: input, shape index: {}]
  %s5 = inlined_call_operand.vmem [shape: f32[2,1,128], index: 5, kind: input, shape index: {}]
  %s6 = inlined_call_operand.vmem [shape: f32[2,1,128], index: 6, kind: input, shape index: {}]
  %s7 = inlined_call_operand.vmem [shape: bf16[2,128,512], index: 7, kind: input, shape index: {}]
  %s8 = inlined_call_operand.vmem [shape: f32[2,1,512], index: 8, kind: input, shape index: {}]
  %s9 = inlined_call_operand.vmem [shape: bf16[2,512,128], index: 9, kind: input, shape index: {}]
  %s10 = inlined_call_operand.vmem [shape: f32[2,1,128], index: 10, kind: input, shape index: {}]
  %s11 = inlined_call_operand.vmem [shape: bf16[128,128], index: 11, kind: output, shape index: {}]
  %s12 = sld [smem:[#allocation0]]
  $region89: #{eurnet_stage_forward.2} parent=0
    _
  %s14 = ssub.s32 1, %s12
  %s15 = scalar_select 0, %s14, %s12
  loop: start=0, step=1, limit=6
  $region2: #{eurnet_stage_forward.2} parent=0 // loop_pre_header
    _
  $region3: #{eurnet_stage_forward.2} parent=0 // loop_header
    %s17 = sphi 0, %s21
    %p18 = scmp.ge.s32.totalorder %s17, 6
    %s24 = sphi 0, %s36
    %s25 = sphi 0, %s32
    %s26 = sphi 0, %s24
    %s27 = sphi 0, %s25
    %s28 = sphi 0, %s26
    %s29 = sphi 0, %s27
    %s39 = sphi 0, %s41
    %s42 = sphi 0, %s39
    %s43 = sphi 0, %s42
    %s59 = sphi 0, %s43
    %s63 = sphi 0, %s63
    %s65 = sphi 0, %s63
    %s66 = sphi 0, %s65
    %s80 = sphi 0, %s66
    %s84 = sphi 0, %s84
    %s86 = sphi 0, %s84
    %s87 = sphi 0, %s86
    %s101 = sphi 0, %s87
    %s105 = sphi 0, %s105
    %s107 = sphi 0, %s105
    %s108 = sphi 0, %s107
    %s122 = sphi 0, %s108
    %s126 = sphi 0, %s126
    %s128 = sphi 0, %s126
    %s129 = sphi 0, %s128
    %s143 = sphi 0, %s129
    %s147 = sphi 0, %s147
    %s149 = sphi 0, %s147
    %s150 = sphi 0, %s149
    %s164 = sphi 0, %s150
    %s168 = sphi 0, %s168
    %s170 = sphi 0, %s168
    %s171 = sphi 0, %s170
    %s185 = sphi 0, %s171
    %s189 = sphi 0, %s189
    %s191 = sphi 0, %s189
    %s192 = sphi 0, %s191
    %s206 = sphi 0, %s192
    %s210 = sphi 0, %s210
    %s212 = sphi 0, %s210
    %s213 = sphi 0, %s212
    %s227 = sphi 0, %s213
    %s231 = sphi 0, %s231
    %s233 = sphi 0, %s231
    %s234 = sphi 0, %s233
    %s248 = sphi 0, %s234
    %s252 = sphi 0, %s252
    %s254 = sphi 0, %s252
    %s255 = sphi 0, %s254
    %s269 = sphi 0, %s255
    %s275 = sphi 0, %s277
    %s278 = sphi 0, %s275
    %s279 = sphi 0, %s278
    %s295 = sphi 0, %s279
  $region4: #{eurnet_stage_forward.2} parent=0 // loop_header_branch
    %20 = sbr.rel (%p18) target = $region8
  $region5: #{eurnet_stage_forward.2} parent=0 // loop_body
    %s22 = ssub.s32 %s17, 1
    %s23 = ssub.s32 %s17, 2
    %s30 = sadd.s32 1, %s25
    %p31 = scmp.ge.s32.totalorder %s30, 2
    %s32 = scalar_select %p31, 0, %s30
    %s33 = sadd.s32 1, %s24
    %s34 = scalar_select %p31, %s33, %s24
    %p35 = scmp.ge.s32.totalorder %s34, 2
    %s36 = scalar_select %p35, 0, %s34
    %s37 = ssub.s32 %s24, %s36
    %p38 = scmp.eq.s32.totalorder %s37, 0
    %s40 = sadd.s32 %s39, 1
    %s41 = scalar_select %p38, %s39, %s40
    %p44 = pneg %p38
    %p45 = scmp.eq.s32.totalorder %s17, 3
    %p46 = por %p44, %p45
    %p47 = scmp.ne.s32.totalorder %s39, %s42
    %p48 = scmp.eq.s32.totalorder %s17, 0
    %p49 = por %p47, %p48
    %p50 = scmp.ne.s32.totalorder %s39, %s42
    %p51 = scmp.eq.s32.totalorder %s22, 3
    %p52 = por %p50, %p51
    %p53 = scmp.ne.s32.totalorder %s42, %s43
    %p54 = scmp.eq.s32.totalorder %s22, 0
    %p55 = por %p53, %p54
    %p56 = scmp.ne.s32.totalorder %s42, %s43
    %p57 = scmp.eq.s32.totalorder %s23, 3
    %p58 = por %p56, %p57
    %p60 = scmp.ne.s32.totalorder %s43, %s59
    %p61 = scmp.eq.s32.totalorder %s23, 0
    %p62 = por %p60, %p61
    %s64 = sadd.s32 %s63, 1
    %p67 = scmp.eq.s32.totalorder %s17, 3
    %p68 = scmp.ne.s32.totalorder %s63, %s65
    %p69 = scmp.eq.s32.totalorder %s17, 0
    %p70 = por %p68, %p69
    %p71 = scmp.ne.s32.totalorder %s63, %s65
    %p72 = scmp.eq.s32.totalorder %s22, 3
    %p73 = por %p71, %p72
    %p74 = scmp.ne.s32.totalorder %s65, %s66
    %p75 = scmp.eq.s32.totalorder %s22, 0
    %p76 = por %p74, %p75
    %p77 = scmp.ne.s32.totalorder %s65, %s66
    %p78 = scmp.eq.s32.totalorder %s23, 3
    %p79 = por %p77, %p78
    %p81 = scmp.ne.s32.totalorder %s66, %s80
    %p82 = scmp.eq.s32.totalorder %s23, 0
    %p83 = por %p81, %p82
    %s85 = sadd.s32 %s84, 1
    %p88 = scmp.eq.s32.totalorder %s17, 3
    %p89 = scmp.ne.s32.totalorder %s84, %s86
    %p90 = scmp.eq.s32.totalorder %s17, 0
    %p91 = por %p89, %p90
    %p92 = scmp.ne.s32.totalorder %s84, %s86
    %p93 = scmp.eq.s32.totalorder %s22, 3
    %p94 = por %p92, %p93
    %p95 = scmp.ne.s32.totalorder %s86, %s87
    %p96 = scmp.eq.s32.totalorder %s22, 0
    %p97 = por %p95, %p96
    %p98 = scmp.ne.s32.totalorder %s86, %s87
    %p99 = scmp.eq.s32.totalorder %s23, 3
    %p100 = por %p98, %p99
    %p102 = scmp.ne.s32.totalorder %s87, %s101
    %p103 = scmp.eq.s32.totalorder %s23, 0
    %p104 = por %p102, %p103
    %s106 = sadd.s32 %s105, 1
    %p109 = scmp.eq.s32.totalorder %s17, 3
    %p110 = scmp.ne.s32.totalorder %s105, %s107
    %p111 = scmp.eq.s32.totalorder %s17, 0
    %p112 = por %p110, %p111
    %p113 = scmp.ne.s32.totalorder %s105, %s107
    %p114 = scmp.eq.s32.totalorder %s22, 3
    %p115 = por %p113, %p114
    %p116 = scmp.ne.s32.totalorder %s107, %s108
    %p117 = scmp.eq.s32.totalorder %s22, 0
    %p118 = por %p116, %p117
    %p119 = scmp.ne.s32.totalorder %s107, %s108
    %p120 = scmp.eq.s32.totalorder %s23, 3
    %p121 = por %p119, %p120
    %p123 = scmp.ne.s32.totalorder %s108, %s122
    %p124 = scmp.eq.s32.totalorder %s23, 0
    %p125 = por %p123, %p124
    %s127 = sadd.s32 %s126, 1
    %p130 = scmp.eq.s32.totalorder %s17, 3
    %p131 = scmp.ne.s32.totalorder %s126, %s128
    %p132 = scmp.eq.s32.totalorder %s17, 0
    %p133 = por %p131, %p132
    %p134 = scmp.ne.s32.totalorder %s126, %s128
    %p135 = scmp.eq.s32.totalorder %s22, 3
    %p136 = por %p134, %p135
    %p137 = scmp.ne.s32.totalorder %s128, %s129
    %p138 = scmp.eq.s32.totalorder %s22, 0
    %p139 = por %p137, %p138
    %p140 = scmp.ne.s32.totalorder %s128, %s129
    %p141 = scmp.eq.s32.totalorder %s23, 3
    %p142 = por %p140, %p141
    %p144 = scmp.ne.s32.totalorder %s129, %s143
    %p145 = scmp.eq.s32.totalorder %s23, 0
    %p146 = por %p144, %p145
    %s148 = sadd.s32 %s147, 1
    %p151 = scmp.eq.s32.totalorder %s17, 3
    %p152 = scmp.ne.s32.totalorder %s147, %s149
    %p153 = scmp.eq.s32.totalorder %s17, 0
    %p154 = por %p152, %p153
    %p155 = scmp.ne.s32.totalorder %s147, %s149
    %p156 = scmp.eq.s32.totalorder %s22, 3
    %p157 = por %p155, %p156
    %p158 = scmp.ne.s32.totalorder %s149, %s150
    %p159 = scmp.eq.s32.totalorder %s22, 0
    %p160 = por %p158, %p159
    %p161 = scmp.ne.s32.totalorder %s149, %s150
    %p162 = scmp.eq.s32.totalorder %s23, 3
    %p163 = por %p161, %p162
    %p165 = scmp.ne.s32.totalorder %s150, %s164
    %p166 = scmp.eq.s32.totalorder %s23, 0
    %p167 = por %p165, %p166
    %s169 = sadd.s32 %s168, 1
    %p172 = scmp.eq.s32.totalorder %s17, 3
    %p173 = scmp.ne.s32.totalorder %s168, %s170
    %p174 = scmp.eq.s32.totalorder %s17, 0
    %p175 = por %p173, %p174
    %p176 = scmp.ne.s32.totalorder %s168, %s170
    %p177 = scmp.eq.s32.totalorder %s22, 3
    %p178 = por %p176, %p177
    %p179 = scmp.ne.s32.totalorder %s170, %s171
    %p180 = scmp.eq.s32.totalorder %s22, 0
    %p181 = por %p179, %p180
    %p182 = scmp.ne.s32.totalorder %s170, %s171
    %p183 = scmp.eq.s32.totalorder %s23, 3
    %p184 = por %p182, %p183
    %p186 = scmp.ne.s32.totalorder %s171, %s185
    %p187 = scmp.eq.s32.totalorder %s23, 0
    %p188 = por %p186, %p187
    %s190 = sadd.s32 %s189, 1
    %p193 = scmp.eq.s32.totalorder %s17, 3
    %p194 = scmp.ne.s32.totalorder %s189, %s191
    %p195 = scmp.eq.s32.totalorder %s17, 0
    %p196 = por %p194, %p195
    %p197 = scmp.ne.s32.totalorder %s189, %s191
    %p198 = scmp.eq.s32.totalorder %s22, 3
    %p199 = por %p197, %p198
    %p200 = scmp.ne.s32.totalorder %s191, %s192
    %p201 = scmp.eq.s32.totalorder %s22, 0
    %p202 = por %p200, %p201
    %p203 = scmp.ne.s32.totalorder %s191, %s192
    %p204 = scmp.eq.s32.totalorder %s23, 3
    %p205 = por %p203, %p204
    %p207 = scmp.ne.s32.totalorder %s192, %s206
    %p208 = scmp.eq.s32.totalorder %s23, 0
    %p209 = por %p207, %p208
    %s211 = sadd.s32 %s210, 1
    %p214 = scmp.eq.s32.totalorder %s17, 3
    %p215 = scmp.ne.s32.totalorder %s210, %s212
    %p216 = scmp.eq.s32.totalorder %s17, 0
    %p217 = por %p215, %p216
    %p218 = scmp.ne.s32.totalorder %s210, %s212
    %p219 = scmp.eq.s32.totalorder %s22, 3
    %p220 = por %p218, %p219
    %p221 = scmp.ne.s32.totalorder %s212, %s213
    %p222 = scmp.eq.s32.totalorder %s22, 0
    %p223 = por %p221, %p222
    %p224 = scmp.ne.s32.totalorder %s212, %s213
    %p225 = scmp.eq.s32.totalorder %s23, 3
    %p226 = por %p224, %p225
    %p228 = scmp.ne.s32.totalorder %s213, %s227
    %p229 = scmp.eq.s32.totalorder %s23, 0
    %p230 = por %p228, %p229
    %s232 = sadd.s32 %s231, 1
    %p235 = scmp.eq.s32.totalorder %s17, 3
    %p236 = scmp.ne.s32.totalorder %s231, %s233
    %p237 = scmp.eq.s32.totalorder %s17, 0
    %p238 = por %p236, %p237
    %p239 = scmp.ne.s32.totalorder %s231, %s233
    %p240 = scmp.eq.s32.totalorder %s22, 3
    %p241 = por %p239, %p240
    %p242 = scmp.ne.s32.totalorder %s233, %s234
    %p243 = scmp.eq.s32.totalorder %s22, 0
    %p244 = por %p242, %p243
    %p245 = scmp.ne.s32.totalorder %s233, %s234
    %p246 = scmp.eq.s32.totalorder %s23, 3
    %p247 = por %p245, %p246
    %p249 = scmp.ne.s32.totalorder %s234, %s248
    %p250 = scmp.eq.s32.totalorder %s23, 0
    %p251 = por %p249, %p250
    %s253 = sadd.s32 %s252, 1
    %p256 = scmp.eq.s32.totalorder %s17, 3
    %p257 = scmp.ne.s32.totalorder %s252, %s254
    %p258 = scmp.eq.s32.totalorder %s17, 0
    %p259 = por %p257, %p258
    %p260 = scmp.ne.s32.totalorder %s252, %s254
    %p261 = scmp.eq.s32.totalorder %s22, 3
    %p262 = por %p260, %p261
    %p263 = scmp.ne.s32.totalorder %s254, %s255
    %p264 = scmp.eq.s32.totalorder %s22, 0
    %p265 = por %p263, %p264
    %p266 = scmp.ne.s32.totalorder %s254, %s255
    %p267 = scmp.eq.s32.totalorder %s23, 3
    %p268 = por %p266, %p267
    %p270 = scmp.ne.s32.totalorder %s255, %s269
    %p271 = scmp.eq.s32.totalorder %s23, 0
    %p272 = por %p270, %p271
    %s273 = ssub.s32 %s24, %s36
    %p274 = scmp.eq.s32.totalorder %s273, 0
    %s276 = sadd.s32 %s275, 1
    %s277 = scalar_select %p274, %s275, %s276
    %p280 = pneg %p274
    %p281 = scmp.eq.s32.totalorder %s17, 3
    %p282 = por %p280, %p281
    %p283 = scmp.ne.s32.totalorder %s275, %s278
    %p284 = scmp.eq.s32.totalorder %s17, 0
    %p285 = por %p283, %p284
    %p286 = scmp.ne.s32.totalorder %s275, %s278
    %p287 = scmp.eq.s32.totalorder %s22, 3
    %p288 = por %p286, %p287
    %p289 = scmp.ne.s32.totalorder %s278, %s279
    %p290 = scmp.eq.s32.totalorder %s22, 0
    %p291 = por %p289, %p290
    %p292 = scmp.ne.s32.totalorder %s278, %s279
    %p293 = scmp.eq.s32.totalorder %s23, 3
    %p294 = por %p292, %p293
    %p296 = scmp.ne.s32.totalorder %s279, %s295
    %p297 = scmp.eq.s32.totalorder %s23, 0
    %p298 = por %p296, %p297
    %p299 = scmp.le.s32.totalorder 1, %s17
    %p300 = scmp.lt.s32.totalorder %s17, 5
    %p301 = pnand %p299, %p300
    %p302 = pneg %p301
    // Predicated region
    $region9: #{eurnet_stage_forward.2} parent=5 // pred_check
      _
    $region10: #{eurnet_stage_forward.2} parent=5 // pred_check_branch
      %304 = sbr.rel (%p301) target = $region12
    $region11: #{eurnet_stage_forward.2} parent=5 // pred_region
      %s305 = ssub.s32 %s17, 1
      // Predicated region
      $region13: #{eurnet_stage_forward.2} parent=11 // pred_check
        %p306 = pneg %p76
      $region14: #{eurnet_stage_forward.2} parent=11 // pred_check_branch
        %308 = sbr.rel (%p306) target = $region16
      $region15: #{eurnet_stage_forward.2} parent=11 // pred_region
        _
      $region16: #{eurnet_stage_forward.2} parent=11 // pred_fallthru
        _
      // Predicated region
      $region17: #{eurnet_stage_forward.2} parent=11 // pred_check
        %p309 = pneg %p97
      $region18: #{eurnet_stage_forward.2} parent=11 // pred_check_branch
        %311 = sbr.rel (%p309) target = $region20
      $region19: #{eurnet_stage_forward.2} parent=11 // pred_region
        _
      $region20: #{eurnet_stage_forward.2} parent=11 // pred_fallthru
        _
      // Predicated region
      $region21: #{eurnet_stage_forward.2} parent=11 // pred_check
        %p312 = pneg %p118
      $region22: #{eurnet_stage_forward.2} parent=11 // pred_check_branch
        %314 = sbr.rel (%p312) target = $region24
      $region23: #{eurnet_stage_forward.2} parent=11 // pred_region
        _
      $region24: #{eurnet_stage_forward.2} parent=11 // pred_fallthru
        _
      // Predicated region
      $region25: #{eurnet_stage_forward.2} parent=11 // pred_check
        %p315 = pneg %p139
      $region26: #{eurnet_stage_forward.2} parent=11 // pred_check_branch
        %317 = sbr.rel (%p315) target = $region28
      $region27: #{eurnet_stage_forward.2} parent=11 // pred_region
        _
      $region28: #{eurnet_stage_forward.2} parent=11 // pred_fallthru
        _
      // Predicated region
      $region29: #{eurnet_stage_forward.2} parent=11 // pred_check
        %p318 = pneg %p160
      $region30: #{eurnet_stage_forward.2} parent=11 // pred_check_branch
        %320 = sbr.rel (%p318) target = $region32
      $region31: #{eurnet_stage_forward.2} parent=11 // pred_region
        _
      $region32: #{eurnet_stage_forward.2} parent=11 // pred_fallthru
        _
      // Predicated region
      $region33: #{eurnet_stage_forward.2} parent=11 // pred_check
        %p321 = pneg %p181
      $region34: #{eurnet_stage_forward.2} parent=11 // pred_check_branch
        %323 = sbr.rel (%p321) target = $region36
      $region35: #{eurnet_stage_forward.2} parent=11 // pred_region
        _
      $region36: #{eurnet_stage_forward.2} parent=11 // pred_fallthru
        _
      // Predicated region
      $region37: #{eurnet_stage_forward.2} parent=11 // pred_check
        %p324 = pneg %p202
      $region38: #{eurnet_stage_forward.2} parent=11 // pred_check_branch
        %326 = sbr.rel (%p324) target = $region40
      $region39: #{eurnet_stage_forward.2} parent=11 // pred_region
        _
      $region40: #{eurnet_stage_forward.2} parent=11 // pred_fallthru
        _
      // Predicated region
      $region41: #{eurnet_stage_forward.2} parent=11 // pred_check
        %p327 = pneg %p223
      $region42: #{eurnet_stage_forward.2} parent=11 // pred_check_branch
        %329 = sbr.rel (%p327) target = $region44
      $region43: #{eurnet_stage_forward.2} parent=11 // pred_region
        _
      $region44: #{eurnet_stage_forward.2} parent=11 // pred_fallthru
        _
      // Predicated region
      $region45: #{eurnet_stage_forward.2} parent=11 // pred_check
        %p330 = pneg %p244
      $region46: #{eurnet_stage_forward.2} parent=11 // pred_check_branch
        %332 = sbr.rel (%p330) target = $region48
      $region47: #{eurnet_stage_forward.2} parent=11 // pred_region
        _
      $region48: #{eurnet_stage_forward.2} parent=11 // pred_fallthru
        _
      // Predicated region
      $region49: #{eurnet_stage_forward.2} parent=11 // pred_check
        %p333 = pneg %p265
      $region50: #{eurnet_stage_forward.2} parent=11 // pred_check_branch
        %335 = sbr.rel (%p333) target = $region52
      $region51: #{eurnet_stage_forward.2} parent=11 // pred_region
        _
      $region52: #{eurnet_stage_forward.2} parent=11 // pred_fallthru
        _
    $region12: #{eurnet_stage_forward.2} parent=5 // pred_fallthru
      _
    %p336 = scmp.lt.s32.totalorder %s17, 4
    // Predicated region
    $region53: #{eurnet_stage_forward.2} parent=5 // pred_check
      %p337 = pneg %p336
    $region54: #{eurnet_stage_forward.2} parent=5 // pred_check_branch
      %339 = sbr.rel (%p337) target = $region56
    $region55: #{eurnet_stage_forward.2} parent=5 // pred_region
      // Predicated region
      $region57: #{eurnet_stage_forward.2} parent=55 // pred_check
        %p340 = pneg %p49
      $region58: #{eurnet_stage_forward.2} parent=55 // pred_check_branch
        %342 = sbr.rel (%p340) target = $region60
      $region59: #{eurnet_stage_forward.2} parent=55 // pred_region
        %s343 = smul.u32 8, %s24
        %p344 = scmp.lt.s32.totalorder %s343, 15
        %s345 = scalar_select %p344, %s343, 15
        %s346 = smul.addr %s345, 8
        %s347 = scalar_lea.vmem %s0, %s346
        %s348 = smul.u32 8, %s24
      $region60: #{eurnet_stage_forward.2} parent=55 // pred_fallthru
        _
    $region56: #{eurnet_stage_forward.2} parent=5 // pred_fallthru
      _
    %p349 = scmp.le.s32.totalorder 1, %s17
    %p350 = scmp.lt.s32.totalorder %s17, 5
    %p351 = pnand %p349, %p350
    %p352 = pneg %p351
    // Predicated region
    $region61: #{eurnet_stage_forward.2} parent=5 // pred_check
      _
    $region62: #{eurnet_stage_forward.2} parent=5 // pred_check_branch
      %354 = sbr.rel (%p351) target = $region64
    $region63: #{eurnet_stage_forward.2} parent=5 // pred_region
      %s355 = ssub.s32 %s17, 1
      %s356 = smul.u32 8, %s26
      %p357 = scmp.lt.s32.totalorder %s356, 15
      %s358 = scalar_select %p357, %s356, 15
      %s359 = smul.addr %s358, 8
      %s360 = scalar_lea.vmem %s0, %s359
      %p361 = pneg %p55
      %p362 = pneg %p52
      %p363 = pneg %p76
      %p364 = pneg %p73
      %p365 = pneg %p97
      %p366 = pneg %p94
      %p367 = pneg %p118
      %p368 = pneg %p115
      %p369 = pneg %p139
      %p370 = pneg %p136
      %p371 = pneg %p160
      %p372 = pneg %p157
      %p373 = pneg %p181
      %p374 = pneg %p178
      %p375 = pneg %p202
      %p376 = pneg %p199
      %p377 = pneg %p223
      %p378 = pneg %p220
      %p379 = pneg %p244
      %p380 = pneg %p241
      %p381 = pneg %p265
      %p382 = pneg %p262
      %p383 = pneg %p291
      %p384 = pneg %p288
      %s385 = smul.u32 8, %s26
      %p386 = scmp.lt.s32.totalorder %s385, 15
      %s387 = scalar_select %p386, %s385, 15
      %s388 = smul.addr %s387, 4
      %s389 = scalar_lea.vmem %s11, %s388
      %s390 = smul.u32 8, %s26
      %p391 = scmp.lt.s32.totalorder %s390, 15
      %s392 = scalar_select %p391, %s390, 15
      %s393 = smul.addr %s392, 8
      %s394 = scalar_lea.vmem %s0, %s393
      %s395 = smul.u32 8, %s26
      %s396 = smul.u32 8, %s26
      %p397 = scmp.lt.s32.totalorder %s396, 15
      %s398 = scalar_select %p397, %s396, 15
      %s399 = smul.addr %s398, 4
      %s400 = scalar_lea.vmem %s11, %s399
      %s401 = smul.u32 8, %s26
      %p403 = scmp.eq.s32.totalorder %s27, 0
      // Predicated region
      $region65: #{eurnet_stage_forward.2} parent=63 // pred_check
        %p404 = pneg %p403
      $region66: #{eurnet_stage_forward.2} parent=63 // pred_check_branch
        %406 = sbr.rel (%p404) target = $region68
      $region67: #{eurnet_stage_forward.2} parent=63 // pred_region
        %v407 = vld [vmem:[%s394] sm:$0xff]
        %v408 = vld [vmem:[%s394 + $0x8] sm:$0xff]
        %v409 = vld [vmem:[%s394 + $0x10] sm:$0xff]
        %v410 = vld [vmem:[%s394 + $0x18] sm:$0xff]
        %v411 = vld [vmem:[%s394 + $0x20] sm:$0xff]
        %v412 = vld [vmem:[%s394 + $0x28] sm:$0xff]
        %v413 = vld [vmem:[%s394 + $0x30] sm:$0xff]
        %v414 = vld [vmem:[%s394 + $0x38] sm:$0xff]
        %415 = vst [vmem:[#allocation2] sm:$0xff] %v407
        %416 = vst [vmem:[#allocation2 + $0x8] sm:$0xff] %v408
        %417 = vst [vmem:[#allocation2 + $0x10] sm:$0xff] %v409
        %418 = vst [vmem:[#allocation2 + $0x18] sm:$0xff] %v410
        %419 = vst [vmem:[#allocation2 + $0x20] sm:$0xff] %v411
        %420 = vst [vmem:[#allocation2 + $0x28] sm:$0xff] %v412
        %421 = vst [vmem:[#allocation2 + $0x30] sm:$0xff] %v413
        %422 = vst [vmem:[#allocation2 + $0x38] sm:$0xff] %v414
      $region68: #{eurnet_stage_forward.2} parent=63 // pred_fallthru
        _
      %v423 = vld [vmem:[#allocation2] sm:$0xff]
      %v424 = vld [vmem:[#allocation2 + $0x8] sm:$0xff]
      %v425 = vld [vmem:[#allocation2 + $0x10] sm:$0xff]
      %v426 = vld [vmem:[#allocation2 + $0x18] sm:$0xff]
      %v427 = vld [vmem:[#allocation2 + $0x20] sm:$0xff]
      %v428 = vld [vmem:[#allocation2 + $0x28] sm:$0xff]
      %v429 = vld [vmem:[#allocation2 + $0x30] sm:$0xff]
      %v430 = vld [vmem:[#allocation2 + $0x38] sm:$0xff]
      %s431 = scalar_lea.vmem %s1, %s27
      %v432 = vld [vmem:[%s431] sm:$0x1]
      %s433 = scalar_lea.vmem %s2, %s27
      %v434 = vld [vmem:[%s433] sm:$0x1]
      %435 = vadd.xlane.f32.xlu0 %v423
      %v436 = vpop.xlane.xlu0 %435
      %437 = vadd.xlane.f32.xlu0 %v424
      %v438 = vpop.xlane.xlu0 %437
      %439 = vadd.xlane.f32.xlu0 %v425
      %v440 = vpop.xlane.xlu0 %439
      %441 = vadd.xlane.f32.xlu0 %v426
      %v442 = vpop.xlane.xlu0 %441
      %443 = vadd.xlane.f32.xlu0 %v427
      %v444 = vpop.xlane.xlu0 %443
      %445 = vadd.xlane.f32.xlu0 %v428
      %v446 = vpop.xlane.xlu0 %445
      %447 = vadd.xlane.f32.xlu0 %v429
      %v448 = vpop.xlane.xlu0 %447
      %449 = vadd.xlane.f32.xlu0 %v430
      %v450 = vpop.xlane.xlu0 %449
      %v451 = vrcp.pop 128.0
      %v452 = vmul.f32 %v436, %v451
      %v453 = vmul.f32 %v438, %v451
      %v454 = vmul.f32 %v440, %v451
      %v455 = vmul.f32 %v442, %v451
      %v456 = vmul.f32 %v444, %v451
      %v457 = vmul.f32 %v446, %v451
      %v458 = vmul.f32 %v448, %v451
      %v459 = vmul.f32 %v450, %v451
      %v460 = vmul.f32 %v423, %v423
      %v461 = vmul.f32 %v424, %v424
      %v462 = vmul.f32 %v425, %v425
      %v463 = vmul.f32 %v426, %v426
      %v464 = vmul.f32 %v427, %v427
      %v465 = vmul.f32 %v428, %v428
      %v466 = vmul.f32 %v429, %v429
      %v467 = vmul.f32 %v430, %v430
      %468 = vadd.xlane.f32.xlu0 %v460
      %v469 = vpop.xlane.xlu0 %468
      %470 = vadd.xlane.f32.xlu0 %v461
      %v471 = vpop.xlane.xlu0 %470
      %472 = vadd.xlane.f32.xlu0 %v462
      %v473 = vpop.xlane.xlu0 %472
      %474 = vadd.xlane.f32.xlu0 %v463
      %v475 = vpop.xlane.xlu0 %474
      %476 = vadd.xlane.f32.xlu0 %v464
      %v477 = vpop.xlane.xlu0 %476
      %478 = vadd.xlane.f32.xlu0 %v465
      %v479 = vpop.xlane.xlu0 %478
      %480 = vadd.xlane.f32.xlu0 %v466
      %v481 = vpop.xlane.xlu0 %480
      %482 = vadd.xlane.f32.xlu0 %v467
      %v483 = vpop.xlane.xlu0 %482
      %v484 = vmul.f32 %v469, %v451
      %v485 = vmul.f32 %v471, %v451
      %v486 = vmul.f32 %v473, %v451
      %v487 = vmul.f32 %v475, %v451
      %v488 = vmul.f32 %v477, %v451
      %v489 = vmul.f32 %v479, %v451
      %v490 = vmul.f32 %v481, %v451
      %v491 = vmul.f32 %v483, %v451
      %v492 = vmul.f32 %v452, %v452
      %v493 = vmul.f32 %v453, %v453
      %v494 = vmul.f32 %v454, %v454
      %v495 = vmul.f32 %v455, %v455
      %v496 = vmul.f32 %v456, %v456
      %v497 = vmul.f32 %v457, %v457
      %v498 = vmul.f32 %v458, %v458
      %v499 = vmul.f32 %v459, %v459
      %v500 = vsub.f32 %v484, %v492
      %v501 = vsub.f32 %v485, %v493
      %v502 = vsub.f32 %v486, %v494
      %v503 = vsub.f32 %v487, %v495
      %v504 = vsub.f32 %v488, %v496
      %v505 = vsub.f32 %v489, %v497
      %v506 = vsub.f32 %v490, %v498
      %v507 = vsub.f32 %v491, %v499
      %v508 = vadd.f32 %v500, 1e-05
      %v509 = vadd.f32 %v501, 1e-05
      %v510 = vadd.f32 %v502, 1e-05
      %v511 = vadd.f32 %v503, 1e-05
      %v512 = vadd.f32 %v504, 1e-05
      %v513 = vadd.f32 %v505, 1e-05
      %v514 = vadd.f32 %v506, 1e-05
      %v515 = vadd.f32 %v507, 1e-05
      %v516 = vrsqrt.pop %v508
      %v517 = vrsqrt.pop %v509
      %v518 = vrsqrt.pop %v510
      %v519 = vrsqrt.pop %v511
      %v520 = vrsqrt.pop %v512
      %v521 = vrsqrt.pop %v513
      %v522 = vrsqrt.pop %v514
      %v523 = vrsqrt.pop %v515
      %v524 = vsub.f32 %v423, %v452
      %v525 = vsub.f32 %v424, %v453
      %v526 = vsub.f32 %v425, %v454
      %v527 = vsub.f32 %v426, %v455
      %v528 = vsub.f32 %v427, %v456
      %v529 = vsub.f32 %v428, %v457
      %v530 = vsub.f32 %v429, %v458
      %v531 = vsub.f32 %v430, %v459
      %v532 = vmul.f32 %v524, %v516
      %v533 = vmul.f32 %v525, %v517
      %v534 = vmul.f32 %v526, %v518
      %v535 = vmul.f32 %v527, %v519
      %v536 = vmul.f32 %v528, %v520
      %v537 = vmul.f32 %v529, %v521
      %v538 = vmul.f32 %v530, %v522
      %v539 = vmul.f32 %v531, %v523
      %v541 = vlaneseq
      %v542 = vshrl.u32 %v541, 7
      %v543 = vsub.s32 0, %v542
      %v544 = vrot.slane %v432, %v543
      %v546 = vmul.f32 %v532, %v544
      %v547 = vmul.f32 %v533, %v544
      %v548 = vmul.f32 %v534, %v544
      %v549 = vmul.f32 %v535, %v544
      %v550 = vmul.f32 %v536, %v544
      %v551 = vmul.f32 %v537, %v544
      %v552 = vmul.f32 %v538, %v544
      %v553 = vmul.f32 %v539, %v544
      %v555 = vlaneseq
      %v556 = vshrl.u32 %v555, 7
      %v557 = vsub.s32 0, %v556
      %v558 = vrot.slane %v434, %v557
      %v560 = vadd.f32 %v546, %v558
      %v561 = vadd.f32 %v547, %v558
      %v562 = vadd.f32 %v548, %v558
      %v563 = vadd.f32 %v549, %v558
      %v564 = vadd.f32 %v550, %v558
      %v565 = vadd.f32 %v551, %v558
      %v566 = vadd.f32 %v552, %v558
      %v567 = vadd.f32 %v553, %v558
      %v568 = vpack.c.bf16 %v561, %v560
      %v569 = vpack.c.bf16 %v563, %v562
      %v570 = vpack.c.bf16 %v565, %v564
      %v571 = vpack.c.bf16 %v567, %v566
      %s572 = smul.u32 %s27, 16
      %s573 = smul.addr %s572, 4
      %s574 = scalar_lea.vmem %s3, %s573
      %v575 = vld [vmem:[%s574] sm:$0xf]
      %v576 = vld [vmem:[%s574 + $0x4] sm:$0xf]
      %v577 = vld [vmem:[%s574 + $0x8] sm:$0xf]
      %v578 = vld [vmem:[%s574 + $0xc] sm:$0xf]
      %v579 = vld [vmem:[%s574 + $0x10] sm:$0xf]
      %v580 = vld [vmem:[%s574 + $0x14] sm:$0xf]
      %v581 = vld [vmem:[%s574 + $0x18] sm:$0xf]
      %v582 = vld [vmem:[%s574 + $0x1c] sm:$0xf]
      %v583 = vld [vmem:[%s574 + $0x20] sm:$0xf]
      %v584 = vld [vmem:[%s574 + $0x24] sm:$0xf]
      %v585 = vld [vmem:[%s574 + $0x28] sm:$0xf]
      %v586 = vld [vmem:[%s574 + $0x2c] sm:$0xf]
      %v587 = vld [vmem:[%s574 + $0x30] sm:$0xf]
      %v588 = vld [vmem:[%s574 + $0x34] sm:$0xf]
      %v589 = vld [vmem:[%s574 + $0x38] sm:$0xf]
      %v590 = vld [vmem:[%s574 + $0x3c] sm:$0xf]
      %s591 = scalar_lea.vmem %s4, %s27
      %v592 = vld [vmem:[%s591] sm:$0x1]
      %v594 = vlaneseq
      %v595 = vshrl.u32 %v594, 7
      %v596 = vsub.s32 0, %v595
      %v597 = vrot.slane %v592, %v596
      %v615 = vunpack.c.l.b16 %v575
      %v616 = vunpack.c.l.b16 %v576
      %v617 = vunpack.c.l.b16 %v577
      %v618 = vunpack.c.l.b16 %v578
      %v619 = vunpack.c.l.b16 %v579
      %v620 = vunpack.c.l.b16 %v580
      %v621 = vunpack.c.l.b16 %v581
      %v622 = vunpack.c.l.b16 %v582
      %v623 = vunpack.c.l.b16 %v583
      %v624 = vunpack.c.l.b16 %v584
      %v625 = vunpack.c.l.b16 %v585
      %v626 = vunpack.c.l.b16 %v586
      %v627 = vunpack.c.l.b16 %v587
      %v628 = vunpack.c.l.b16 %v588
      %v629 = vunpack.c.l.b16 %v589
      %v630 = vunpack.c.l.b16 %v590
      %v631 = vpack.c.b16 %v616, %v615
      %v632 = vpack.c.b16 %v618, %v617
      %v633 = vpack.c.b16 %v620, %v619
      %v634 = vpack.c.b16 %v622, %v621
      %v635 = vpack.c.b16 %v624, %v623
      %v636 = vpack.c.b16 %v626, %v625
      %v637 = vpack.c.b16 %v628, %v627
      %v638 = vpack.c.b16 %v630, %v629
      %647 = vmatprep.subr.bf16.mxu0 0
      %648 = vmatpush1.bf16.msra.mxu0 %v638
      %649 = vmatprep.subr.bf16.mxu0 0
      %650 = vmatpush1.bf16.msra.mxu0 %v637
      %651 = vmatprep.subr.bf16.mxu0 0
      %652 = vmatpush1.bf16.msra.mxu0 %v636
      %653 = vmatprep.subr.bf16.mxu0 0
      %654 = vmatpush1.bf16.msra.mxu0 %v635
      %655 = vmatprep.subr.bf16.mxu0 0
      %656 = vmatpush1.bf16.msra.mxu0 %v634
      %657 = vmatprep.subr.bf16.mxu0 0
      %658 = vmatpush1.bf16.msra.mxu0 %v633
      %659 = vmatprep.subr.bf16.mxu0 0
      %660 = vmatpush1.bf16.msra.mxu0 %v632
      %661 = vmatprep.subr.bf16.mxu0 0
      %662 = vmatpush1.bf16.msra.mxu0 %v631
      %663 = vmatprep.subr.bf16.mxu0 0
      %664 = vmatpush2.bf16.msra.mxu0 0
      %665 = vmatprep.subr.bf16.mxu0 0
      %666 = vmatpush2.bf16.msra.mxu0 0
      %667 = vmatprep.subr.bf16.mxu0 0
      %668 = vmatpush2.bf16.msra.mxu0 0
      %669 = vmatprep.subr.bf16.mxu0 0
      %670 = vmatpush2.bf16.msra.mxu0 0
      %671 = vmatprep.subr.bf16.mxu0 0
      %672 = vmatpush2.bf16.msra.mxu0 0
      %673 = vmatprep.subr.bf16.mxu0 0
      %674 = vmatpush2.bf16.msra.mxu0 0
      %675 = vmatprep.subr.bf16.mxu0 0
      %676 = vmatpush2.bf16.msra.mxu0 0
      %677 = vmatprep.subr.bf16.mxu0 0
      %678 = vmatpush2.bf16.msra.mxu0 0
      %679 = vmatprep.mubr.bf16.mxu0 0
      %680 = vmatmul.mubr.bf16.gmra.mxu0 %v568
      %v681 = vpop.f32.mrf.mxu0
      %v682 = vadd.f32 %v597, %v681
      %v683 = vpop.f32.mrf.mxu0
      %v684 = vpop.f32.mrf.mxu0
      %v685 = vadd.f32 %v597, %v684
      %v686 = vpop.f32.mrf.mxu0
      %687 = vmatprep.mubr.bf16.mxu0 0
      %688 = vmatmul.mubr.bf16.gmra.mxu0 %v569
      %v689 = vpop.f32.mrf.mxu0
      %v690 = vadd.f32 %v597, %v689
      %v691 = vpop.f32.mrf.mxu0
      %v692 = vpop.f32.mrf.mxu0
      %v693 = vadd.f32 %v597, %v692
      %v694 = vpop.f32.mrf.mxu0
      %695 = vmatprep.mubr.bf16.mxu0 0
      %696 = vmatmul.mubr.bf16.gmra.mxu0 %v570
      %v697 = vpop.f32.mrf.mxu0
      %v698 = vadd.f32 %v597, %v697
      %v699 = vpop.f32.mrf.mxu0
      %v700 = vpop.f32.mrf.mxu0
      %v701 = vadd.f32 %v597, %v700
      %v702 = vpop.f32.mrf.mxu0
      %703 = vmatprep.mubr.bf16.mxu0 0
      %704 = vmatmul.mubr.bf16.gmra.mxu0 %v571
      %v705 = vpop.f32.mrf.mxu0
      %v706 = vadd.f32 %v597, %v705
      %v707 = vpop.f32.mrf.mxu0
      %v708 = vpop.f32.mrf.mxu0
      %v709 = vadd.f32 %v597, %v708
      %v710 = vpop.f32.mrf.mxu0
      %711 = vdwg.mxu0
      %v712 = vadd.f32 %v423, %v682
      %v713 = vadd.f32 %v424, %v685
      %v714 = vadd.f32 %v425, %v690
      %v715 = vadd.f32 %v426, %v693
      %v716 = vadd.f32 %v427, %v698
      %v717 = vadd.f32 %v428, %v701
      %v718 = vadd.f32 %v429, %v706
      %v719 = vadd.f32 %v430, %v709
      %s720 = scalar_lea.vmem %s5, %s27
      %v721 = vld [vmem:[%s720] sm:$0x1]
      %s722 = scalar_lea.vmem %s6, %s27
      %v723 = vld [vmem:[%s722] sm:$0x1]
      %724 = vadd.xlane.f32.xlu0 %v712
      %v725 = vpop.xlane.xlu0 %724
      %726 = vadd.xlane.f32.xlu0 %v713
      %v727 = vpop.xlane.xlu0 %726
      %728 = vadd.xlane.f32.xlu0 %v714
      %v729 = vpop.xlane.xlu0 %728
      %730 = vadd.xlane.f32.xlu0 %v715
      %v731 = vpop.xlane.xlu0 %730
      %732 = vadd.xlane.f32.xlu0 %v716
      %v733 = vpop.xlane.xlu0 %732
      %734 = vadd.xlane.f32.xlu0 %v717
      %v735 = vpop.xlane.xlu0 %734
      %736 = vadd.xlane.f32.xlu0 %v718
      %v737 = vpop.xlane.xlu0 %736
      %738 = vadd.xlane.f32.xlu0 %v719
      %v739 = vpop.xlane.xlu0 %738
      %v740 = vmul.f32 %v725, %v451
      %v741 = vmul.f32 %v727, %v451
      %v742 = vmul.f32 %v729, %v451
      %v743 = vmul.f32 %v731, %v451
      %v744 = vmul.f32 %v733, %v451
      %v745 = vmul.f32 %v735, %v451
      %v746 = vmul.f32 %v737, %v451
      %v747 = vmul.f32 %v739, %v451
      %v748 = vmul.f32 %v712, %v712
      %v749 = vmul.f32 %v713, %v713
      %v750 = vmul.f32 %v714, %v714
      %v751 = vmul.f32 %v715, %v715
      %v752 = vmul.f32 %v716, %v716
      %v753 = vmul.f32 %v717, %v717
      %v754 = vmul.f32 %v718, %v718
      %v755 = vmul.f32 %v719, %v719
      %756 = vadd.xlane.f32.xlu0 %v748
      %v757 = vpop.xlane.xlu0 %756
      %758 = vadd.xlane.f32.xlu0 %v749
      %v759 = vpop.xlane.xlu0 %758
      %760 = vadd.xlane.f32.xlu0 %v750
      %v761 = vpop.xlane.xlu0 %760
      %762 = vadd.xlane.f32.xlu0 %v751
      %v763 = vpop.xlane.xlu0 %762
      %764 = vadd.xlane.f32.xlu0 %v752
      %v765 = vpop.xlane.xlu0 %764
      %766 = vadd.xlane.f32.xlu0 %v753
      %v767 = vpop.xlane.xlu0 %766
      %768 = vadd.xlane.f32.xlu0 %v754
      %v769 = vpop.xlane.xlu0 %768
      %770 = vadd.xlane.f32.xlu0 %v755
      %v771 = vpop.xlane.xlu0 %770
      %v772 = vmul.f32 %v757, %v451
      %v773 = vmul.f32 %v759, %v451
      %v774 = vmul.f32 %v761, %v451
      %v775 = vmul.f32 %v763, %v451
      %v776 = vmul.f32 %v765, %v451
      %v777 = vmul.f32 %v767, %v451
      %v778 = vmul.f32 %v769, %v451
      %v779 = vmul.f32 %v771, %v451
      %v780 = vmul.f32 %v740, %v740
      %v781 = vmul.f32 %v741, %v741
      %v782 = vmul.f32 %v742, %v742
      %v783 = vmul.f32 %v743, %v743
      %v784 = vmul.f32 %v744, %v744
      %v785 = vmul.f32 %v745, %v745
      %v786 = vmul.f32 %v746, %v746
      %v787 = vmul.f32 %v747, %v747
      %v788 = vsub.f32 %v772, %v780
      %v789 = vsub.f32 %v773, %v781
      %v790 = vsub.f32 %v774, %v782
      %v791 = vsub.f32 %v775, %v783
      %v792 = vsub.f32 %v776, %v784
      %v793 = vsub.f32 %v777, %v785
      %v794 = vsub.f32 %v778, %v786
      %v795 = vsub.f32 %v779, %v787
      %v796 = vadd.f32 %v788, 1e-05
      %v797 = vadd.f32 %v789, 1e-05
      %v798 = vadd.f32 %v790, 1e-05
      %v799 = vadd.f32 %v791, 1e-05
      %v800 = vadd.f32 %v792, 1e-05
      %v801 = vadd.f32 %v793, 1e-05
      %v802 = vadd.f32 %v794, 1e-05
      %v803 = vadd.f32 %v795, 1e-05
      %v804 = vrsqrt.pop %v796
      %v805 = vrsqrt.pop %v797
      %v806 = vrsqrt.pop %v798
      %v807 = vrsqrt.pop %v799
      %v808 = vrsqrt.pop %v800
      %v809 = vrsqrt.pop %v801
      %v810 = vrsqrt.pop %v802
      %v811 = vrsqrt.pop %v803
      %v812 = vsub.f32 %v712, %v740
      %v813 = vsub.f32 %v713, %v741
      %v814 = vsub.f32 %v714, %v742
      %v815 = vsub.f32 %v715, %v743
      %v816 = vsub.f32 %v716, %v744
      %v817 = vsub.f32 %v717, %v745
      %v818 = vsub.f32 %v718, %v746
      %v819 = vsub.f32 %v719, %v747
      %v820 = vmul.f32 %v812, %v804
      %v821 = vmul.f32 %v813, %v805
      %v822 = vmul.f32 %v814, %v806
      %v823 = vmul.f32 %v815, %v807
      %v824 = vmul.f32 %v816, %v808
      %v825 = vmul.f32 %v817, %v809
      %v826 = vmul.f32 %v818, %v810
      %v827 = vmul.f32 %v819, %v811
      %v829 = vlaneseq
      %v830 = vshrl.u32 %v829, 7
      %v831 = vsub.s32 0, %v830
      %v832 = vrot.slane %v721, %v831
      %v834 = vmul.f32 %v820, %v832
      %v835 = vmul.f32 %v821, %v832
      %v836 = vmul.f32 %v822, %v832
      %v837 = vmul.f32 %v823, %v832
      %v838 = vmul.f32 %v824, %v832
      %v839 = vmul.f32 %v825, %v832
      %v840 = vmul.f32 %v826, %v832
      %v841 = vmul.f32 %v827, %v832
      %v843 = vlaneseq
      %v844 = vshrl.u32 %v843, 7
      %v845 = vsub.s32 0, %v844
      %v846 = vrot.slane %v723, %v845
      %v848 = vadd.f32 %v834, %v846
      %v849 = vadd.f32 %v835, %v846
      %v850 = vadd.f32 %v836, %v846
      %v851 = vadd.f32 %v837, %v846
      %v852 = vadd.f32 %v838, %v846
      %v853 = vadd.f32 %v839, %v846
      %v854 = vadd.f32 %v840, %v846
      %v855 = vadd.f32 %v841, %v846
      %v856 = vpack.c.bf16 %v849, %v848
      %v857 = vpack.c.bf16 %v851, %v850
      %v858 = vpack.c.bf16 %v853, %v852
      %v859 = vpack.c.bf16 %v855, %v854
      %s860 = smul.u32 %s27, 64
      %s861 = smul.addr %s860, 4
      %s862 = scalar_lea.vmem %s7, %s861
      %v863 = vld [vmem:[%s862] sm:$0xff]
      %v864 = vld [vmem:[%s862 + $0x8] sm:$0xff]
      %v865 = vld [vmem:[%s862 + $0x10] sm:$0xff]
      %v866 = vld [vmem:[%s862 + $0x18] sm:$0xff]
      %v867 = vld [vmem:[%s862 + $0x20] sm:$0xff]
      %v868 = vld [vmem:[%s862 + $0x28] sm:$0xff]
      %v869 = vld [vmem:[%s862 + $0x30] sm:$0xff]
      %v870 = vld [vmem:[%s862 + $0x38] sm:$0xff]
      %v871 = vld [vmem:[%s862 + $0x40] sm:$0xff]
      %v872 = vld [vmem:[%s862 + $0x48] sm:$0xff]
      %v873 = vld [vmem:[%s862 + $0x50] sm:$0xff]
      %v874 = vld [vmem:[%s862 + $0x58] sm:$0xff]
      %v875 = vld [vmem:[%s862 + $0x60] sm:$0xff]
      %v876 = vld [vmem:[%s862 + $0x68] sm:$0xff]
      %v877 = vld [vmem:[%s862 + $0x70] sm:$0xff]
      %v878 = vld [vmem:[%s862 + $0x78] sm:$0xff]
      %v879 = vld [vmem:[%s862 + $0x80] sm:$0xff]
      %v880 = vld [vmem:[%s862 + $0x88] sm:$0xff]
      %v881 = vld [vmem:[%s862 + $0x90] sm:$0xff]
      %v882 = vld [vmem:[%s862 + $0x98] sm:$0xff]
      %v883 = vld [vmem:[%s862 + $0xa0] sm:$0xff]
      %v884 = vld [vmem:[%s862 + $0xa8] sm:$0xff]
      %v885 = vld [vmem:[%s862 + $0xb0] sm:$0xff]
      %v886 = vld [vmem:[%s862 + $0xb8] sm:$0xff]
      %v887 = vld [vmem:[%s862 + $0xc0] sm:$0xff]
      %v888 = vld [vmem:[%s862 + $0xc8] sm:$0xff]
      %v889 = vld [vmem:[%s862 + $0xd0] sm:$0xff]
      %v890 = vld [vmem:[%s862 + $0xd8] sm:$0xff]
      %v891 = vld [vmem:[%s862 + $0xe0] sm:$0xff]
      %v892 = vld [vmem:[%s862 + $0xe8] sm:$0xff]
      %v893 = vld [vmem:[%s862 + $0xf0] sm:$0xff]
      %v894 = vld [vmem:[%s862 + $0xf8] sm:$0xff]
      %s895 = smul.u32 %s27, 4
      %s896 = scalar_lea.vmem %s8, %s895
      %v897 = vld [vmem:[%s896] sm:$0xf]
      %v899 = vlaneseq
      %v900 = vshrl.u32 %v899, 7
      %v901 = vsub.s32 0, %v900
      %v902 = vrot.slane %v897, %v901
      %v903 = vlaneseq
      %v904 = vshrl.u32 %v903, 7
      %v905 = vsub.s32 1, %v904
      %v906 = vrot.slane %v897, %v905
      %v907 = vlaneseq
      %v908 = vshrl.u32 %v907, 7
      %v909 = vsub.s32 2, %v908
      %v910 = vrot.slane %v897, %v909
      %v911 = vlaneseq
      %v912 = vshrl.u32 %v911, 7
      %v913 = vsub.s32 3, %v912
      %v914 = vrot.slane %v897, %v913
      %v951 = vunpack.c.l.b16 %v863
      %v952 = vunpack.c.h.b16 %v863
      %v953 = vunpack.c.l.b16 %v864
      %v954 = vunpack.c.h.b16 %v864
      %v955 = vunpack.c.l.b16 %v865
      %v956 = vunpack.c.h.b16 %v865
      %v957 = vunpack.c.l.b16 %v866
      %v958 = vunpack.c.h.b16 %v866
      %v959 = vunpack.c.l.b16 %v867
      %v960 = vunpack.c.h.b16 %v867
      %v961 = vunpack.c.l.b16 %v868
      %v962 = vunpack.c.h.b16 %v868
      %v963 = vunpack.c.l.b16 %v869
      %v964 = vunpack.c.h.b16 %v869
      %v965 = vunpack.c.l.b16 %v870
      %v966 = vunpack.c.h.b16 %v870
      %v967 = vunpack.c.l.b16 %v871
      %v968 = vunpack.c.h.b16 %v871
      %v969 = vunpack.c.l.b16 %v872
      %v970 = vunpack.c.h.b16 %v872
      %v971 = vunpack.c.l.b16 %v873
      %v972 = vunpack.c.h.b16 %v873
      %v973 = vunpack.c.l.b16 %v874
      %v974 = vunpack.c.h.b16 %v874
      %v975 = vunpack.c.l.b16 %v875
      %v976 = vunpack.c.h.b16 %v875
      %v977 = vunpack.c.l.b16 %v876
      %v978 = vunpack.c.h.b16 %v876
      %v979 = vunpack.c.l.b16 %v877
      %v980 = vunpack.c.h.b16 %v877
      %v981 = vunpack.c.l.b16 %v878
      %v982 = vunpack.c.h.b16 %v878
      %v983 = vunpack.c.l.b16 %v879
      %v984 = vunpack.c.h.b16 %v879
      %v985 = vunpack.c.l.b16 %v880
      %v986 = vunpack.c.h.b16 %v880
      %v987 = vunpack.c.l.b16 %v881
      %v988 = vunpack.c.h.b16 %v881
      %v989 = vunpack.c.l.b16 %v882
      %v990 = vunpack.c.h.b16 %v882
      %v991 = vunpack.c.l.b16 %v883
      %v992 = vunpack.c.h.b16 %v883
      %v993 = vunpack.c.l.b16 %v884
      %v994 = vunpack.c.h.b16 %v884
      %v995 = vunpack.c.l.b16 %v885
      %v996 = vunpack.c.h.b16 %v885
      %v997 = vunpack.c.l.b16 %v886
      %v998 = vunpack.c.h.b16 %v886
      %v999 = vunpack.c.l.b16 %v887
      %v1000 = vunpack.c.h.b16 %v887
      %v1001 = vunpack.c.l.b16 %v888
      %v1002 = vunpack.c.h.b16 %v888
      %v1003 = vunpack.c.l.b16 %v889
      %v1004 = vunpack.c.h.b16 %v889
      %v1005 = vunpack.c.l.b16 %v890
      %v1006 = vunpack.c.h.b16 %v890
      %v1007 = vunpack.c.l.b16 %v891
      %v1008 = vunpack.c.h.b16 %v891
      %v1009 = vunpack.c.l.b16 %v892
      %v1010 = vunpack.c.h.b16 %v892
      %v1011 = vunpack.c.l.b16 %v893
      %v1012 = vunpack.c.h.b16 %v893
      %v1013 = vunpack.c.l.b16 %v894
      %v1014 = vunpack.c.h.b16 %v894
      %v1015 = vpack.c.b16 %v955, %v951
      %v1016 = vpack.c.b16 %v956, %v952
      %v1017 = vpack.c.b16 %v957, %v953
      %v1018 = vpack.c.b16 %v958, %v954
      %v1019 = vpack.c.b16 %v963, %v959
      %v1020 = vpack.c.b16 %v964, %v960
      %v1021 = vpack.c.b16 %v965, %v961
      %v1022 = vpack.c.b16 %v966, %v962
      %v1023 = vpack.c.b16 %v971, %v967
      %v1024 = vpack.c.b16 %v972, %v968
      %v1025 = vpack.c.b16 %v973, %v969
      %v1026 = vpack.c.b16 %v974, %v970
      %v1027 = vpack.c.b16 %v979, %v975
      %v1028 = vpack.c.b16 %v980, %v976
      %v1029 = vpack.c.b16 %v981, %v977
      %v1030 = vpack.c.b16 %v982, %v978
      %v1031 = vpack.c.b16 %v987, %v983
      %v1032 = vpack.c.b16 %v988, %v984
      %v1033 = vpack.c.b16 %v989, %v985
      %v1034 = vpack.c.b16 %v990, %v986
      %v1035 = vpack.c.b16 %v995, %v991
      %v1036 = vpack.c.b16 %v996, %v992
      %v1037 = vpack.c.b16 %v997, %v993
      %v1038 = vpack.c.b16 %v998, %v994
      %v1039 = vpack.c.b16 %v1003, %v999
      %v1040 = vpack.c.b16 %v1004, %v1000
      %v1041 = vpack.c.b16 %v1005, %v1001
      %v1042 = vpack.c.b16 %v1006, %v1002
      %v1043 = vpack.c.b16 %v1011, %v1007
      %v1044 = vpack.c.b16 %v1012, %v1008
      %v1045 = vpack.c.b16 %v1013, %v1009
      %v1046 = vpack.c.b16 %v1014, %v1010
      %1079 = vmatprep.subr.bf16.mxu0 %v1044
      %1080 = vmatpush1.bf16.msra.mxu0 %v1043
      %1081 = vmatprep.subr.bf16.mxu0 %v1040
      %1082 = vmatpush1.bf16.msra.mxu0 %v1039
      %1083 = vmatprep.subr.bf16.mxu0 %v1036
      %1084 = vmatpush1.bf16.msra.mxu0 %v1035
      %1085 = vmatprep.subr.bf16.mxu0 %v1032
      %1086 = vmatpush1.bf16.msra.mxu0 %v1031
      %1087 = vmatprep.subr.bf16.mxu0 %v1028
      %1088 = vmatpush1.bf16.msra.mxu0 %v1027
      %1089 = vmatprep.subr.bf16.mxu0 %v1024
      %1090 = vmatpush1.bf16.msra.mxu0 %v1023
      %1091 = vmatprep.subr.bf16.mxu0 %v1020
      %1092 = vmatpush1.bf16.msra.mxu0 %v1019
      %1093 = vmatprep.subr.bf16.mxu0 %v1016
      %1094 = vmatpush1.bf16.msra.mxu0 %v1015
      %1095 = vmatprep.subr.bf16.mxu0 0
      %1096 = vmatpush2.bf16.msra.mxu0 0
      %1097 = vmatprep.subr.bf16.mxu0 0
      %1098 = vmatpush2.bf16.msra.mxu0 0
      %1099 = vmatprep.subr.bf16.mxu0 0
      %1100 = vmatpush2.bf16.msra.mxu0 0
      %1101 = vmatprep.subr.bf16.mxu0 0
      %1102 = vmatpush2.bf16.msra.mxu0 0
      %1103 = vmatprep.subr.bf16.mxu0 0
      %1104 = vmatpush2.bf16.msra.mxu0 0
      %1105 = vmatprep.subr.bf16.mxu0 0
      %1106 = vmatpush2.bf16.msra.mxu0 0
      %1107 = vmatprep.subr.bf16.mxu0 0
      %1108 = vmatpush2.bf16.msra.mxu0 0
      %1109 = vmatprep.subr.bf16.mxu0 0
      %1110 = vmatpush2.bf16.msra.mxu0 0
      %1111 = vmatprep.mubr.bf16.mxu0 0
      %1112 = vmatmul.mubr.bf16.gmra.mxu0 %v856
      %v1113 = vpop.f32.mrf.mxu0
      %v1114 = vadd.f32 %v902, %v1113
      %v1115 = vpop.f32.mrf.mxu0
      %v1116 = vadd.f32 %v906, %v1115
      %v1117 = vpop.f32.mrf.mxu0
      %v1118 = vadd.f32 %v902, %v1117
      %v1119 = vpop.f32.mrf.mxu0
      %v1120 = vadd.f32 %v906, %v1119
      %1121 = vmatprep.mubr.bf16.mxu0 0
      %1122 = vmatmul.mubr.bf16.gmra.mxu0 %v857
      %v1123 = vpop.f32.mrf.mxu0
      %v1124 = vadd.f32 %v902, %v1123
      %v1125 = vpop.f32.mrf.mxu0
      %v1126 = vadd.f32 %v906, %v1125
      %v1127 = vpop.f32.mrf.mxu0
      %v1128 = vadd.f32 %v902, %v1127
      %v1129 = vpop.f32.mrf.mxu0
      %v1130 = vadd.f32 %v906, %v1129
      %1131 = vmatprep.mubr.bf16.mxu0 0
      %1132 = vmatmul.mubr.bf16.gmra.mxu0 %v858
      %v1133 = vpop.f32.mrf.mxu0
      %v1134 = vadd.f32 %v902, %v1133
      %v1135 = vpop.f32.mrf.mxu0
      %v1136 = vadd.f32 %v906, %v1135
      %v1137 = vpop.f32.mrf.mxu0
      %v1138 = vadd.f32 %v902, %v1137
      %v1139 = vpop.f32.mrf.mxu0
      %v1140 = vadd.f32 %v906, %v1139
      %1141 = vmatprep.mubr.bf16.mxu0 0
      %1142 = vmatmul.mubr.bf16.gmra.mxu0 %v859
      %v1143 = vpop.f32.mrf.mxu0
      %v1144 = vadd.f32 %v902, %v1143
      %v1145 = vpop.f32.mrf.mxu0
      %v1146 = vadd.f32 %v906, %v1145
      %v1147 = vpop.f32.mrf.mxu0
      %v1148 = vadd.f32 %v902, %v1147
      %v1149 = vpop.f32.mrf.mxu0
      %v1150 = vadd.f32 %v906, %v1149
      %1151 = vdwg.mxu0
      %1152 = vmatprep.subr.bf16.mxu0 %v1046
      %1153 = vmatpush1.bf16.msra.mxu0 %v1045
      %1154 = vmatprep.subr.bf16.mxu0 %v1042
      %1155 = vmatpush1.bf16.msra.mxu0 %v1041
      %1156 = vmatprep.subr.bf16.mxu0 %v1038
      %1157 = vmatpush1.bf16.msra.mxu0 %v1037
      %1158 = vmatprep.subr.bf16.mxu0 %v1034
      %1159 = vmatpush1.bf16.msra.mxu0 %v1033
      %1160 = vmatprep.subr.bf16.mxu0 %v1030
      %1161 = vmatpush1.bf16.msra.mxu0 %v1029
      %1162 = vmatprep.subr.bf16.mxu0 %v1026
      %1163 = vmatpush1.bf16.msra.mxu0 %v1025
      %1164 = vmatprep.subr.bf16.mxu0 %v1022
      %1165 = vmatpush1.bf16.msra.mxu0 %v1021
      %1166 = vmatprep.subr.bf16.mxu0 %v1018
      %1167 = vmatpush1.bf16.msra.mxu0 %v1017
      %1168 = vmatprep.subr.bf16.mxu0 0
      %1169 = vmatpush2.bf16.msra.mxu0 0
      %1170 = vmatprep.subr.bf16.mxu0 0
      %1171 = vmatpush2.bf16.msra.mxu0 0
      %1172 = vmatprep.subr.bf16.mxu0 0
      %1173 = vmatpush2.bf16.msra.mxu0 0
      %1174 = vmatprep.subr.bf16.mxu0 0
      %1175 = vmatpush2.bf16.msra.mxu0 0
      %1176 = vmatprep.subr.bf16.mxu0 0
      %1177 = vmatpush2.bf16.msra.mxu0 0
      %1178 = vmatprep.subr.bf16.mxu0 0
      %1179 = vmatpush2.bf16.msra.mxu0 0
      %1180 = vmatprep.subr.bf16.mxu0 0
      %1181 = vmatpush2.bf16.msra.mxu0 0
      %1182 = vmatprep.subr.bf16.mxu0 0
      %1183 = vmatpush2.bf16.msra.mxu0 0
      %1184 = vmatprep.mubr.bf16.mxu0 0
      %1185 = vmatmul.mubr.bf16.gmra.mxu0 %v856
      %v1186 = vpop.f32.mrf.mxu0
      %v1187 = vadd.f32 %v910, %v1186
      %v1188 = vpop.f32.mrf.mxu0
      %v1189 = vadd.f32 %v914, %v1188
      %v1190 = vpop.f32.mrf.mxu0
      %v1191 = vadd.f32 %v910, %v1190
      %v1192 = vpop.f32.mrf.mxu0
      %v1193 = vadd.f32 %v914, %v1192
      %1194 = vmatprep.mubr.bf16.mxu0 0
      %1195 = vmatmul.mubr.bf16.gmra.mxu0 %v857
      %v1196 = vpop.f32.mrf.mxu0
      %v1197 = vadd.f32 %v910, %v1196
      %v1198 = vpop.f32.mrf.mxu0
      %v1199 = vadd.f32 %v914, %v1198
      %v1200 = vpop.f32.mrf.mxu0
      %v1201 = vadd.f32 %v910, %v1200
      %v1202 = vpop.f32.mrf.mxu0
      %v1203 = vadd.f32 %v914, %v1202
      %1204 = vmatprep.mubr.bf16.mxu0 0
      %1205 = vmatmul.mubr.bf16.gmra.mxu0 %v858
      %v1206 = vpop.f32.mrf.mxu0
      %v1207 = vadd.f32 %v910, %v1206
      %v1208 = vpop.f32.mrf.mxu0
      %v1209 = vadd.f32 %v914, %v1208
      %v1210 = vpop.f32.mrf.mxu0
      %v1211 = vadd.f32 %v910, %v1210
      %v1212 = vpop.f32.mrf.mxu0
      %v1213 = vadd.f32 %v914, %v1212
      %1214 = vmatprep.mubr.bf16.mxu0 0
      %1215 = vmatmul.mubr.bf16.gmra.mxu0 %v859
      %v1216 = vpop.f32.mrf.mxu0
      %v1217 = vadd.f32 %v910, %v1216
      %v1218 = vpop.f32.mrf.mxu0
      %v1219 = vadd.f32 %v914, %v1218
      %v1220 = vpop.f32.mrf.mxu0
      %v1221 = vadd.f32 %v910, %v1220
      %v1222 = vpop.f32.mrf.mxu0
      %v1223 = vadd.f32 %v914, %v1222
      %1224 = vdwg.mxu0
      %v1225 = vmul.f32 %v1114, %v1114
      %v1226 = vmul.f32 %v1116, %v1116
      %v1227 = vmul.f32 %v1187, %v1187
      %v1228 = vmul.f32 %v1189, %v1189
      %v1229 = vmul.f32 %v1118, %v1118
      %v1230 = vmul.f32 %v1120, %v1120
      %v1231 = vmul.f32 %v1191, %v1191
      %v1232 = vmul.f32 %v1193, %v1193
      %v1233 = vmul.f32 %v1124, %v1124
      %v1234 = vmul.f32 %v1126, %v1126
      %v1235 = vmul.f32 %v1197, %v1197
      %v1236 = vmul.f32 %v1199, %v1199
      %v1237 = vmul.f32 %v1128, %v1128
      %v1238 = vmul.f32 %v1130, %v1130
      %v1239 = vmul.f32 %v1201, %v1201
      %v1240 = vmul.f32 %v1203, %v1203
      %v1241 = vmul.f32 %v1134, %v1134
      %v1242 = vmul.f32 %v1136, %v1136
      %v1243 = vmul.f32 %v1207, %v1207
      %v1244 = vmul.f32 %v1209, %v1209
      %v1245 = vmul.f32 %v1138, %v1138
      %v1246 = vmul.f32 %v1140, %v1140
      %v1247 = vmul.f32 %v1211, %v1211
      %v1248 = vmul.f32 %v1213, %v1213
      %v1249 = vmul.f32 %v1144, %v1144
      %v1250 = vmul.f32 %v1146, %v1146
      %v1251 = vmul.f32 %v1217, %v1217
      %v1252 = vmul.f32 %v1219, %v1219
      %v1253 = vmul.f32 %v1148, %v1148
      %v1254 = vmul.f32 %v1150, %v1150
      %v1255 = vmul.f32 %v1221, %v1221
      %v1256 = vmul.f32 %v1223, %v1223
      %v1257 = vmul.f32 %v1114, %v1225
      %v1258 = vmul.f32 %v1116, %v1226
      %v1259 = vmul.f32 %v1187, %v1227
      %v1260 = vmul.f32 %v1189, %v1228
      %v1261 = vmul.f32 %v1118, %v1229
      %v1262 = vmul.f32 %v1120, %v1230
      %v1263 = vmul.f32 %v1191, %v1231
      %v1264 = vmul.f32 %v1193, %v1232
      %v1265 = vmul.f32 %v1124, %v1233
      %v1266 = vmul.f32 %v1126, %v1234
      %v1267 = vmul.f32 %v1197, %v1235
      %v1268 = vmul.f32 %v1199, %v1236
      %v1269 = vmul.f32 %v1128, %v1237
      %v1270 = vmul.f32 %v1130, %v1238
      %v1271 = vmul.f32 %v1201, %v1239
      %v1272 = vmul.f32 %v1203, %v1240
      %v1273 = vmul.f32 %v1134, %v1241
      %v1274 = vmul.f32 %v1136, %v1242
      %v1275 = vmul.f32 %v1207, %v1243
      %v1276 = vmul.f32 %v1209, %v1244
      %v1277 = vmul.f32 %v1138, %v1245
      %v1278 = vmul.f32 %v1140, %v1246
      %v1279 = vmul.f32 %v1211, %v1247
      %v1280 = vmul.f32 %v1213, %v1248
      %v1281 = vmul.f32 %v1144, %v1249
      %v1282 = vmul.f32 %v1146, %v1250
      %v1283 = vmul.f32 %v1217, %v1251
      %v1284 = vmul.f32 %v1219, %v1252
      %v1285 = vmul.f32 %v1148, %v1253
      %v1286 = vmul.f32 %v1150, %v1254
      %v1287 = vmul.f32 %v1221, %v1255
      %v1288 = vmul.f32 %v1223, %v1256
      %v1289 = vmul.f32 %v1257, 0.044715
      %v1290 = vmul.f32 %v1258, 0.044715
      %v1291 = vmul.f32 %v1259, 0.044715
      %v1292 = vmul.f32 %v1260, 0.044715
      %v1293 = vmul.f32 %v1261, 0.044715
      %v1294 = vmul.f32 %v1262, 0.044715
      %v1295 = vmul.f32 %v1263, 0.044715
      %v1296 = vmul.f32 %v1264, 0.044715
      %v1297 = vmul.f32 %v1265, 0.044715
      %v1298 = vmul.f32 %v1266, 0.044715
      %v1299 = vmul.f32 %v1267, 0.044715
      %v1300 = vmul.f32 %v1268, 0.044715
      %v1301 = vmul.f32 %v1269, 0.044715
      %v1302 = vmul.f32 %v1270, 0.044715
      %v1303 = vmul.f32 %v1271, 0.044715
      %v1304 = vmul.f32 %v1272, 0.044715
      %v1305 = vmul.f32 %v1273, 0.044715
      %v1306 = vmul.f32 %v1274, 0.044715
      %v1307 = vmul.f32 %v1275, 0.044715
      %v1308 = vmul.f32 %v1276, 0.044715
      %v1309 = vmul.f32 %v1277, 0.044715
      %v1310 = vmul.f32 %v1278, 0.044715
      %v1311 = vmul.f32 %v1279, 0.044715
      %v1312 = vmul.f32 %v1280, 0.044715
      %v1313 = vmul.f32 %v1281, 0.044715
      %v1314 = vmul.f32 %v1282, 0.044715
      %v1315 = vmul.f32 %v1283, 0.044715
      %v1316 = vmul.f32 %v1284, 0.044715
      %v1317 = vmul.f32 %v1285, 0.044715
      %v1318 = vmul.f32 %v1286, 0.044715
      %v1319 = vmul.f32 %v1287, 0.044715
      %v1320 = vmul.f32 %v1288, 0.044715
      %v1321 = vadd.f32 %v1114, %v1289
      %v1322 = vadd.f32 %v1116, %v1290
      %v1323 = vadd.f32 %v1187, %v1291
      %v1324 = vadd.f32 %v1189, %v1292
      %v1325 = vadd.f32 %v1118, %v1293
      %v1326 = vadd.f32 %v1120, %v1294
      %v1327 = vadd.f32 %v1191, %v1295
      %v1328 = vadd.f32 %v1193, %v1296
      %v1329 = vadd.f32 %v1124, %v1297
      %v1330 = vadd.f32 %v1126, %v1298
      %v1331 = vadd.f32 %v1197, %v1299
      %v1332 = vadd.f32 %v1199, %v1300
      %v1333 = vadd.f32 %v1128, %v1301
      %v1334 = vadd.f32 %v1130, %v1302
      %v1335 = vadd.f32 %v1201, %v1303
      %v1336 = vadd.f32 %v1203, %v1304
      %v1337 = vadd.f32 %v1134, %v1305
      %v1338 = vadd.f32 %v1136, %v1306
      %v1339 = vadd.f32 %v1207, %v1307
      %v1340 = vadd.f32 %v1209, %v1308
      %v1341 = vadd.f32 %v1138, %v1309
      %v1342 = vadd.f32 %v1140, %v1310
      %v1343 = vadd.f32 %v1211, %v1311
      %v1344 = vadd.f32 %v1213, %v1312
      %v1345 = vadd.f32 %v1144, %v1313
      %v1346 = vadd.f32 %v1146, %v1314
      %v1347 = vadd.f32 %v1217, %v1315
      %v1348 = vadd.f32 %v1219, %v1316
      %v1349 = vadd.f32 %v1148, %v1317
      %v1350 = vadd.f32 %v1150, %v1318
      %v1351 = vadd.f32 %v1221, %v1319
      %v1352 = vadd.f32 %v1223, %v1320
      %v1353 = vmul.f32 %v1321, 0.7978846
      %v1354 = vmul.f32 %v1322, 0.7978846
      %v1355 = vmul.f32 %v1323, 0.7978846
      %v1356 = vmul.f32 %v1324, 0.7978846
      %v1357 = vmul.f32 %v1325, 0.7978846
      %v1358 = vmul.f32 %v1326, 0.7978846
      %v1359 = vmul.f32 %v1327, 0.7978846
      %v1360 = vmul.f32 %v1328, 0.7978846
      %v1361 = vmul.f32 %v1329, 0.7978846
      %v1362 = vmul.f32 %v1330, 0.7978846
      %v1363 = vmul.f32 %v1331, 0.7978846
      %v1364 = vmul.f32 %v1332, 0.7978846
      %v1365 = vmul.f32 %v1333, 0.7978846
      %v1366 = vmul.f32 %v1334, 0.7978846
      %v1367 = vmul.f32 %v1335, 0.7978846
      %v1368 = vmul.f32 %v1336, 0.7978846
      %v1369 = vmul.f32 %v1337, 0.7978846
      %v1370 = vmul.f32 %v1338, 0.7978846
      %v1371 = vmul.f32 %v1339, 0.7978846
      %v1372 = vmul.f32 %v1340, 0.7978846
      %v1373 = vmul.f32 %v1341, 0.7978846
      %v1374 = vmul.f32 %v1342, 0.7978846
      %v1375 = vmul.f32 %v1343, 0.7978846
      %v1376 = vmul.f32 %v1344, 0.7978846
      %v1377 = vmul.f32 %v1345, 0.7978846
      %v1378 = vmul.f32 %v1346, 0.7978846
      %v1379 = vmul.f32 %v1347, 0.7978846
      %v1380 = vmul.f32 %v1348, 0.7978846
      %v1381 = vmul.f32 %v1349, 0.7978846
      %v1382 = vmul.f32 %v1350, 0.7978846
      %v1383 = vmul.f32 %v1351, 0.7978846
      %v1384 = vmul.f32 %v1352, 0.7978846
      %v1385 = vtanh.pop %v1353
      %v1386 = vtanh.pop %v1354
      %v1387 = vtanh.pop %v1355
      %v1388 = vtanh.pop %v1356
      %v1389 = vtanh.pop %v1357
      %v1390 = vtanh.pop %v1358
      %v1391 = vtanh.pop %v1359
      %v1392 = vtanh.pop %v1360
      %v1393 = vtanh.pop %v1361
      %v1394 = vtanh.pop %v1362
      %v1395 = vtanh.pop %v1363
      %v1396 = vtanh.pop %v1364
      %v1397 = vtanh.pop %v1365
      %v1398 = vtanh.pop %v1366
      %v1399 = vtanh.pop %v1367
      %v1400 = vtanh.pop %v1368
      %v1401 = vtanh.pop %v1369
      %v1402 = vtanh.pop %v1370
      %v1403 = vtanh.pop %v1371
      %v1404 = vtanh.pop %v1372
      %v1405 = vtanh.pop %v1373
      %v1406 = vtanh.pop %v1374
      %v1407 = vtanh.pop %v1375
      %v1408 = vtanh.pop %v1376
      %v1409 = vtanh.pop %v1377
      %v1410 = vtanh.pop %v1378
      %v1411 = vtanh.pop %v1379
      %v1412 = vtanh.pop %v1380
      %v1413 = vtanh.pop %v1381
      %v1414 = vtanh.pop %v1382
      %v1415 = vtanh.pop %v1383
      %v1416 = vtanh.pop %v1384
      %v1417 = vadd.f32 %v1385, 1.0
      %v1418 = vadd.f32 %v1386, 1.0
      %v1419 = vadd.f32 %v1387, 1.0
      %v1420 = vadd.f32 %v1388, 1.0
      %v1421 = vadd.f32 %v1389, 1.0
      %v1422 = vadd.f32 %v1390, 1.0
      %v1423 = vadd.f32 %v1391, 1.0
      %v1424 = vadd.f32 %v1392, 1.0
      %v1425 = vadd.f32 %v1393, 1.0
      %v1426 = vadd.f32 %v1394, 1.0
      %v1427 = vadd.f32 %v1395, 1.0
      %v1428 = vadd.f32 %v1396, 1.0
      %v1429 = vadd.f32 %v1397, 1.0
      %v1430 = vadd.f32 %v1398, 1.0
      %v1431 = vadd.f32 %v1399, 1.0
      %v1432 = vadd.f32 %v1400, 1.0
      %v1433 = vadd.f32 %v1401, 1.0
      %v1434 = vadd.f32 %v1402, 1.0
      %v1435 = vadd.f32 %v1403, 1.0
      %v1436 = vadd.f32 %v1404, 1.0
      %v1437 = vadd.f32 %v1405, 1.0
      %v1438 = vadd.f32 %v1406, 1.0
      %v1439 = vadd.f32 %v1407, 1.0
      %v1440 = vadd.f32 %v1408, 1.0
      %v1441 = vadd.f32 %v1409, 1.0
      %v1442 = vadd.f32 %v1410, 1.0
      %v1443 = vadd.f32 %v1411, 1.0
      %v1444 = vadd.f32 %v1412, 1.0
      %v1445 = vadd.f32 %v1413, 1.0
      %v1446 = vadd.f32 %v1414, 1.0
      %v1447 = vadd.f32 %v1415, 1.0
      %v1448 = vadd.f32 %v1416, 1.0
      %v1449 = vmul.f32 %v1417, 0.5
      %v1450 = vmul.f32 %v1418, 0.5
      %v1451 = vmul.f32 %v1419, 0.5
      %v1452 = vmul.f32 %v1420, 0.5
      %v1453 = vmul.f32 %v1421, 0.5
      %v1454 = vmul.f32 %v1422, 0.5
      %v1455 = vmul.f32 %v1423, 0.5
      %v1456 = vmul.f32 %v1424, 0.5
      %v1457 = vmul.f32 %v1425, 0.5
      %v1458 = vmul.f32 %v1426, 0.5
      %v1459 = vmul.f32 %v1427, 0.5
      %v1460 = vmul.f32 %v1428, 0.5
      %v1461 = vmul.f32 %v1429, 0.5
      %v1462 = vmul.f32 %v1430, 0.5
      %v1463 = vmul.f32 %v1431, 0.5
      %v1464 = vmul.f32 %v1432, 0.5
      %v1465 = vmul.f32 %v1433, 0.5
      %v1466 = vmul.f32 %v1434, 0.5
      %v1467 = vmul.f32 %v1435, 0.5
      %v1468 = vmul.f32 %v1436, 0.5
      %v1469 = vmul.f32 %v1437, 0.5
      %v1470 = vmul.f32 %v1438, 0.5
      %v1471 = vmul.f32 %v1439, 0.5
      %v1472 = vmul.f32 %v1440, 0.5
      %v1473 = vmul.f32 %v1441, 0.5
      %v1474 = vmul.f32 %v1442, 0.5
      %v1475 = vmul.f32 %v1443, 0.5
      %v1476 = vmul.f32 %v1444, 0.5
      %v1477 = vmul.f32 %v1445, 0.5
      %v1478 = vmul.f32 %v1446, 0.5
      %v1479 = vmul.f32 %v1447, 0.5
      %v1480 = vmul.f32 %v1448, 0.5
      %v1481 = vmul.f32 %v1114, %v1449
      %v1482 = vmul.f32 %v1116, %v1450
      %v1483 = vmul.f32 %v1187, %v1451
      %v1484 = vmul.f32 %v1189, %v1452
      %v1485 = vmul.f32 %v1118, %v1453
      %v1486 = vmul.f32 %v1120, %v1454
      %v1487 = vmul.f32 %v1191, %v1455
      %v1488 = vmul.f32 %v1193, %v1456
      %v1489 = vmul.f32 %v1124, %v1457
      %v1490 = vmul.f32 %v1126, %v1458
      %v1491 = vmul.f32 %v1197, %v1459
      %v1492 = vmul.f32 %v1199, %v1460
      %v1493 = vmul.f32 %v1128, %v1461
      %v1494 = vmul.f32 %v1130, %v1462
      %v1495 = vmul.f32 %v1201, %v1463
      %v1496 = vmul.f32 %v1203, %v1464
      %v1497 = vmul.f32 %v1134, %v1465
      %v1498 = vmul.f32 %v1136, %v1466
      %v1499 = vmul.f32 %v1207, %v1467
      %v1500 = vmul.f32 %v1209, %v1468
      %v1501 = vmul.f32 %v1138, %v1469
      %v1502 = vmul.f32 %v1140, %v1470
      %v1503 = vmul.f32 %v1211, %v1471
      %v1504 = vmul.f32 %v1213, %v1472
      %v1505 = vmul.f32 %v1144, %v1473
      %v1506 = vmul.f32 %v1146, %v1474
      %v1507 = vmul.f32 %v1217, %v1475
      %v1508 = vmul.f32 %v1219, %v1476
      %v1509 = vmul.f32 %v1148, %v1477
      %v1510 = vmul.f32 %v1150, %v1478
      %v1511 = vmul.f32 %v1221, %v1479
      %v1512 = vmul.f32 %v1223, %v1480
      %v1513 = vpack.c.bf16 %v1485, %v1481
      %v1514 = vpack.c.bf16 %v1486, %v1482
      %v1515 = vpack.c.bf16 %v1487, %v1483
      %v1516 = vpack.c.bf16 %v1488, %v1484
      %v1517 = vpack.c.bf16 %v1493, %v1489
      %v1518 = vpack.c.bf16 %v1494, %v1490
      %v1519 = vpack.c.bf16 %v1495, %v1491
      %v1520 = vpack.c.bf16 %v1496, %v1492
      %v1521 = vpack.c.bf16 %v1501, %v1497
      %v1522 = vpack.c.bf16 %v1502, %v1498
      %v1523 = vpack.c.bf16 %v1503, %v1499
      %v1524 = vpack.c.bf16 %v1504, %v1500
      %v1525 = vpack.c.bf16 %v1509, %v1505
      %v1526 = vpack.c.bf16 %v1510, %v1506
      %v1527 = vpack.c.bf16 %v1511, %v1507
      %v1528 = vpack.c.bf16 %v1512, %v1508
      %s1529 = smul.addr %s860, 4
      %s1530 = scalar_lea.vmem %s9, %s1529
      %v1531 = vld [vmem:[%s1530] sm:$0xf]
      %v1532 = vld [vmem:[%s1530 + $0x4] sm:$0xf]
      %v1533 = vld [vmem:[%s1530 + $0x8] sm:$0xf]
      %v1534 = vld [vmem:[%s1530 + $0xc] sm:$0xf]
      %v1535 = vld [vmem:[%s1530 + $0x10] sm:$0xf]
      %v1536 = vld [vmem:[%s1530 + $0x14] sm:$0xf]
      %v1537 = vld [vmem:[%s1530 + $0x18] sm:$0xf]
      %v1538 = vld [vmem:[%s1530 + $0x1c] sm:$0xf]
      %v1539 = vld [vmem:[%s1530 + $0x20] sm:$0xf]
      %v1540 = vld [vmem:[%s1530 + $0x24] sm:$0xf]
      %v1541 = vld [vmem:[%s1530 + $0x28] sm:$0xf]
      %v1542 = vld [vmem:[%s1530 + $0x2c] sm:$0xf]
      %v1543 = vld [vmem:[%s1530 + $0x30] sm:$0xf]
      %v1544 = vld [vmem:[%s1530 + $0x34] sm:$0xf]
      %v1545 = vld [vmem:[%s1530 + $0x38] sm:$0xf]
      %v1546 = vld [vmem:[%s1530 + $0x3c] sm:$0xf]
      %v1547 = vld [vmem:[%s1530 + $0x40] sm:$0xf]
      %v1548 = vld [vmem:[%s1530 + $0x44] sm:$0xf]
      %v1549 = vld [vmem:[%s1530 + $0x48] sm:$0xf]
      %v1550 = vld [vmem:[%s1530 + $0x4c] sm:$0xf]
      %v1551 = vld [vmem:[%s1530 + $0x50] sm:$0xf]
      %v1552 = vld [vmem:[%s1530 + $0x54] sm:$0xf]
      %v1553 = vld [vmem:[%s1530 + $0x58] sm:$0xf]
      %v1554 = vld [vmem:[%s1530 + $0x5c] sm:$0xf]
      %v1555 = vld [vmem:[%s1530 + $0x60] sm:$0xf]
      %v1556 = vld [vmem:[%s1530 + $0x64] sm:$0xf]
      %v1557 = vld [vmem:[%s1530 + $0x68] sm:$0xf]
      %v1558 = vld [vmem:[%s1530 + $0x6c] sm:$0xf]
      %v1559 = vld [vmem:[%s1530 + $0x70] sm:$0xf]
      %v1560 = vld [vmem:[%s1530 + $0x74] sm:$0xf]
      %v1561 = vld [vmem:[%s1530 + $0x78] sm:$0xf]
      %v1562 = vld [vmem:[%s1530 + $0x7c] sm:$0xf]
      %v1563 = vld [vmem:[%s1530 + $0x80] sm:$0xf]
      %v1564 = vld [vmem:[%s1530 + $0x84] sm:$0xf]
      %v1565 = vld [vmem:[%s1530 + $0x88] sm:$0xf]
      %v1566 = vld [vmem:[%s1530 + $0x8c] sm:$0xf]
      %v1567 = vld [vmem:[%s1530 + $0x90] sm:$0xf]
      %v1568 = vld [vmem:[%s1530 + $0x94] sm:$0xf]
      %v1569 = vld [vmem:[%s1530 + $0x98] sm:$0xf]
      %v1570 = vld [vmem:[%s1530 + $0x9c] sm:$0xf]
      %v1571 = vld [vmem:[%s1530 + $0xa0] sm:$0xf]
      %v1572 = vld [vmem:[%s1530 + $0xa4] sm:$0xf]
      %v1573 = vld [vmem:[%s1530 + $0xa8] sm:$0xf]
      %v1574 = vld [vmem:[%s1530 + $0xac] sm:$0xf]
      %v1575 = vld [vmem:[%s1530 + $0xb0] sm:$0xf]
      %v1576 = vld [vmem:[%s1530 + $0xb4] sm:$0xf]
      %v1577 = vld [vmem:[%s1530 + $0xb8] sm:$0xf]
      %v1578 = vld [vmem:[%s1530 + $0xbc] sm:$0xf]
      %v1579 = vld [vmem:[%s1530 + $0xc0] sm:$0xf]
      %v1580 = vld [vmem:[%s1530 + $0xc4] sm:$0xf]
      %v1581 = vld [vmem:[%s1530 + $0xc8] sm:$0xf]
      %v1582 = vld [vmem:[%s1530 + $0xcc] sm:$0xf]
      %v1583 = vld [vmem:[%s1530 + $0xd0] sm:$0xf]
      %v1584 = vld [vmem:[%s1530 + $0xd4] sm:$0xf]
      %v1585 = vld [vmem:[%s1530 + $0xd8] sm:$0xf]
      %v1586 = vld [vmem:[%s1530 + $0xdc] sm:$0xf]
      %v1587 = vld [vmem:[%s1530 + $0xe0] sm:$0xf]
      %v1588 = vld [vmem:[%s1530 + $0xe4] sm:$0xf]
      %v1589 = vld [vmem:[%s1530 + $0xe8] sm:$0xf]
      %v1590 = vld [vmem:[%s1530 + $0xec] sm:$0xf]
      %v1591 = vld [vmem:[%s1530 + $0xf0] sm:$0xf]
      %v1592 = vld [vmem:[%s1530 + $0xf4] sm:$0xf]
      %v1593 = vld [vmem:[%s1530 + $0xf8] sm:$0xf]
      %v1594 = vld [vmem:[%s1530 + $0xfc] sm:$0xf]
      %s1595 = scalar_lea.vmem %s10, %s27
      %v1596 = vld [vmem:[%s1595] sm:$0x1]
      %v1598 = vlaneseq
      %v1599 = vshrl.u32 %v1598, 7
      %v1600 = vsub.s32 0, %v1599
      %v1601 = vrot.slane %v1596, %v1600
      %v1667 = vunpack.c.l.b16 %v1531
      %v1668 = vunpack.c.l.b16 %v1532
      %v1669 = vunpack.c.l.b16 %v1533
      %v1670 = vunpack.c.l.b16 %v1534
      %v1671 = vunpack.c.l.b16 %v1535
      %v1672 = vunpack.c.l.b16 %v1536
      %v1673 = vunpack.c.l.b16 %v1537
      %v1674 = vunpack.c.l.b16 %v1538
      %v1675 = vunpack.c.l.b16 %v1539
      %v1676 = vunpack.c.l.b16 %v1540
      %v1677 = vunpack.c.l.b16 %v1541
      %v1678 = vunpack.c.l.b16 %v1542
      %v1679 = vunpack.c.l.b16 %v1543
      %v1680 = vunpack.c.l.b16 %v1544
      %v1681 = vunpack.c.l.b16 %v1545
      %v1682 = vunpack.c.l.b16 %v1546
      %v1683 = vunpack.c.l.b16 %v1547
      %v1684 = vunpack.c.l.b16 %v1548
      %v1685 = vunpack.c.l.b16 %v1549
      %v1686 = vunpack.c.l.b16 %v1550
      %v1687 = vunpack.c.l.b16 %v1551
      %v1688 = vunpack.c.l.b16 %v1552
      %v1689 = vunpack.c.l.b16 %v1553
      %v1690 = vunpack.c.l.b16 %v1554
      %v1691 = vunpack.c.l.b16 %v1555
      %v1692 = vunpack.c.l.b16 %v1556
      %v1693 = vunpack.c.l.b16 %v1557
      %v1694 = vunpack.c.l.b16 %v1558
      %v1695 = vunpack.c.l.b16 %v1559
      %v1696 = vunpack.c.l.b16 %v1560
      %v1697 = vunpack.c.l.b16 %v1561
      %v1698 = vunpack.c.l.b16 %v1562
      %v1699 = vunpack.c.l.b16 %v1563
      %v1700 = vunpack.c.l.b16 %v1564
      %v1701 = vunpack.c.l.b16 %v1565
      %v1702 = vunpack.c.l.b16 %v1566
      %v1703 = vunpack.c.l.b16 %v1567
      %v1704 = vunpack.c.l.b16 %v1568
      %v1705 = vunpack.c.l.b16 %v1569
      %v1706 = vunpack.c.l.b16 %v1570
      %v1707 = vunpack.c.l.b16 %v1571
      %v1708 = vunpack.c.l.b16 %v1572
      %v1709 = vunpack.c.l.b16 %v1573
      %v1710 = vunpack.c.l.b16 %v1574
      %v1711 = vunpack.c.l.b16 %v1575
      %v1712 = vunpack.c.l.b16 %v1576
      %v1713 = vunpack.c.l.b16 %v1577
      %v1714 = vunpack.c.l.b16 %v1578
      %v1715 = vunpack.c.l.b16 %v1579
      %v1716 = vunpack.c.l.b16 %v1580
      %v1717 = vunpack.c.l.b16 %v1581
      %v1718 = vunpack.c.l.b16 %v1582
      %v1719 = vunpack.c.l.b16 %v1583
      %v1720 = vunpack.c.l.b16 %v1584
      %v1721 = vunpack.c.l.b16 %v1585
      %v1722 = vunpack.c.l.b16 %v1586
      %v1723 = vunpack.c.l.b16 %v1587
      %v1724 = vunpack.c.l.b16 %v1588
      %v1725 = vunpack.c.l.b16 %v1589
      %v1726 = vunpack.c.l.b16 %v1590
      %v1727 = vunpack.c.l.b16 %v1591
      %v1728 = vunpack.c.l.b16 %v1592
      %v1729 = vunpack.c.l.b16 %v1593
      %v1730 = vunpack.c.l.b16 %v1594
      %v1731 = vpack.c.b16 %v1668, %v1667
      %v1732 = vpack.c.b16 %v1670, %v1669
      %v1733 = vpack.c.b16 %v1672, %v1671
      %v1734 = vpack.c.b16 %v1674, %v1673
      %v1735 = vpack.c.b16 %v1676, %v1675
      %v1736 = vpack.c.b16 %v1678, %v1677
      %v1737 = vpack.c.b16 %v1680, %v1679
      %v1738 = vpack.c.b16 %v1682, %v1681
      %v1739 = vpack.c.b16 %v1684, %v1683
      %v1740 = vpack.c.b16 %v1686, %v1685
      %v1741 = vpack.c.b16 %v1688, %v1687
      %v1742 = vpack.c.b16 %v1690, %v1689
      %v1743 = vpack.c.b16 %v1692, %v1691
      %v1744 = vpack.c.b16 %v1694, %v1693
      %v1745 = vpack.c.b16 %v1696, %v1695
      %v1746 = vpack.c.b16 %v1698, %v1697
      %v1747 = vpack.c.b16 %v1700, %v1699
      %v1748 = vpack.c.b16 %v1702, %v1701
      %v1749 = vpack.c.b16 %v1704, %v1703
      %v1750 = vpack.c.b16 %v1706, %v1705
      %v1751 = vpack.c.b16 %v1708, %v1707
      %v1752 = vpack.c.b16 %v1710, %v1709
      %v1753 = vpack.c.b16 %v1712, %v1711
      %v1754 = vpack.c.b16 %v1714, %v1713
      %v1755 = vpack.c.b16 %v1716, %v1715
      %v1756 = vpack.c.b16 %v1718, %v1717
      %v1757 = vpack.c.b16 %v1720, %v1719
      %v1758 = vpack.c.b16 %v1722, %v1721
      %v1759 = vpack.c.b16 %v1724, %v1723
      %v1760 = vpack.c.b16 %v1726, %v1725
      %v1761 = vpack.c.b16 %v1728, %v1727
      %v1762 = vpack.c.b16 %v1730, %v1729
      %1795 = vmatprep.subr.bf16.mxu0 0
      %1796 = vmatpush1.bf16.msra.mxu0 %v1738
      %1797 = vmatprep.subr.bf16.mxu0 0
      %1798 = vmatpush1.bf16.msra.mxu0 %v1737
      %1799 = vmatprep.subr.bf16.mxu0 0
      %1800 = vmatpush1.bf16.msra.mxu0 %v1736
      %1801 = vmatprep.subr.bf16.mxu0 0
      %1802 = vmatpush1.bf16.msra.mxu0 %v1735
      %1803 = vmatprep.subr.bf16.mxu0 0
      %1804 = vmatpush1.bf16.msra.mxu0 %v1734
      %1805 = vmatprep.subr.bf16.mxu0 0
      %1806 = vmatpush1.bf16.msra.mxu0 %v1733
      %1807 = vmatprep.subr.bf16.mxu0 0
      %1808 = vmatpush1.bf16.msra.mxu0 %v1732
      %1809 = vmatprep.subr.bf16.mxu0 0
      %1810 = vmatpush1.bf16.msra.mxu0 %v1731
      %1811 = vmatprep.subr.bf16.mxu0 0
      %1812 = vmatpush2.bf16.msra.mxu0 %v1746
      %1813 = vmatprep.subr.bf16.mxu0 0
      %1814 = vmatpush2.bf16.msra.mxu0 %v1745
      %1815 = vmatprep.subr.bf16.mxu0 0
      %1816 = vmatpush2.bf16.msra.mxu0 %v1744
      %1817 = vmatprep.subr.bf16.mxu0 0
      %1818 = vmatpush2.bf16.msra.mxu0 %v1743
      %1819 = vmatprep.subr.bf16.mxu0 0
      %1820 = vmatpush2.bf16.msra.mxu0 %v1742
      %1821 = vmatprep.subr.bf16.mxu0 0
      %1822 = vmatpush2.bf16.msra.mxu0 %v1741
      %1823 = vmatprep.subr.bf16.mxu0 0
      %1824 = vmatpush2.bf16.msra.mxu0 %v1740
      %1825 = vmatprep.subr.bf16.mxu0 0
      %1826 = vmatpush2.bf16.msra.mxu0 %v1739
      %1827 = vmatprep.mubr.bf16.mxu0 %v1514
      %1828 = vmatmul.mubr.bf16.gmra.mxu0 %v1513
      %v1829 = vpop.f32.mrf.mxu0
      %v1830 = vadd.f32 %v1601, %v1829
      %v1831 = vpop.f32.mrf.mxu0
      %v1832 = vpop.f32.mrf.mxu0
      %v1833 = vadd.f32 %v1601, %v1832
      %v1834 = vpop.f32.mrf.mxu0
      %1835 = vmatprep.mubr.bf16.mxu0 %v1518
      %1836 = vmatmul.mubr.bf16.gmra.mxu0 %v1517
      %v1837 = vpop.f32.mrf.mxu0
      %v1838 = vadd.f32 %v1601, %v1837
      %v1839 = vpop.f32.mrf.mxu0
      %v1840 = vpop.f32.mrf.mxu0
      %v1841 = vadd.f32 %v1601, %v1840
      %v1842 = vpop.f32.mrf.mxu0
      %1843 = vmatprep.mubr.bf16.mxu0 %v1522
      %1844 = vmatmul.mubr.bf16.gmra.mxu0 %v1521
      %v1845 = vpop.f32.mrf.mxu0
      %v1846 = vadd.f32 %v1601, %v1845
      %v1847 = vpop.f32.mrf.mxu0
      %v1848 = vpop.f32.mrf.mxu0
      %v1849 = vadd.f32 %v1601, %v1848
      %v1850 = vpop.f32.mrf.mxu0
      %1851 = vmatprep.mubr.bf16.mxu0 %v1526
      %1852 = vmatmul.mubr.bf16.gmra.mxu0 %v1525
      %v1853 = vpop.f32.mrf.mxu0
      %v1854 = vadd.f32 %v1601, %v1853
      %v1855 = vpop.f32.mrf.mxu0
      %v1856 = vpop.f32.mrf.mxu0
      %v1857 = vadd.f32 %v1601, %v1856
      %v1858 = vpop.f32.mrf.mxu0
      %1859 = vdwg.mxu0
      %1860 = vmatprep.subr.bf16.mxu0 0
      %1861 = vmatpush1.bf16.msra.mxu0 %v1754
      %1862 = vmatprep.subr.bf16.mxu0 0
      %1863 = vmatpush1.bf16.msra.mxu0 %v1753
      %1864 = vmatprep.subr.bf16.mxu0 0
      %1865 = vmatpush1.bf16.msra.mxu0 %v1752
      %1866 = vmatprep.subr.bf16.mxu0 0
      %1867 = vmatpush1.bf16.msra.mxu0 %v1751
      %1868 = vmatprep.subr.bf16.mxu0 0
      %1869 = vmatpush1.bf16.msra.mxu0 %v1750
      %1870 = vmatprep.subr.bf16.mxu0 0
      %1871 = vmatpush1.bf16.msra.mxu0 %v1749
      %1872 = vmatprep.subr.bf16.mxu0 0
      %1873 = vmatpush1.bf16.msra.mxu0 %v1748
      %1874 = vmatprep.subr.bf16.mxu0 0
      %1875 = vmatpush1.bf16.msra.mxu0 %v1747
      %1876 = vmatprep.subr.bf16.mxu0 0
      %1877 = vmatpush2.bf16.msra.mxu0 %v1762
      %1878 = vmatprep.subr.bf16.mxu0 0
      %1879 = vmatpush2.bf16.msra.mxu0 %v1761
      %1880 = vmatprep.subr.bf16.mxu0 0
      %1881 = vmatpush2.bf16.msra.mxu0 %v1760
      %1882 = vmatprep.subr.bf16.mxu0 0
      %1883 = vmatpush2.bf16.msra.mxu0 %v1759
      %1884 = vmatprep.subr.bf16.mxu0 0
      %1885 = vmatpush2.bf16.msra.mxu0 %v1758
      %1886 = vmatprep.subr.bf16.mxu0 0
      %1887 = vmatpush2.bf16.msra.mxu0 %v1757
      %1888 = vmatprep.subr.bf16.mxu0 0
      %1889 = vmatpush2.bf16.msra.mxu0 %v1756
      %1890 = vmatprep.subr.bf16.mxu0 0
      %1891 = vmatpush2.bf16.msra.mxu0 %v1755
      %1892 = vmatprep.mubr.bf16.mxu0 %v1516
      %1893 = vmatmul.mubr.bf16.gmra.mxu0 %v1515
      %v1894 = vpop.f32.mrf.mxu0
      %v1895 = vadd.f32 %v1830, %v1894
      %v1896 = vpop.f32.mrf.mxu0
      %v1897 = vpop.f32.mrf.mxu0
      %v1898 = vadd.f32 %v1833, %v1897
      %v1899 = vpop.f32.mrf.mxu0
      %1900 = vmatprep.mubr.bf16.mxu0 %v1520
      %1901 = vmatmul.mubr.bf16.gmra.mxu0 %v1519
      %v1902 = vpop.f32.mrf.mxu0
      %v1903 = vadd.f32 %v1838, %v1902
      %v1904 = vpop.f32.mrf.mxu0
      %v1905 = vpop.f32.mrf.mxu0
      %v1906 = vadd.f32 %v1841, %v1905
      %v1907 = vpop.f32.mrf.mxu0
      %1908 = vmatprep.mubr.bf16.mxu0 %v1524
      %1909 = vmatmul.mubr.bf16.gmra.mxu0 %v1523
      %v1910 = vpop.f32.mrf.mxu0
      %v1911 = vadd.f32 %v1846, %v1910
      %v1912 = vpop.f32.mrf.mxu0
      %v1913 = vpop.f32.mrf.mxu0
      %v1914 = vadd.f32 %v1849, %v1913
      %v1915 = vpop.f32.mrf.mxu0
      %1916 = vmatprep.mubr.bf16.mxu0 %v1528
      %1917 = vmatmul.mubr.bf16.gmra.mxu0 %v1527
      %v1918 = vpop.f32.mrf.mxu0
      %v1919 = vadd.f32 %v1854, %v1918
      %v1920 = vpop.f32.mrf.mxu0
      %v1921 = vpop.f32.mrf.mxu0
      %v1922 = vadd.f32 %v1857, %v1921
      %v1923 = vpop.f32.mrf.mxu0
      %1924 = vdwg.mxu0
      %v1925 = vadd.f32 %v712, %v1895
      %v1926 = vadd.f32 %v713, %v1898
      %v1927 = vadd.f32 %v714, %v1903
      %v1928 = vadd.f32 %v715, %v1906
      %v1929 = vadd.f32 %v716, %v1911
      %v1930 = vadd.f32 %v717, %v1914
      %v1931 = vadd.f32 %v718, %v1919
      %v1932 = vadd.f32 %v719, %v1922
      %p1933 = scmp.lt.s32.totalorder %s27, 1
      // Predicated region
      $region69: #{eurnet_stage_forward.2} parent=63 // pred_check
        %p1934 = pneg %p1933
      $region70: #{eurnet_stage_forward.2} parent=63 // pred_check_branch
        %1936 = sbr.rel (%p1934) target = $region72
      $region71: #{eurnet_stage_forward.2} parent=63 // pred_region
        %1937 = vst [vmem:[#allocation2] sm:$0xff] %v1925
        %1938 = vst [vmem:[#allocation2 + $0x8] sm:$0xff] %v1926
        %1939 = vst [vmem:[#allocation2 + $0x10] sm:$0xff] %v1927
        %1940 = vst [vmem:[#allocation2 + $0x18] sm:$0xff] %v1928
        %1941 = vst [vmem:[#allocation2 + $0x20] sm:$0xff] %v1929
        %1942 = vst [vmem:[#allocation2 + $0x28] sm:$0xff] %v1930
        %1943 = vst [vmem:[#allocation2 + $0x30] sm:$0xff] %v1931
        %1944 = vst [vmem:[#allocation2 + $0x38] sm:$0xff] %v1932
      $region72: #{eurnet_stage_forward.2} parent=63 // pred_fallthru
        _
      %p1945 = scmp.eq.s32.totalorder %s27, 1
      // Predicated region
      $region73: #{eurnet_stage_forward.2} parent=63 // pred_check
        %p1946 = pneg %p1945
      $region74: #{eurnet_stage_forward.2} parent=63 // pred_check_branch
        %1948 = sbr.rel (%p1946) target = $region76
      $region75: #{eurnet_stage_forward.2} parent=63 // pred_region
        %v1949 = vpack.c.bf16 %v1926, %v1925
        %v1950 = vpack.c.bf16 %v1928, %v1927
        %v1951 = vpack.c.bf16 %v1930, %v1929
        %v1952 = vpack.c.bf16 %v1932, %v1931
        %v1957 = vunpack.c.l.b16 %v1949
        %v1958 = vunpack.c.h.b16 %v1949
        %v1959 = vunpack.c.l.b16 %v1950
        %v1960 = vunpack.c.h.b16 %v1950
        %v1961 = vunpack.c.l.b16 %v1951
        %v1962 = vunpack.c.h.b16 %v1951
        %v1963 = vunpack.c.l.b16 %v1952
        %v1964 = vunpack.c.h.b16 %v1952
        %v1965 = vpack.c.b16 %v1957, %v1957
        %v1966 = vpack.c.b16 %v1958, %v1958
        %v1967 = vpack.c.b16 %v1959, %v1959
        %v1968 = vpack.c.b16 %v1960, %v1960
        %v1969 = vpack.c.b16 %v1961, %v1961
        %v1970 = vpack.c.b16 %v1962, %v1962
        %v1971 = vpack.c.b16 %v1963, %v1963
        %v1972 = vpack.c.b16 %v1964, %v1964
        %1981 = vst [vmem:[%s400] sm:$0xf] %v1965
        %1982 = vst [vmem:[%s400 + $0x4] sm:$0xf] %v1966
        %1983 = vst [vmem:[%s400 + $0x8] sm:$0xf] %v1967
        %1984 = vst [vmem:[%s400 + $0xc] sm:$0xf] %v1968
        %1985 = vst [vmem:[%s400 + $0x10] sm:$0xf] %v1969
        %1986 = vst [vmem:[%s400 + $0x14] sm:$0xf] %v1970
        %1987 = vst [vmem:[%s400 + $0x18] sm:$0xf] %v1971
        %1988 = vst [vmem:[%s400 + $0x1c] sm:$0xf] %v1972
      $region76: #{eurnet_stage_forward.2} parent=63 // pred_fallthru
        _
      %s1989 = smul.u32 8, %s26
      %p1990 = scmp.lt.s32.totalorder %s1989, 15
      %s1991 = scalar_select %p1990, %s1989, 15
      %s1992 = smul.addr %s1991, 4
      %s1993 = scalar_lea.vmem %s11, %s1992
      // Predicated region
      $region77: #{eurnet_stage_forward.2} parent=63 // pred_check
        %p1994 = pneg %p288
      $region78: #{eurnet_stage_forward.2} parent=63 // pred_check_branch
        %1996 = sbr.rel (%p1994) target = $region80
      $region79: #{eurnet_stage_forward.2} parent=63 // pred_region
        %s1997 = smul.u32 8, %s26
      $region80: #{eurnet_stage_forward.2} parent=63 // pred_fallthru
        _
    $region64: #{eurnet_stage_forward.2} parent=5 // pred_fallthru
      _
    %p1998 = scmp.le.s32.totalorder 2, %s17
    // Predicated region
    $region81: #{eurnet_stage_forward.2} parent=5 // pred_check
      %p1999 = pneg %p1998
    $region82: #{eurnet_stage_forward.2} parent=5 // pred_check_branch
      %2001 = sbr.rel (%p1999) target = $region84
    $region83: #{eurnet_stage_forward.2} parent=5 // pred_region
      %s2002 = ssub.s32 %s17, 2
      // Predicated region
      $region85: #{eurnet_stage_forward.2} parent=83 // pred_check
        %p2003 = pneg %p294
      $region86: #{eurnet_stage_forward.2} parent=83 // pred_check_branch
        %2005 = sbr.rel (%p2003) target = $region88
      $region87: #{eurnet_stage_forward.2} parent=83 // pred_region
        %s2006 = smul.u32 8, %s28
        %p2007 = scmp.lt.s32.totalorder %s2006, 15
        %s2008 = scalar_select %p2007, %s2006, 15
        %s2009 = smul.addr %s2008, 4
        %s2010 = scalar_lea.vmem %s11, %s2009
      $region88: #{eurnet_stage_forward.2} parent=83 // pred_fallthru
        _
    $region84: #{eurnet_stage_forward.2} parent=5 // pred_fallthru
      _
  $region6: #{eurnet_stage_forward.2} parent=0 // loop_footer
    %s21 = sadd.s32 1, %s17
  $region7: #{eurnet_stage_forward.2} parent=0 // loop_footer_branch
    %16 = sbr.rel target = $region3
  $region8: #{eurnet_stage_forward.2} parent=0 // loop_exit
    _

</llo_original>
